<compile_context>
chip_gen: v7x
topology: tpu7x:2x2x1
jax: 0.10.0
libtpu: 0.0.40
codegen_flags: <defaults>
</compile_context>

<pallas_src>
import jax
import jax.numpy as jnp
from jax import lax
from jax.experimental import pallas as pl
from jax.experimental.pallas import tpu as pltpu


def _fused_kernel(w1_ref, b1_ref, w2_ref, b2_ref, x_ref, out_ref, xp_ref):
    # x_ref  : (Nb, 3, H,  W)       raw (un-padded) input block
    # out_ref: (4, Nb, 6, Ho, Wo)   staged output (cat-block, n, channel, h, w)
    # xp_ref : (3, H+4, W+4)        VMEM scratch, zero-padded copy of one image
    Nb, C, H, W = x_ref.shape
    Ho, Wo = out_ref.shape[3], out_ref.shape[4]

    # In-kernel zero padding: zero once, then overwrite the interior per image.
    xp_ref[...] = jnp.zeros_like(xp_ref)

    for nb in range(Nb):
        for ci in range(C):
            xp_ref[ci, 2:2 + H, 2:2 + W] = x_ref[nb, ci]

        # ---- conv1 (1x1, pad=1, cropped to conv2's output window) ----------
        # x[i+2, j+2] == xp[i+4, j+4]; 3 loads re-used for all output channels.
        x1 = [xp_ref[ci, 4:4 + Ho, 4:4 + Wo] for ci in range(C)]
        v1 = []
        for co in range(3):
            a = jnp.zeros((Ho, Wo), jnp.float32) + b1_ref[co]
            for ci in range(C):
                a = a + w1_ref[co * C + ci] * x1[ci]
            v1.append(a)

        # ---- conv2 (5x5, pad=2, dilation=2):  xp[i + 2*kh, j + 2*kw] --------
        # Hoisted lane-offset slices: one load per (ci, kw) = 15 total, only
        # cheap sublane (kh) offsets inside, shared by all 3 output channels.
        v2 = [jnp.zeros((Ho, Wo), jnp.float32) + b2_ref[co] for co in range(3)]
        for ci in range(C):
            for kw in range(5):
                col = xp_ref[ci, :, 2 * kw:2 * kw + Wo]        # (H+4, Wo)
                for kh in range(5):
                    tap = col[2 * kh:2 * kh + Ho, :]           # (Ho, Wo)
                    for co in range(3):
                        w = w2_ref[((co * C + ci) * 5 + kh) * 5 + kw]
                        v2[co] = v2[co] + w * tap

        # ---- fused elementwise / cat / where, stored incrementally ----------
        for c in range(3):
            v1c, v2c = v1[c], v2[c]
            v5c = v1c * 0.1
            v7c = v2c * 0.1
            v4c = v2c > 0.0
            v10c = jnp.where(v1c > 0.0, v5c, v7c)
            bot_a = jnp.where(v4c, v5c, v10c)     # blocks 0 & 2, channels 3..5
            bot_b = jnp.where(v4c, v7c, v10c)     # blocks 1 & 3, channels 3..5
            out_ref[0, nb, c] = jnp.where(v4c, v1c, v10c)
            out_ref[1, nb, c] = jnp.where(v4c, v2c, v10c)
            out_ref[2, nb, c] = jnp.where(v4c, -v1c, v10c)
            out_ref[3, nb, c] = jnp.where(v4c, -v2c, v10c)
            out_ref[0, nb, 3 + c] = bot_a
            out_ref[2, nb, 3 + c] = bot_a
            out_ref[1, nb, 3 + c] = bot_b
            out_ref[3, nb, 3 + c] = bot_b


def model_forward(x, w1, b1, w2, b2, *, batch_block=1):
    N, C, H, W = x.shape
    assert C == 3
    assert N % batch_block == 0
    Ho, Wo = H - 4, W - 4
    Hp, Wp = H + 4, W + 4

    out5 = pl.pallas_call(
        _fused_kernel,
        out_shape=jax.ShapeDtypeStruct((4, N, 6, Ho, Wo), jnp.float32),
        grid=(N // batch_block,),
        in_specs=[
            pl.BlockSpec(memory_space=pltpu.MemorySpace.SMEM),   # w1 flat (9,)
            pl.BlockSpec(memory_space=pltpu.MemorySpace.SMEM),   # b1 (3,)
            pl.BlockSpec(memory_space=pltpu.MemorySpace.SMEM),   # w2 flat (225,)
            pl.BlockSpec(memory_space=pltpu.MemorySpace.SMEM),   # b2 (3,)
            pl.BlockSpec((batch_block, 3, H, W), lambda n: (n, 0, 0, 0)),
        ],
        out_specs=pl.BlockSpec((4, batch_block, 6, Ho, Wo),
                               lambda n: (0, n, 0, 0, 0)),
        scratch_shapes=[pltpu.VMEM((3, Hp, Wp), jnp.float32)],
        compiler_params=pltpu.CompilerParams(
            dimension_semantics=("parallel",)),
    )(w1.reshape(9), b1, w2.reshape(225), b2, x)

    # (4, N, 6, Ho, Wo) -> (4N, 6, Ho, Wo): same order as torch.cat along dim 0.
    return out5.reshape(4 * N, 6, Ho, Wo)


def model_forward_ref(x, w1, b1, w2, b2):
    """Pure-JAX reference with the same shape reconciliations."""
    N, C, H, W = x.shape
    Ho, Wo = H - 4, W - 4
    dn1 = lax.conv_dimension_numbers(x.shape, (3, 3, 1, 1), ('NCHW', 'OIHW', 'NCHW'))
    v1_full = lax.conv_general_dilated(x, w1.reshape(3, 3, 1, 1), (1, 1),
                                       [(1, 1), (1, 1)], dimension_numbers=dn1)
    v1_full = v1_full + b1.reshape(1, 3, 1, 1)
    v1 = v1_full[:, :, 3:3 + Ho, 3:3 + Wo]

    dn2 = lax.conv_dimension_numbers(x.shape, w2.shape, ('NCHW', 'OIHW', 'NCHW'))
    v2 = lax.conv_general_dilated(x, w2, (1, 1), [(2, 2), (2, 2)],
                                  rhs_dilation=(2, 2), dimension_numbers=dn2)
    v2 = v2 + b2.reshape(1, 3, 1, 1)

    v3 = v1 > 0
    v4 = v2 > 0
    v5 = v1 * 0.1
    v7 = v2 * 0.1
    v6 = jnp.concatenate([v1, v2, -v1, -v2], axis=0)
    v8 = jnp.concatenate([v5, v7], axis=0)
    v8t = jnp.concatenate([v8, v8], axis=0)            # batch fix 2N -> 4N
    v9 = jnp.concatenate([v6, v8t], axis=1)
    v10 = jnp.where(v3, v5, v7)
    v4b = jnp.tile(v4, (4, 2, 1, 1))                   # broadcast fix
    v10b = jnp.tile(v10, (4, 2, 1, 1))                 # broadcast fix
    return jnp.where(v4b, v9, v10b)


if __name__ == "__main__":
    key = jax.random.PRNGKey(0)
    kx, k1, k2, k3, k4 = jax.random.split(key, 5)
    N, C, H, W = 2, 3, 16, 16
    x = jax.random.normal(kx, (N, C, H, W), jnp.float32)
    w1 = jax.random.normal(k1, (3, 3), jnp.float32) * 0.2     # conv1 weight (3,3,1,1)
    b1 = jax.random.normal(k2, (3,), jnp.float32) * 0.1
    w2 = jax.random.normal(k3, (3, 3, 5, 5), jnp.float32) * 0.2
    b2 = jax.random.normal(k4, (3,), jnp.float32) * 0.1

    out = model_forward(x, w1, b1, w2, b2)
    out = jax.block_until_ready(out)

    ref = model_forward_ref(x, w1, b1, w2, b2)
    assert out.shape == (4 * N, 6, H - 4, W - 4), out.shape
    assert jnp.allclose(out, ref, atol=1e-4, rtol=1e-4), "mismatch vs JAX reference"
    print("KERNEL_OK")
</pallas_src>

<mosaic_0001>
module attributes {stable_mosaic.version = 11 : i64} {
  func.func @_fused_kernel(%arg0: i32, %arg1: memref<9xf32, #tpu.memory_space<smem>>, %arg2: memref<3xf32, #tpu.memory_space<smem>>, %arg3: memref<225xf32, #tpu.memory_space<smem>>, %arg4: memref<3xf32, #tpu.memory_space<smem>>, %arg5: memref<1x3x16x16xf32, #tpu.memory_space<vmem>>, %arg6: memref<4x1x6x12x12xf32, #tpu.memory_space<vmem>>, %arg7: memref<3x20x20xf32, #tpu.memory_space<vmem>>) attributes {dimension_semantics = [#tpu.dimension_semantics<parallel>], iteration_bounds = array<i64: 2>, scalar_prefetch = 0 : i64, scratch_operands = 1 : i64, tpu.core_type = #tpu.core_type<tc>, window_params = [{transform_indices = @transform_0, window_bounds = array<i64: 9>}, {transform_indices = @transform_1, window_bounds = array<i64: 3>}, {transform_indices = @transform_2, window_bounds = array<i64: 225>}, {transform_indices = @transform_3, window_bounds = array<i64: 3>}, {transform_indices = @transform_4, window_bounds = array<i64: 1, 3, 16, 16>}, {transform_indices = @transform_5, window_bounds = array<i64: 4, 1, 6, 12, 12>}]} {
    %cst = arith.constant 0.000000e+00 : f32
    %0 = vector.broadcast %cst : f32 to vector<3x20x20xf32>
    %c0 = arith.constant 0 : index
    %c0_0 = arith.constant 0 : index
    %c0_1 = arith.constant 0 : index
    %1 = vector.load %arg7[%c0, %c0_0, %c0_1] : memref<3x20x20xf32, #tpu.memory_space<vmem>>, vector<3x20x20xf32>
    tpu.vector_store %arg7[%c0, %c0_0, %c0_1], %0 {strides = array<i32>} : memref<3x20x20xf32, #tpu.memory_space<vmem>>, vector<3x20x20xf32>,
    %c0_2 = arith.constant 0 : index
    %c0_3 = arith.constant 0 : index
    %c0_4 = arith.constant 0 : index
    %c0_5 = arith.constant 0 : index
    %2 = vector.load %arg5[%c0_2, %c0_3, %c0_4, %c0_5] : memref<1x3x16x16xf32, #tpu.memory_space<vmem>>, vector<1x1x16x16xf32>
    %3 = vector.shape_cast %2 : vector<1x1x16x16xf32> to vector<16x16xf32>
    %c0_6 = arith.constant 0 : index
    %c2 = arith.constant 2 : index
    %c2_7 = arith.constant 2 : index
    %4 = vector.load %arg7[%c0_6, %c2, %c2_7] : memref<3x20x20xf32, #tpu.memory_space<vmem>>, vector<1x16x16xf32>
    %5 = vector.shape_cast %4 : vector<1x16x16xf32> to vector<16x16xf32>
    %6 = vector.shape_cast %3 : vector<16x16xf32> to vector<1x16x16xf32>
    tpu.vector_store %arg7[%c0_6, %c2, %c2_7], %6 {strides = array<i32>} : memref<3x20x20xf32, #tpu.memory_space<vmem>>, vector<1x16x16xf32>,
    %c0_8 = arith.constant 0 : index
    %c1 = arith.constant 1 : index
    %c0_9 = arith.constant 0 : index
    %c0_10 = arith.constant 0 : index
    %7 = vector.load %arg5[%c0_8, %c1, %c0_9, %c0_10] : memref<1x3x16x16xf32, #tpu.memory_space<vmem>>, vector<1x1x16x16xf32>
    %8 = vector.shape_cast %7 : vector<1x1x16x16xf32> to vector<16x16xf32>
    %c1_11 = arith.constant 1 : index
    %c2_12 = arith.constant 2 : index
    %c2_13 = arith.constant 2 : index
    %9 = vector.load %arg7[%c1_11, %c2_12, %c2_13] : memref<3x20x20xf32, #tpu.memory_space<vmem>>, vector<1x16x16xf32>
    %10 = vector.shape_cast %9 : vector<1x16x16xf32> to vector<16x16xf32>
    %11 = vector.shape_cast %8 : vector<16x16xf32> to vector<1x16x16xf32>
    tpu.vector_store %arg7[%c1_11, %c2_12, %c2_13], %11 {strides = array<i32>} : memref<3x20x20xf32, #tpu.memory_space<vmem>>, vector<1x16x16xf32>,
    %c0_14 = arith.constant 0 : index
    %c2_15 = arith.constant 2 : index
    %c0_16 = arith.constant 0 : index
    %c0_17 = arith.constant 0 : index
    %12 = vector.load %arg5[%c0_14, %c2_15, %c0_16, %c0_17] : memref<1x3x16x16xf32, #tpu.memory_space<vmem>>, vector<1x1x16x16xf32>
    %13 = vector.shape_cast %12 : vector<1x1x16x16xf32> to vector<16x16xf32>
    %c2_18 = arith.constant 2 : index
    %c2_19 = arith.constant 2 : index
    %c2_20 = arith.constant 2 : index
    %14 = vector.load %arg7[%c2_18, %c2_19, %c2_20] : memref<3x20x20xf32, #tpu.memory_space<vmem>>, vector<1x16x16xf32>
    %15 = vector.shape_cast %14 : vector<1x16x16xf32> to vector<16x16xf32>
    %16 = vector.shape_cast %13 : vector<16x16xf32> to vector<1x16x16xf32>
    tpu.vector_store %arg7[%c2_18, %c2_19, %c2_20], %16 {strides = array<i32>} : memref<3x20x20xf32, #tpu.memory_space<vmem>>, vector<1x16x16xf32>,
    %c0_21 = arith.constant 0 : index
    %c4 = arith.constant 4 : index
    %c4_22 = arith.constant 4 : index
    %17 = vector.load %arg7[%c0_21, %c4, %c4_22] : memref<3x20x20xf32, #tpu.memory_space<vmem>>, vector<1x12x12xf32>
    %18 = vector.shape_cast %17 : vector<1x12x12xf32> to vector<12x12xf32>
    %c1_23 = arith.constant 1 : index
    %c4_24 = arith.constant 4 : index
    %c4_25 = arith.constant 4 : index
    %19 = vector.load %arg7[%c1_23, %c4_24, %c4_25] : memref<3x20x20xf32, #tpu.memory_space<vmem>>, vector<1x12x12xf32>
    %20 = vector.shape_cast %19 : vector<1x12x12xf32> to vector<12x12xf32>
    %c2_26 = arith.constant 2 : index
    %c4_27 = arith.constant 4 : index
    %c4_28 = arith.constant 4 : index
    %21 = vector.load %arg7[%c2_26, %c4_27, %c4_28] : memref<3x20x20xf32, #tpu.memory_space<vmem>>, vector<1x12x12xf32>
    %22 = vector.shape_cast %21 : vector<1x12x12xf32> to vector<12x12xf32>
    %cst_29 = arith.constant 0.000000e+00 : f32
    %23 = vector.broadcast %cst_29 : f32 to vector<12x12xf32>
    %c0_30 = arith.constant 0 : index
    %24 = memref.load %arg2[%c0_30] : memref<3xf32, #tpu.memory_space<smem>>
    %25 = vector.broadcast %24 : f32 to vector<12x12xf32>
    %26 = arith.addf %23, %25 : vector<12x12xf32>
    %c0_31 = arith.constant 0 : index
    %27 = memref.load %arg1[%c0_31] : memref<9xf32, #tpu.memory_space<smem>>
    %28 = vector.broadcast %27 : f32 to vector<12x12xf32>
    %29 = arith.mulf %28, %18 : vector<12x12xf32>
    %30 = arith.addf %26, %29 : vector<12x12xf32>
    %c1_32 = arith.constant 1 : index
    %31 = memref.load %arg1[%c1_32] : memref<9xf32, #tpu.memory_space<smem>>
    %32 = vector.broadcast %31 : f32 to vector<12x12xf32>
    %33 = arith.mulf %32, %20 : vector<12x12xf32>
    %34 = arith.addf %30, %33 : vector<12x12xf32>
    %c2_33 = arith.constant 2 : index
    %35 = memref.load %arg1[%c2_33] : memref<9xf32, #tpu.memory_space<smem>>
    %36 = vector.broadcast %35 : f32 to vector<12x12xf32>
    %37 = arith.mulf %36, %22 : vector<12x12xf32>
    %38 = arith.addf %34, %37 : vector<12x12xf32>
    %cst_34 = arith.constant 0.000000e+00 : f32
    %39 = vector.broadcast %cst_34 : f32 to vector<12x12xf32>
    %c1_35 = arith.constant 1 : index
    %40 = memref.load %arg2[%c1_35] : memref<3xf32, #tpu.memory_space<smem>>
    %41 = vector.broadcast %40 : f32 to vector<12x12xf32>
    %42 = arith.addf %39, %41 : vector<12x12xf32>
    %c3 = arith.constant 3 : index
    %43 = memref.load %arg1[%c3] : memref<9xf32, #tpu.memory_space<smem>>
    %44 = vector.broadcast %43 : f32 to vector<12x12xf32>
    %45 = arith.mulf %44, %18 : vector<12x12xf32>
    %46 = arith.addf %42, %45 : vector<12x12xf32>
    %c4_36 = arith.constant 4 : index
    %47 = memref.load %arg1[%c4_36] : memref<9xf32, #tpu.memory_space<smem>>
    %48 = vector.broadcast %47 : f32 to vector<12x12xf32>
    %49 = arith.mulf %48, %20 : vector<12x12xf32>
    %50 = arith.addf %46, %49 : vector<12x12xf32>
    %c5 = arith.constant 5 : index
    %51 = memref.load %arg1[%c5] : memref<9xf32, #tpu.memory_space<smem>>
    %52 = vector.broadcast %51 : f32 to vector<12x12xf32>
    %53 = arith.mulf %52, %22 : vector<12x12xf32>
    %54 = arith.addf %50, %53 : vector<12x12xf32>
    %cst_37 = arith.constant 0.000000e+00 : f32
    %55 = vector.broadcast %cst_37 : f32 to vector<12x12xf32>
    %c2_38 = arith.constant 2 : index
    %56 = memref.load %arg2[%c2_38] : memref<3xf32, #tpu.memory_space<smem>>
    %57 = vector.broadcast %56 : f32 to vector<12x12xf32>
    %58 = arith.addf %55, %57 : vector<12x12xf32>
    %c6 = arith.constant 6 : index
    %59 = memref.load %arg1[%c6] : memref<9xf32, #tpu.memory_space<smem>>
    %60 = vector.broadcast %59 : f32 to vector<12x12xf32>
    %61 = arith.mulf %60, %18 : vector<12x12xf32>
    %62 = arith.addf %58, %61 : vector<12x12xf32>
    %c7 = arith.constant 7 : index
    %63 = memref.load %arg1[%c7] : memref<9xf32, #tpu.memory_space<smem>>
    %64 = vector.broadcast %63 : f32 to vector<12x12xf32>
    %65 = arith.mulf %64, %20 : vector<12x12xf32>
    %66 = arith.addf %62, %65 : vector<12x12xf32>
    %c8 = arith.constant 8 : index
    %67 = memref.load %arg1[%c8] : memref<9xf32, #tpu.memory_space<smem>>
    %68 = vector.broadcast %67 : f32 to vector<12x12xf32>
    %69 = arith.mulf %68, %22 : vector<12x12xf32>
    %70 = arith.addf %66, %69 : vector<12x12xf32>
    %cst_39 = arith.constant 0.000000e+00 : f32
    %71 = vector.broadcast %cst_39 : f32 to vector<12x12xf32>
    %c0_40 = arith.constant 0 : index
    %72 = memref.load %arg4[%c0_40] : memref<3xf32, #tpu.memory_space<smem>>
    %73 = vector.broadcast %72 : f32 to vector<12x12xf32>
    %74 = arith.addf %71, %73 : vector<12x12xf32>
    %cst_41 = arith.constant 0.000000e+00 : f32
    %75 = vector.broadcast %cst_41 : f32 to vector<12x12xf32>
    %c1_42 = arith.constant 1 : index
    %76 = memref.load %arg4[%c1_42] : memref<3xf32, #tpu.memory_space<smem>>
    %77 = vector.broadcast %76 : f32 to vector<12x12xf32>
    %78 = arith.addf %75, %77 : vector<12x12xf32>
    %cst_43 = arith.constant 0.000000e+00 : f32
    %79 = vector.broadcast %cst_43 : f32 to vector<12x12xf32>
    %c2_44 = arith.constant 2 : index
    %80 = memref.load %arg4[%c2_44] : memref<3xf32, #tpu.memory_space<smem>>
    %81 = vector.broadcast %80 : f32 to vector<12x12xf32>
    %82 = arith.addf %79, %81 : vector<12x12xf32>
    %c0_45 = arith.constant 0 : index
    %c0_46 = arith.constant 0 : index
    %c0_47 = arith.constant 0 : index
    %83 = vector.load %arg7[%c0_45, %c0_46, %c0_47] : memref<3x20x20xf32, #tpu.memory_space<vmem>>, vector<1x20x12xf32>
    %84 = vector.shape_cast %83 : vector<1x20x12xf32> to vector<20x12xf32>
    %85 = vector.extract_strided_slice %84 {offsets = [0, 0], sizes = [12, 12], strides = [1, 1]} : vector<20x12xf32> to vector<12x12xf32>
    %c0_48 = arith.constant 0 : index
    %86 = memref.load %arg3[%c0_48] : memref<225xf32, #tpu.memory_space<smem>>
    %87 = vector.broadcast %86 : f32 to vector<12x12xf32>
    %88 = arith.mulf %87, %85 : vector<12x12xf32>
    %89 = arith.addf %74, %88 : vector<12x12xf32>
    %c75 = arith.constant 75 : index
    %90 = memref.load %arg3[%c75] : memref<225xf32, #tpu.memory_space<smem>>
    %91 = vector.broadcast %90 : f32 to vector<12x12xf32>
    %92 = arith.mulf %91, %85 : vector<12x12xf32>
    %93 = arith.addf %78, %92 : vector<12x12xf32>
    %c150 = arith.constant 150 : index
    %94 = memref.load %arg3[%c150] : memref<225xf32, #tpu.memory_space<smem>>
    %95 = vector.broadcast %94 : f32 to vector<12x12xf32>
    %96 = arith.mulf %95, %85 : vector<12x12xf32>
    %97 = arith.addf %82, %96 : vector<12x12xf32>
    %98 = vector.extract_strided_slice %84 {offsets = [2, 0], sizes = [12, 12], strides = [1, 1]} : vector<20x12xf32> to vector<12x12xf32>
    %c5_49 = arith.constant 5 : index
    %99 = memref.load %arg3[%c5_49] : memref<225xf32, #tpu.memory_space<smem>>
    %100 = vector.broadcast %99 : f32 to vector<12x12xf32>
    %101 = arith.mulf %100, %98 : vector<12x12xf32>
    %102 = arith.addf %89, %101 : vector<12x12xf32>
    %c80 = arith.constant 80 : index
    %103 = memref.load %arg3[%c80] : memref<225xf32, #tpu.memory_space<smem>>
    %104 = vector.broadcast %103 : f32 to vector<12x12xf32>
    %105 = arith.mulf %104, %98 : vector<12x12xf32>
    %106 = arith.addf %93, %105 : vector<12x12xf32>
    %c155 = arith.constant 155 : index
    %107 = memref.load %arg3[%c155] : memref<225xf32, #tpu.memory_space<smem>>
    %108 = vector.broadcast %107 : f32 to vector<12x12xf32>
    %109 = arith.mulf %108, %98 : vector<12x12xf32>
    %110 = arith.addf %97, %109 : vector<12x12xf32>
    %111 = vector.extract_strided_slice %84 {offsets = [4, 0], sizes = [12, 12], strides = [1, 1]} : vector<20x12xf32> to vector<12x12xf32>
    %c10 = arith.constant 10 : index
    %112 = memref.load %arg3[%c10] : memref<225xf32, #tpu.memory_space<smem>>
    %113 = vector.broadcast %112 : f32 to vector<12x12xf32>
    %114 = arith.mulf %113, %111 : vector<12x12xf32>
    %115 = arith.addf %102, %114 : vector<12x12xf32>
    %c85 = arith.constant 85 : index
    %116 = memref.load %arg3[%c85] : memref<225xf32, #tpu.memory_space<smem>>
    %117 = vector.broadcast %116 : f32 to vector<12x12xf32>
    %118 = arith.mulf %117, %111 : vector<12x12xf32>
    %119 = arith.addf %106, %118 : vector<12x12xf32>
    %c160 = arith.constant 160 : index
    %120 = memref.load %arg3[%c160] : memref<225xf32, #tpu.memory_space<smem>>
    %121 = vector.broadcast %120 : f32 to vector<12x12xf32>
    %122 = arith.mulf %121, %111 : vector<12x12xf32>
    %123 = arith.addf %110, %122 : vector<12x12xf32>
    %124 = vector.extract_strided_slice %84 {offsets = [6, 0], sizes = [12, 12], strides = [1, 1]} : vector<20x12xf32> to vector<12x12xf32>
    %c15 = arith.constant 15 : index
    %125 = memref.load %arg3[%c15] : memref<225xf32, #tpu.memory_space<smem>>
    %126 = vector.broadcast %125 : f32 to vector<12x12xf32>
    %127 = arith.mulf %126, %124 : vector<12x12xf32>
    %128 = arith.addf %115, %127 : vector<12x12xf32>
    %c90 = arith.constant 90 : index
    %129 = memref.load %arg3[%c90] : memref<225xf32, #tpu.memory_space<smem>>
    %130 = vector.broadcast %129 : f32 to vector<12x12xf32>
    %131 = arith.mulf %130, %124 : vector<12x12xf32>
    %132 = arith.addf %119, %131 : vector<12x12xf32>
    %c165 = arith.constant 165 : index
    %133 = memref.load %arg3[%c165] : memref<225xf32, #tpu.memory_space<smem>>
    %134 = vector.broadcast %133 : f32 to vector<12x12xf32>
    %135 = arith.mulf %134, %124 : vector<12x12xf32>
    %136 = arith.addf %123, %135 : vector<12x12xf32>
    %137 = vector.extract_strided_slice %84 {offsets = [8, 0], sizes = [12, 12], strides = [1, 1]} : vector<20x12xf32> to vector<12x12xf32>
    %c20 = arith.constant 20 : index
    %138 = memref.load %arg3[%c20] : memref<225xf32, #tpu.memory_space<smem>>
    %139 = vector.broadcast %138 : f32 to vector<12x12xf32>
    %140 = arith.mulf %139, %137 : vector<12x12xf32>
    %141 = arith.addf %128, %140 : vector<12x12xf32>
    %c95 = arith.constant 95 : index
    %142 = memref.load %arg3[%c95] : memref<225xf32, #tpu.memory_space<smem>>
    %143 = vector.broadcast %142 : f32 to vector<12x12xf32>
    %144 = arith.mulf %143, %137 : vector<12x12xf32>
    %145 = arith.addf %132, %144 : vector<12x12xf32>
    %c170 = arith.constant 170 : index
    %146 = memref.load %arg3[%c170] : memref<225xf32, #tpu.memory_space<smem>>
    %147 = vector.broadcast %146 : f32 to vector<12x12xf32>
    %148 = arith.mulf %147, %137 : vector<12x12xf32>
    %149 = arith.addf %136, %148 : vector<12x12xf32>
    %c0_50 = arith.constant 0 : index
    %c0_51 = arith.constant 0 : index
    %c2_52 = arith.constant 2 : index
    %150 = vector.load %arg7[%c0_50, %c0_51, %c2_52] : memref<3x20x20xf32, #tpu.memory_space<vmem>>, vector<1x20x12xf32>
    %151 = vector.shape_cast %150 : vector<1x20x12xf32> to vector<20x12xf32>
    %152 = vector.extract_strided_slice %151 {offsets = [0, 0], sizes = [12, 12], strides = [1, 1]} : vector<20x12xf32> to vector<12x12xf32>
    %c1_53 = arith.constant 1 : index
    %153 = memref.load %arg3[%c1_53] : memref<225xf32, #tpu.memory_space<smem>>
    %154 = vector.broadcast %153 : f32 to vector<12x12xf32>
    %155 = arith.mulf %154, %152 : vector<12x12xf32>
    %156 = arith.addf %141, %155 : vector<12x12xf32>
    %c76 = arith.constant 76 : index
    %157 = memref.load %arg3[%c76] : memref<225xf32, #tpu.memory_space<smem>>
    %158 = vector.broadcast %157 : f32 to vector<12x12xf32>
    %159 = arith.mulf %158, %152 : vector<12x12xf32>
    %160 = arith.addf %145, %159 : vector<12x12xf32>
    %c151 = arith.constant 151 : index
    %161 = memref.load %arg3[%c151] : memref<225xf32, #tpu.memory_space<smem>>
    %162 = vector.broadcast %161 : f32 to vector<12x12xf32>
    %163 = arith.mulf %162, %152 : vector<12x12xf32>
    %164 = arith.addf %149, %163 : vector<12x12xf32>
    %165 = vector.extract_strided_slice %151 {offsets = [2, 0], sizes = [12, 12], strides = [1, 1]} : vector<20x12xf32> to vector<12x12xf32>
    %c6_54 = arith.constant 6 : index
    %166 = memref.load %arg3[%c6_54] : memref<225xf32, #tpu.memory_space<smem>>
    %167 = vector.broadcast %166 : f32 to vector<12x12xf32>
    %168 = arith.mulf %167, %165 : vector<12x12xf32>
    %169 = arith.addf %156, %168 : vector<12x12xf32>
    %c81 = arith.constant 81 : index
    %170 = memref.load %arg3[%c81] : memref<225xf32, #tpu.memory_space<smem>>
    %171 = vector.broadcast %170 : f32 to vector<12x12xf32>
    %172 = arith.mulf %171, %165 : vector<12x12xf32>
    %173 = arith.addf %160, %172 : vector<12x12xf32>
    %c156 = arith.constant 156 : index
    %174 = memref.load %arg3[%c156] : memref<225xf32, #tpu.memory_space<smem>>
    %175 = vector.broadcast %174 : f32 to vector<12x12xf32>
    %176 = arith.mulf %175, %165 : vector<12x12xf32>
    %177 = arith.addf %164, %176 : vector<12x12xf32>
    %178 = vector.extract_strided_slice %151 {offsets = [4, 0], sizes = [12, 12], strides = [1, 1]} : vector<20x12xf32> to vector<12x12xf32>
    %c11 = arith.constant 11 : index
    %179 = memref.load %arg3[%c11] : memref<225xf32, #tpu.memory_space<smem>>
    %180 = vector.broadcast %179 : f32 to vector<12x12xf32>
    %181 = arith.mulf %180, %178 : vector<12x12xf32>
    %182 = arith.addf %169, %181 : vector<12x12xf32>
    %c86 = arith.constant 86 : index
    %183 = memref.load %arg3[%c86] : memref<225xf32, #tpu.memory_space<smem>>
    %184 = vector.broadcast %183 : f32 to vector<12x12xf32>
    %185 = arith.mulf %184, %178 : vector<12x12xf32>
    %186 = arith.addf %173, %185 : vector<12x12xf32>
    %c161 = arith.constant 161 : index
    %187 = memref.load %arg3[%c161] : memref<225xf32, #tpu.memory_space<smem>>
    %188 = vector.broadcast %187 : f32 to vector<12x12xf32>
    %189 = arith.mulf %188, %178 : vector<12x12xf32>
    %190 = arith.addf %177, %189 : vector<12x12xf32>
    %191 = vector.extract_strided_slice %151 {offsets = [6, 0], sizes = [12, 12], strides = [1, 1]} : vector<20x12xf32> to vector<12x12xf32>
    %c16 = arith.constant 16 : index
    %192 = memref.load %arg3[%c16] : memref<225xf32, #tpu.memory_space<smem>>
    %193 = vector.broadcast %192 : f32 to vector<12x12xf32>
    %194 = arith.mulf %193, %191 : vector<12x12xf32>
    %195 = arith.addf %182, %194 : vector<12x12xf32>
    %c91 = arith.constant 91 : index
    %196 = memref.load %arg3[%c91] : memref<225xf32, #tpu.memory_space<smem>>
    %197 = vector.broadcast %196 : f32 to vector<12x12xf32>
    %198 = arith.mulf %197, %191 : vector<12x12xf32>
    %199 = arith.addf %186, %198 : vector<12x12xf32>
    %c166 = arith.constant 166 : index
    %200 = memref.load %arg3[%c166] : memref<225xf32, #tpu.memory_space<smem>>
    %201 = vector.broadcast %200 : f32 to vector<12x12xf32>
    %202 = arith.mulf %201, %191 : vector<12x12xf32>
    %203 = arith.addf %190, %202 : vector<12x12xf32>
    %204 = vector.extract_strided_slice %151 {offsets = [8, 0], sizes = [12, 12], strides = [1, 1]} : vector<20x12xf32> to vector<12x12xf32>
    %c21 = arith.constant 21 : index
    %205 = memref.load %arg3[%c21] : memref<225xf32, #tpu.memory_space<smem>>
    %206 = vector.broadcast %205 : f32 to vector<12x12xf32>
    %207 = arith.mulf %206, %204 : vector<12x12xf32>
    %208 = arith.addf %195, %207 : vector<12x12xf32>
    %c96 = arith.constant 96 : index
    %209 = memref.load %arg3[%c96] : memref<225xf32, #tpu.memory_space<smem>>
    %210 = vector.broadcast %209 : f32 to vector<12x12xf32>
    %211 = arith.mulf %210, %204 : vector<12x12xf32>
    %212 = arith.addf %199, %211 : vector<12x12xf32>
    %c171 = arith.constant 171 : index
    %213 = memref.load %arg3[%c171] : memref<225xf32, #tpu.memory_space<smem>>
    %214 = vector.broadcast %213 : f32 to vector<12x12xf32>
    %215 = arith.mulf %214, %204 : vector<12x12xf32>
    %216 = arith.addf %203, %215 : vector<12x12xf32>
    %c0_55 = arith.constant 0 : index
    %c0_56 = arith.constant 0 : index
    %c4_57 = arith.constant 4 : index
    %217 = vector.load %arg7[%c0_55, %c0_56, %c4_57] : memref<3x20x20xf32, #tpu.memory_space<vmem>>, vector<1x20x12xf32>
    %218 = vector.shape_cast %217 : vector<1x20x12xf32> to vector<20x12xf32>
    %219 = vector.extract_strided_slice %218 {offsets = [0, 0], sizes = [12, 12], strides = [1, 1]} : vector<20x12xf32> to vector<12x12xf32>
    %c2_58 = arith.constant 2 : index
    %220 = memref.load %arg3[%c2_58] : memref<225xf32, #tpu.memory_space<smem>>
    %221 = vector.broadcast %220 : f32 to vector<12x12xf32>
    %222 = arith.mulf %221, %219 : vector<12x12xf32>
    %223 = arith.addf %208, %222 : vector<12x12xf32>
    %c77 = arith.constant 77 : index
    %224 = memref.load %arg3[%c77] : memref<225xf32, #tpu.memory_space<smem>>
    %225 = vector.broadcast %224 : f32 to vector<12x12xf32>
    %226 = arith.mulf %225, %219 : vector<12x12xf32>
    %227 = arith.addf %212, %226 : vector<12x12xf32>
    %c152 = arith.constant 152 : index
    %228 = memref.load %arg3[%c152] : memref<225xf32, #tpu.memory_space<smem>>
    %229 = vector.broadcast %228 : f32 to vector<12x12xf32>
    %230 = arith.mulf %229, %219 : vector<12x12xf32>
    %231 = arith.addf %216, %230 : vector<12x12xf32>
    %232 = vector.extract_strided_slice %218 {offsets = [2, 0], sizes = [12, 12], strides = [1, 1]} : vector<20x12xf32> to vector<12x12xf32>
    %c7_59 = arith.constant 7 : index
    %233 = memref.load %arg3[%c7_59] : memref<225xf32, #tpu.memory_space<smem>>
    %234 = vector.broadcast %233 : f32 to vector<12x12xf32>
    %235 = arith.mulf %234, %232 : vector<12x12xf32>
    %236 = arith.addf %223, %235 : vector<12x12xf32>
    %c82 = arith.constant 82 : index
    %237 = memref.load %arg3[%c82] : memref<225xf32, #tpu.memory_space<smem>>
    %238 = vector.broadcast %237 : f32 to vector<12x12xf32>
    %239 = arith.mulf %238, %232 : vector<12x12xf32>
    %240 = arith.addf %227, %239 : vector<12x12xf32>
    %c157 = arith.constant 157 : index
    %241 = memref.load %arg3[%c157] : memref<225xf32, #tpu.memory_space<smem>>
    %242 = vector.broadcast %241 : f32 to vector<12x12xf32>
    %243 = arith.mulf %242, %232 : vector<12x12xf32>
    %244 = arith.addf %231, %243 : vector<12x12xf32>
    %245 = vector.extract_strided_slice %218 {offsets = [4, 0], sizes = [12, 12], strides = [1, 1]} : vector<20x12xf32> to vector<12x12xf32>
    %c12 = arith.constant 12 : index
    %246 = memref.load %arg3[%c12] : memref<225xf32, #tpu.memory_space<smem>>
    %247 = vector.broadcast %246 : f32 to vector<12x12xf32>
    %248 = arith.mulf %247, %245 : vector<12x12xf32>
    %249 = arith.addf %236, %248 : vector<12x12xf32>
    %c87 = arith.constant 87 : index
    %250 = memref.load %arg3[%c87] : memref<225xf32, #tpu.memory_space<smem>>
    %251 = vector.broadcast %250 : f32 to vector<12x12xf32>
    %252 = arith.mulf %251, %245 : vector<12x12xf32>
    %253 = arith.addf %240, %252 : vector<12x12xf32>
    %c162 = arith.constant 162 : index
    %254 = memref.load %arg3[%c162] : memref<225xf32, #tpu.memory_space<smem>>
    %255 = vector.broadcast %254 : f32 to vector<12x12xf32>
    %256 = arith.mulf %255, %245 : vector<12x12xf32>
    %257 = arith.addf %244, %256 : vector<12x12xf32>
    %258 = vector.extract_strided_slice %218 {offsets = [6, 0], sizes = [12, 12], strides = [1, 1]} : vector<20x12xf32> to vector<12x12xf32>
    %c17 = arith.constant 17 : index
    %259 = memref.load %arg3[%c17] : memref<225xf32, #tpu.memory_space<smem>>
    %260 = vector.broadcast %259 : f32 to vector<12x12xf32>
    %261 = arith.mulf %260, %258 : vector<12x12xf32>
    %262 = arith.addf %249, %261 : vector<12x12xf32>
    %c92 = arith.constant 92 : index
    %263 = memref.load %arg3[%c92] : memref<225xf32, #tpu.memory_space<smem>>
    %264 = vector.broadcast %263 : f32 to vector<12x12xf32>
    %265 = arith.mulf %264, %258 : vector<12x12xf32>
    %266 = arith.addf %253, %265 : vector<12x12xf32>
    %c167 = arith.constant 167 : index
    %267 = memref.load %arg3[%c167] : memref<225xf32, #tpu.memory_space<smem>>
    %268 = vector.broadcast %267 : f32 to vector<12x12xf32>
    %269 = arith.mulf %268, %258 : vector<12x12xf32>
    %270 = arith.addf %257, %269 : vector<12x12xf32>
    %271 = vector.extract_strided_slice %218 {offsets = [8, 0], sizes = [12, 12], strides = [1, 1]} : vector<20x12xf32> to vector<12x12xf32>
    %c22 = arith.constant 22 : index
    %272 = memref.load %arg3[%c22] : memref<225xf32, #tpu.memory_space<smem>>
    %273 = vector.broadcast %272 : f32 to vector<12x12xf32>
    %274 = arith.mulf %273, %271 : vector<12x12xf32>
    %275 = arith.addf %262, %274 : vector<12x12xf32>
    %c97 = arith.constant 97 : index
    %276 = memref.load %arg3[%c97] : memref<225xf32, #tpu.memory_space<smem>>
    %277 = vector.broadcast %276 : f32 to vector<12x12xf32>
    %278 = arith.mulf %277, %271 : vector<12x12xf32>
    %279 = arith.addf %266, %278 : vector<12x12xf32>
    %c172 = arith.constant 172 : index
    %280 = memref.load %arg3[%c172] : memref<225xf32, #tpu.memory_space<smem>>
    %281 = vector.broadcast %280 : f32 to vector<12x12xf32>
    %282 = arith.mulf %281, %271 : vector<12x12xf32>
    %283 = arith.addf %270, %282 : vector<12x12xf32>
    %c0_60 = arith.constant 0 : index
    %c0_61 = arith.constant 0 : index
    %c6_62 = arith.constant 6 : index
    %284 = vector.load %arg7[%c0_60, %c0_61, %c6_62] : memref<3x20x20xf32, #tpu.memory_space<vmem>>, vector<1x20x12xf32>
    %285 = vector.shape_cast %284 : vector<1x20x12xf32> to vector<20x12xf32>
    %286 = vector.extract_strided_slice %285 {offsets = [0, 0], sizes = [12, 12], strides = [1, 1]} : vector<20x12xf32> to vector<12x12xf32>
    %c3_63 = arith.constant 3 : index
    %287 = memref.load %arg3[%c3_63] : memref<225xf32, #tpu.memory_space<smem>>
    %288 = vector.broadcast %287 : f32 to vector<12x12xf32>
    %289 = arith.mulf %288, %286 : vector<12x12xf32>
    %290 = arith.addf %275, %289 : vector<12x12xf32>
    %c78 = arith.constant 78 : index
    %291 = memref.load %arg3[%c78] : memref<225xf32, #tpu.memory_space<smem>>
    %292 = vector.broadcast %291 : f32 to vector<12x12xf32>
    %293 = arith.mulf %292, %286 : vector<12x12xf32>
    %294 = arith.addf %279, %293 : vector<12x12xf32>
    %c153 = arith.constant 153 : index
    %295 = memref.load %arg3[%c153] : memref<225xf32, #tpu.memory_space<smem>>
    %296 = vector.broadcast %295 : f32 to vector<12x12xf32>
    %297 = arith.mulf %296, %286 : vector<12x12xf32>
    %298 = arith.addf %283, %297 : vector<12x12xf32>
    %299 = vector.extract_strided_slice %285 {offsets = [2, 0], sizes = [12, 12], strides = [1, 1]} : vector<20x12xf32> to vector<12x12xf32>
    %c8_64 = arith.constant 8 : index
    %300 = memref.load %arg3[%c8_64] : memref<225xf32, #tpu.memory_space<smem>>
    %301 = vector.broadcast %300 : f32 to vector<12x12xf32>
    %302 = arith.mulf %301, %299 : vector<12x12xf32>
    %303 = arith.addf %290, %302 : vector<12x12xf32>
    %c83 = arith.constant 83 : index
    %304 = memref.load %arg3[%c83] : memref<225xf32, #tpu.memory_space<smem>>
    %305 = vector.broadcast %304 : f32 to vector<12x12xf32>
    %306 = arith.mulf %305, %299 : vector<12x12xf32>
    %307 = arith.addf %294, %306 : vector<12x12xf32>
    %c158 = arith.constant 158 : index
    %308 = memref.load %arg3[%c158] : memref<225xf32, #tpu.memory_space<smem>>
    %309 = vector.broadcast %308 : f32 to vector<12x12xf32>
    %310 = arith.mulf %309, %299 : vector<12x12xf32>
    %311 = arith.addf %298, %310 : vector<12x12xf32>
    %312 = vector.extract_strided_slice %285 {offsets = [4, 0], sizes = [12, 12], strides = [1, 1]} : vector<20x12xf32> to vector<12x12xf32>
    %c13 = arith.constant 13 : index
    %313 = memref.load %arg3[%c13] : memref<225xf32, #tpu.memory_space<smem>>
    %314 = vector.broadcast %313 : f32 to vector<12x12xf32>
    %315 = arith.mulf %314, %312 : vector<12x12xf32>
    %316 = arith.addf %303, %315 : vector<12x12xf32>
    %c88 = arith.constant 88 : index
    %317 = memref.load %arg3[%c88] : memref<225xf32, #tpu.memory_space<smem>>
    %318 = vector.broadcast %317 : f32 to vector<12x12xf32>
    %319 = arith.mulf %318, %312 : vector<12x12xf32>
    %320 = arith.addf %307, %319 : vector<12x12xf32>
    %c163 = arith.constant 163 : index
    %321 = memref.load %arg3[%c163] : memref<225xf32, #tpu.memory_space<smem>>
    %322 = vector.broadcast %321 : f32 to vector<12x12xf32>
    %323 = arith.mulf %322, %312 : vector<12x12xf32>
    %324 = arith.addf %311, %323 : vector<12x12xf32>
    %325 = vector.extract_strided_slice %285 {offsets = [6, 0], sizes = [12, 12], strides = [1, 1]} : vector<20x12xf32> to vector<12x12xf32>
    %c18 = arith.constant 18 : index
    %326 = memref.load %arg3[%c18] : memref<225xf32, #tpu.memory_space<smem>>
    %327 = vector.broadcast %326 : f32 to vector<12x12xf32>
    %328 = arith.mulf %327, %325 : vector<12x12xf32>
    %329 = arith.addf %316, %328 : vector<12x12xf32>
    %c93 = arith.constant 93 : index
    %330 = memref.load %arg3[%c93] : memref<225xf32, #tpu.memory_space<smem>>
    %331 = vector.broadcast %330 : f32 to vector<12x12xf32>
    %332 = arith.mulf %331, %325 : vector<12x12xf32>
    %333 = arith.addf %320, %332 : vector<12x12xf32>
    %c168 = arith.constant 168 : index
    %334 = memref.load %arg3[%c168] : memref<225xf32, #tpu.memory_space<smem>>
    %335 = vector.broadcast %334 : f32 to vector<12x12xf32>
    %336 = arith.mulf %335, %325 : vector<12x12xf32>
    %337 = arith.addf %324, %336 : vector<12x12xf32>
    %338 = vector.extract_strided_slice %285 {offsets = [8, 0], sizes = [12, 12], strides = [1, 1]} : vector<20x12xf32> to vector<12x12xf32>
    %c23 = arith.constant 23 : index
    %339 = memref.load %arg3[%c23] : memref<225xf32, #tpu.memory_space<smem>>
    %340 = vector.broadcast %339 : f32 to vector<12x12xf32>
    %341 = arith.mulf %340, %338 : vector<12x12xf32>
    %342 = arith.addf %329, %341 : vector<12x12xf32>
    %c98 = arith.constant 98 : index
    %343 = memref.load %arg3[%c98] : memref<225xf32, #tpu.memory_space<smem>>
    %344 = vector.broadcast %343 : f32 to vector<12x12xf32>
    %345 = arith.mulf %344, %338 : vector<12x12xf32>
    %346 = arith.addf %333, %345 : vector<12x12xf32>
    %c173 = arith.constant 173 : index
    %347 = memref.load %arg3[%c173] : memref<225xf32, #tpu.memory_space<smem>>
    %348 = vector.broadcast %347 : f32 to vector<12x12xf32>
    %349 = arith.mulf %348, %338 : vector<12x12xf32>
    %350 = arith.addf %337, %349 : vector<12x12xf32>
    %c0_65 = arith.constant 0 : index
    %c0_66 = arith.constant 0 : index
    %c8_67 = arith.constant 8 : index
    %351 = vector.load %arg7[%c0_65, %c0_66, %c8_67] : memref<3x20x20xf32, #tpu.memory_space<vmem>>, vector<1x20x12xf32>
    %352 = vector.shape_cast %351 : vector<1x20x12xf32> to vector<20x12xf32>
    %353 = vector.extract_strided_slice %352 {offsets = [0, 0], sizes = [12, 12], strides = [1, 1]} : vector<20x12xf32> to vector<12x12xf32>
    %c4_68 = arith.constant 4 : index
    %354 = memref.load %arg3[%c4_68] : memref<225xf32, #tpu.memory_space<smem>>
    %355 = vector.broadcast %354 : f32 to vector<12x12xf32>
    %356 = arith.mulf %355, %353 : vector<12x12xf32>
    %357 = arith.addf %342, %356 : vector<12x12xf32>
    %c79 = arith.constant 79 : index
    %358 = memref.load %arg3[%c79] : memref<225xf32, #tpu.memory_space<smem>>
    %359 = vector.broadcast %358 : f32 to vector<12x12xf32>
    %360 = arith.mulf %359, %353 : vector<12x12xf32>
    %361 = arith.addf %346, %360 : vector<12x12xf32>
    %c154 = arith.constant 154 : index
    %362 = memref.load %arg3[%c154] : memref<225xf32, #tpu.memory_space<smem>>
    %363 = vector.broadcast %362 : f32 to vector<12x12xf32>
    %364 = arith.mulf %363, %353 : vector<12x12xf32>
    %365 = arith.addf %350, %364 : vector<12x12xf32>
    %366 = vector.extract_strided_slice %352 {offsets = [2, 0], sizes = [12, 12], strides = [1, 1]} : vector<20x12xf32> to vector<12x12xf32>
    %c9 = arith.constant 9 : index
    %367 = memref.load %arg3[%c9] : memref<225xf32, #tpu.memory_space<smem>>
    %368 = vector.broadcast %367 : f32 to vector<12x12xf32>
    %369 = arith.mulf %368, %366 : vector<12x12xf32>
    %370 = arith.addf %357, %369 : vector<12x12xf32>
    %c84 = arith.constant 84 : index
    %371 = memref.load %arg3[%c84] : memref<225xf32, #tpu.memory_space<smem>>
    %372 = vector.broadcast %371 : f32 to vector<12x12xf32>
    %373 = arith.mulf %372, %366 : vector<12x12xf32>
    %374 = arith.addf %361, %373 : vector<12x12xf32>
    %c159 = arith.constant 159 : index
    %375 = memref.load %arg3[%c159] : memref<225xf32, #tpu.memory_space<smem>>
    %376 = vector.broadcast %375 : f32 to vector<12x12xf32>
    %377 = arith.mulf %376, %366 : vector<12x12xf32>
    %378 = arith.addf %365, %377 : vector<12x12xf32>
    %379 = vector.extract_strided_slice %352 {offsets = [4, 0], sizes = [12, 12], strides = [1, 1]} : vector<20x12xf32> to vector<12x12xf32>
    %c14 = arith.constant 14 : index
    %380 = memref.load %arg3[%c14] : memref<225xf32, #tpu.memory_space<smem>>
    %381 = vector.broadcast %380 : f32 to vector<12x12xf32>
    %382 = arith.mulf %381, %379 : vector<12x12xf32>
    %383 = arith.addf %370, %382 : vector<12x12xf32>
    %c89 = arith.constant 89 : index
    %384 = memref.load %arg3[%c89] : memref<225xf32, #tpu.memory_space<smem>>
    %385 = vector.broadcast %384 : f32 to vector<12x12xf32>
    %386 = arith.mulf %385, %379 : vector<12x12xf32>
    %387 = arith.addf %374, %386 : vector<12x12xf32>
    %c164 = arith.constant 164 : index
    %388 = memref.load %arg3[%c164] : memref<225xf32, #tpu.memory_space<smem>>
    %389 = vector.broadcast %388 : f32 to vector<12x12xf32>
    %390 = arith.mulf %389, %379 : vector<12x12xf32>
    %391 = arith.addf %378, %390 : vector<12x12xf32>
    %392 = vector.extract_strided_slice %352 {offsets = [6, 0], sizes = [12, 12], strides = [1, 1]} : vector<20x12xf32> to vector<12x12xf32>
    %c19 = arith.constant 19 : index
    %393 = memref.load %arg3[%c19] : memref<225xf32, #tpu.memory_space<smem>>
    %394 = vector.broadcast %393 : f32 to vector<12x12xf32>
    %395 = arith.mulf %394, %392 : vector<12x12xf32>
    %396 = arith.addf %383, %395 : vector<12x12xf32>
    %c94 = arith.constant 94 : index
    %397 = memref.load %arg3[%c94] : memref<225xf32, #tpu.memory_space<smem>>
    %398 = vector.broadcast %397 : f32 to vector<12x12xf32>
    %399 = arith.mulf %398, %392 : vector<12x12xf32>
    %400 = arith.addf %387, %399 : vector<12x12xf32>
    %c169 = arith.constant 169 : index
    %401 = memref.load %arg3[%c169] : memref<225xf32, #tpu.memory_space<smem>>
    %402 = vector.broadcast %401 : f32 to vector<12x12xf32>
    %403 = arith.mulf %402, %392 : vector<12x12xf32>
    %404 = arith.addf %391, %403 : vector<12x12xf32>
    %405 = vector.extract_strided_slice %352 {offsets = [8, 0], sizes = [12, 12], strides = [1, 1]} : vector<20x12xf32> to vector<12x12xf32>
    %c24 = arith.constant 24 : index
    %406 = memref.load %arg3[%c24] : memref<225xf32, #tpu.memory_space<smem>>
    %407 = vector.broadcast %406 : f32 to vector<12x12xf32>
    %408 = arith.mulf %407, %405 : vector<12x12xf32>
    %409 = arith.addf %396, %408 : vector<12x12xf32>
    %c99 = arith.constant 99 : index
    %410 = memref.load %arg3[%c99] : memref<225xf32, #tpu.memory_space<smem>>
    %411 = vector.broadcast %410 : f32 to vector<12x12xf32>
    %412 = arith.mulf %411, %405 : vector<12x12xf32>
    %413 = arith.addf %400, %412 : vector<12x12xf32>
    %c174 = arith.constant 174 : index
    %414 = memref.load %arg3[%c174] : memref<225xf32, #tpu.memory_space<smem>>
    %415 = vector.broadcast %414 : f32 to vector<12x12xf32>
    %416 = arith.mulf %415, %405 : vector<12x12xf32>
    %417 = arith.addf %404, %416 : vector<12x12xf32>
    %c1_69 = arith.constant 1 : index
    %c0_70 = arith.constant 0 : index
    %c0_71 = arith.constant 0 : index
    %418 = vector.load %arg7[%c1_69, %c0_70, %c0_71] : memref<3x20x20xf32, #tpu.memory_space<vmem>>, vector<1x20x12xf32>
    %419 = vector.shape_cast %418 : vector<1x20x12xf32> to vector<20x12xf32>
    %420 = vector.extract_strided_slice %419 {offsets = [0, 0], sizes = [12, 12], strides = [1, 1]} : vector<20x12xf32> to vector<12x12xf32>
    %c25 = arith.constant 25 : index
    %421 = memref.load %arg3[%c25] : memref<225xf32, #tpu.memory_space<smem>>
    %422 = vector.broadcast %421 : f32 to vector<12x12xf32>
    %423 = arith.mulf %422, %420 : vector<12x12xf32>
    %424 = arith.addf %409, %423 : vector<12x12xf32>
    %c100 = arith.constant 100 : index
    %425 = memref.load %arg3[%c100] : memref<225xf32, #tpu.memory_space<smem>>
    %426 = vector.broadcast %425 : f32 to vector<12x12xf32>
    %427 = arith.mulf %426, %420 : vector<12x12xf32>
    %428 = arith.addf %413, %427 : vector<12x12xf32>
    %c175 = arith.constant 175 : index
    %429 = memref.load %arg3[%c175] : memref<225xf32, #tpu.memory_space<smem>>
    %430 = vector.broadcast %429 : f32 to vector<12x12xf32>
    %431 = arith.mulf %430, %420 : vector<12x12xf32>
    %432 = arith.addf %417, %431 : vector<12x12xf32>
    %433 = vector.extract_strided_slice %419 {offsets = [2, 0], sizes = [12, 12], strides = [1, 1]} : vector<20x12xf32> to vector<12x12xf32>
    %c30 = arith.constant 30 : index
    %434 = memref.load %arg3[%c30] : memref<225xf32, #tpu.memory_space<smem>>
    %435 = vector.broadcast %434 : f32 to vector<12x12xf32>
    %436 = arith.mulf %435, %433 : vector<12x12xf32>
    %437 = arith.addf %424, %436 : vector<12x12xf32>
    %c105 = arith.constant 105 : index
    %438 = memref.load %arg3[%c105] : memref<225xf32, #tpu.memory_space<smem>>
    %439 = vector.broadcast %438 : f32 to vector<12x12xf32>
    %440 = arith.mulf %439, %433 : vector<12x12xf32>
    %441 = arith.addf %428, %440 : vector<12x12xf32>
    %c180 = arith.constant 180 : index
    %442 = memref.load %arg3[%c180] : memref<225xf32, #tpu.memory_space<smem>>
    %443 = vector.broadcast %442 : f32 to vector<12x12xf32>
    %444 = arith.mulf %443, %433 : vector<12x12xf32>
    %445 = arith.addf %432, %444 : vector<12x12xf32>
    %446 = vector.extract_strided_slice %419 {offsets = [4, 0], sizes = [12, 12], strides = [1, 1]} : vector<20x12xf32> to vector<12x12xf32>
    %c35 = arith.constant 35 : index
    %447 = memref.load %arg3[%c35] : memref<225xf32, #tpu.memory_space<smem>>
    %448 = vector.broadcast %447 : f32 to vector<12x12xf32>
    %449 = arith.mulf %448, %446 : vector<12x12xf32>
    %450 = arith.addf %437, %449 : vector<12x12xf32>
    %c110 = arith.constant 110 : index
    %451 = memref.load %arg3[%c110] : memref<225xf32, #tpu.memory_space<smem>>
    %452 = vector.broadcast %451 : f32 to vector<12x12xf32>
    %453 = arith.mulf %452, %446 : vector<12x12xf32>
    %454 = arith.addf %441, %453 : vector<12x12xf32>
    %c185 = arith.constant 185 : index
    %455 = memref.load %arg3[%c185] : memref<225xf32, #tpu.memory_space<smem>>
    %456 = vector.broadcast %455 : f32 to vector<12x12xf32>
    %457 = arith.mulf %456, %446 : vector<12x12xf32>
    %458 = arith.addf %445, %457 : vector<12x12xf32>
    %459 = vector.extract_strided_slice %419 {offsets = [6, 0], sizes = [12, 12], strides = [1, 1]} : vector<20x12xf32> to vector<12x12xf32>
    %c40 = arith.constant 40 : index
    %460 = memref.load %arg3[%c40] : memref<225xf32, #tpu.memory_space<smem>>
    %461 = vector.broadcast %460 : f32 to vector<12x12xf32>
    %462 = arith.mulf %461, %459 : vector<12x12xf32>
    %463 = arith.addf %450, %462 : vector<12x12xf32>
    %c115 = arith.constant 115 : index
    %464 = memref.load %arg3[%c115] : memref<225xf32, #tpu.memory_space<smem>>
    %465 = vector.broadcast %464 : f32 to vector<12x12xf32>
    %466 = arith.mulf %465, %459 : vector<12x12xf32>
    %467 = arith.addf %454, %466 : vector<12x12xf32>
    %c190 = arith.constant 190 : index
    %468 = memref.load %arg3[%c190] : memref<225xf32, #tpu.memory_space<smem>>
    %469 = vector.broadcast %468 : f32 to vector<12x12xf32>
    %470 = arith.mulf %469, %459 : vector<12x12xf32>
    %471 = arith.addf %458, %470 : vector<12x12xf32>
    %472 = vector.extract_strided_slice %419 {offsets = [8, 0], sizes = [12, 12], strides = [1, 1]} : vector<20x12xf32> to vector<12x12xf32>
    %c45 = arith.constant 45 : index
    %473 = memref.load %arg3[%c45] : memref<225xf32, #tpu.memory_space<smem>>
    %474 = vector.broadcast %473 : f32 to vector<12x12xf32>
    %475 = arith.mulf %474, %472 : vector<12x12xf32>
    %476 = arith.addf %463, %475 : vector<12x12xf32>
    %c120 = arith.constant 120 : index
    %477 = memref.load %arg3[%c120] : memref<225xf32, #tpu.memory_space<smem>>
    %478 = vector.broadcast %477 : f32 to vector<12x12xf32>
    %479 = arith.mulf %478, %472 : vector<12x12xf32>
    %480 = arith.addf %467, %479 : vector<12x12xf32>
    %c195 = arith.constant 195 : index
    %481 = memref.load %arg3[%c195] : memref<225xf32, #tpu.memory_space<smem>>
    %482 = vector.broadcast %481 : f32 to vector<12x12xf32>
    %483 = arith.mulf %482, %472 : vector<12x12xf32>
    %484 = arith.addf %471, %483 : vector<12x12xf32>
    %c1_72 = arith.constant 1 : index
    %c0_73 = arith.constant 0 : index
    %c2_74 = arith.constant 2 : index
    %485 = vector.load %arg7[%c1_72, %c0_73, %c2_74] : memref<3x20x20xf32, #tpu.memory_space<vmem>>, vector<1x20x12xf32>
    %486 = vector.shape_cast %485 : vector<1x20x12xf32> to vector<20x12xf32>
    %487 = vector.extract_strided_slice %486 {offsets = [0, 0], sizes = [12, 12], strides = [1, 1]} : vector<20x12xf32> to vector<12x12xf32>
    %c26 = arith.constant 26 : index
    %488 = memref.load %arg3[%c26] : memref<225xf32, #tpu.memory_space<smem>>
    %489 = vector.broadcast %488 : f32 to vector<12x12xf32>
    %490 = arith.mulf %489, %487 : vector<12x12xf32>
    %491 = arith.addf %476, %490 : vector<12x12xf32>
    %c101 = arith.constant 101 : index
    %492 = memref.load %arg3[%c101] : memref<225xf32, #tpu.memory_space<smem>>
    %493 = vector.broadcast %492 : f32 to vector<12x12xf32>
    %494 = arith.mulf %493, %487 : vector<12x12xf32>
    %495 = arith.addf %480, %494 : vector<12x12xf32>
    %c176 = arith.constant 176 : index
    %496 = memref.load %arg3[%c176] : memref<225xf32, #tpu.memory_space<smem>>
    %497 = vector.broadcast %496 : f32 to vector<12x12xf32>
    %498 = arith.mulf %497, %487 : vector<12x12xf32>
    %499 = arith.addf %484, %498 : vector<12x12xf32>
    %500 = vector.extract_strided_slice %486 {offsets = [2, 0], sizes = [12, 12], strides = [1, 1]} : vector<20x12xf32> to vector<12x12xf32>
    %c31 = arith.constant 31 : index
    %501 = memref.load %arg3[%c31] : memref<225xf32, #tpu.memory_space<smem>>
    %502 = vector.broadcast %501 : f32 to vector<12x12xf32>
    %503 = arith.mulf %502, %500 : vector<12x12xf32>
    %504 = arith.addf %491, %503 : vector<12x12xf32>
    %c106 = arith.constant 106 : index
    %505 = memref.load %arg3[%c106] : memref<225xf32, #tpu.memory_space<smem>>
    %506 = vector.broadcast %505 : f32 to vector<12x12xf32>
    %507 = arith.mulf %506, %500 : vector<12x12xf32>
    %508 = arith.addf %495, %507 : vector<12x12xf32>
    %c181 = arith.constant 181 : index
    %509 = memref.load %arg3[%c181] : memref<225xf32, #tpu.memory_space<smem>>
    %510 = vector.broadcast %509 : f32 to vector<12x12xf32>
    %511 = arith.mulf %510, %500 : vector<12x12xf32>
    %512 = arith.addf %499, %511 : vector<12x12xf32>
    %513 = vector.extract_strided_slice %486 {offsets = [4, 0], sizes = [12, 12], strides = [1, 1]} : vector<20x12xf32> to vector<12x12xf32>
    %c36 = arith.constant 36 : index
    %514 = memref.load %arg3[%c36] : memref<225xf32, #tpu.memory_space<smem>>
    %515 = vector.broadcast %514 : f32 to vector<12x12xf32>
    %516 = arith.mulf %515, %513 : vector<12x12xf32>
    %517 = arith.addf %504, %516 : vector<12x12xf32>
    %c111 = arith.constant 111 : index
    %518 = memref.load %arg3[%c111] : memref<225xf32, #tpu.memory_space<smem>>
    %519 = vector.broadcast %518 : f32 to vector<12x12xf32>
    %520 = arith.mulf %519, %513 : vector<12x12xf32>
    %521 = arith.addf %508, %520 : vector<12x12xf32>
    %c186 = arith.constant 186 : index
    %522 = memref.load %arg3[%c186] : memref<225xf32, #tpu.memory_space<smem>>
    %523 = vector.broadcast %522 : f32 to vector<12x12xf32>
    %524 = arith.mulf %523, %513 : vector<12x12xf32>
    %525 = arith.addf %512, %524 : vector<12x12xf32>
    %526 = vector.extract_strided_slice %486 {offsets = [6, 0], sizes = [12, 12], strides = [1, 1]} : vector<20x12xf32> to vector<12x12xf32>
    %c41 = arith.constant 41 : index
    %527 = memref.load %arg3[%c41] : memref<225xf32, #tpu.memory_space<smem>>
    %528 = vector.broadcast %527 : f32 to vector<12x12xf32>
    %529 = arith.mulf %528, %526 : vector<12x12xf32>
    %530 = arith.addf %517, %529 : vector<12x12xf32>
    %c116 = arith.constant 116 : index
    %531 = memref.load %arg3[%c116] : memref<225xf32, #tpu.memory_space<smem>>
    %532 = vector.broadcast %531 : f32 to vector<12x12xf32>
    %533 = arith.mulf %532, %526 : vector<12x12xf32>
    %534 = arith.addf %521, %533 : vector<12x12xf32>
    %c191 = arith.constant 191 : index
    %535 = memref.load %arg3[%c191] : memref<225xf32, #tpu.memory_space<smem>>
    %536 = vector.broadcast %535 : f32 to vector<12x12xf32>
    %537 = arith.mulf %536, %526 : vector<12x12xf32>
    %538 = arith.addf %525, %537 : vector<12x12xf32>
    %539 = vector.extract_strided_slice %486 {offsets = [8, 0], sizes = [12, 12], strides = [1, 1]} : vector<20x12xf32> to vector<12x12xf32>
    %c46 = arith.constant 46 : index
    %540 = memref.load %arg3[%c46] : memref<225xf32, #tpu.memory_space<smem>>
    %541 = vector.broadcast %540 : f32 to vector<12x12xf32>
    %542 = arith.mulf %541, %539 : vector<12x12xf32>
    %543 = arith.addf %530, %542 : vector<12x12xf32>
    %c121 = arith.constant 121 : index
    %544 = memref.load %arg3[%c121] : memref<225xf32, #tpu.memory_space<smem>>
    %545 = vector.broadcast %544 : f32 to vector<12x12xf32>
    %546 = arith.mulf %545, %539 : vector<12x12xf32>
    %547 = arith.addf %534, %546 : vector<12x12xf32>
    %c196 = arith.constant 196 : index
    %548 = memref.load %arg3[%c196] : memref<225xf32, #tpu.memory_space<smem>>
    %549 = vector.broadcast %548 : f32 to vector<12x12xf32>
    %550 = arith.mulf %549, %539 : vector<12x12xf32>
    %551 = arith.addf %538, %550 : vector<12x12xf32>
    %c1_75 = arith.constant 1 : index
    %c0_76 = arith.constant 0 : index
    %c4_77 = arith.constant 4 : index
    %552 = vector.load %arg7[%c1_75, %c0_76, %c4_77] : memref<3x20x20xf32, #tpu.memory_space<vmem>>, vector<1x20x12xf32>
    %553 = vector.shape_cast %552 : vector<1x20x12xf32> to vector<20x12xf32>
    %554 = vector.extract_strided_slice %553 {offsets = [0, 0], sizes = [12, 12], strides = [1, 1]} : vector<20x12xf32> to vector<12x12xf32>
    %c27 = arith.constant 27 : index
    %555 = memref.load %arg3[%c27] : memref<225xf32, #tpu.memory_space<smem>>
    %556 = vector.broadcast %555 : f32 to vector<12x12xf32>
    %557 = arith.mulf %556, %554 : vector<12x12xf32>
    %558 = arith.addf %543, %557 : vector<12x12xf32>
    %c102 = arith.constant 102 : index
    %559 = memref.load %arg3[%c102] : memref<225xf32, #tpu.memory_space<smem>>
    %560 = vector.broadcast %559 : f32 to vector<12x12xf32>
    %561 = arith.mulf %560, %554 : vector<12x12xf32>
    %562 = arith.addf %547, %561 : vector<12x12xf32>
    %c177 = arith.constant 177 : index
    %563 = memref.load %arg3[%c177] : memref<225xf32, #tpu.memory_space<smem>>
    %564 = vector.broadcast %563 : f32 to vector<12x12xf32>
    %565 = arith.mulf %564, %554 : vector<12x12xf32>
    %566 = arith.addf %551, %565 : vector<12x12xf32>
    %567 = vector.extract_strided_slice %553 {offsets = [2, 0], sizes = [12, 12], strides = [1, 1]} : vector<20x12xf32> to vector<12x12xf32>
    %c32 = arith.constant 32 : index
    %568 = memref.load %arg3[%c32] : memref<225xf32, #tpu.memory_space<smem>>
    %569 = vector.broadcast %568 : f32 to vector<12x12xf32>
    %570 = arith.mulf %569, %567 : vector<12x12xf32>
    %571 = arith.addf %558, %570 : vector<12x12xf32>
    %c107 = arith.constant 107 : index
    %572 = memref.load %arg3[%c107] : memref<225xf32, #tpu.memory_space<smem>>
    %573 = vector.broadcast %572 : f32 to vector<12x12xf32>
    %574 = arith.mulf %573, %567 : vector<12x12xf32>
    %575 = arith.addf %562, %574 : vector<12x12xf32>
    %c182 = arith.constant 182 : index
    %576 = memref.load %arg3[%c182] : memref<225xf32, #tpu.memory_space<smem>>
    %577 = vector.broadcast %576 : f32 to vector<12x12xf32>
    %578 = arith.mulf %577, %567 : vector<12x12xf32>
    %579 = arith.addf %566, %578 : vector<12x12xf32>
    %580 = vector.extract_strided_slice %553 {offsets = [4, 0], sizes = [12, 12], strides = [1, 1]} : vector<20x12xf32> to vector<12x12xf32>
    %c37 = arith.constant 37 : index
    %581 = memref.load %arg3[%c37] : memref<225xf32, #tpu.memory_space<smem>>
    %582 = vector.broadcast %581 : f32 to vector<12x12xf32>
    %583 = arith.mulf %582, %580 : vector<12x12xf32>
    %584 = arith.addf %571, %583 : vector<12x12xf32>
    %c112 = arith.constant 112 : index
    %585 = memref.load %arg3[%c112] : memref<225xf32, #tpu.memory_space<smem>>
    %586 = vector.broadcast %585 : f32 to vector<12x12xf32>
    %587 = arith.mulf %586, %580 : vector<12x12xf32>
    %588 = arith.addf %575, %587 : vector<12x12xf32>
    %c187 = arith.constant 187 : index
    %589 = memref.load %arg3[%c187] : memref<225xf32, #tpu.memory_space<smem>>
    %590 = vector.broadcast %589 : f32 to vector<12x12xf32>
    %591 = arith.mulf %590, %580 : vector<12x12xf32>
    %592 = arith.addf %579, %591 : vector<12x12xf32>
    %593 = vector.extract_strided_slice %553 {offsets = [6, 0], sizes = [12, 12], strides = [1, 1]} : vector<20x12xf32> to vector<12x12xf32>
    %c42 = arith.constant 42 : index
    %594 = memref.load %arg3[%c42] : memref<225xf32, #tpu.memory_space<smem>>
    %595 = vector.broadcast %594 : f32 to vector<12x12xf32>
    %596 = arith.mulf %595, %593 : vector<12x12xf32>
    %597 = arith.addf %584, %596 : vector<12x12xf32>
    %c117 = arith.constant 117 : index
    %598 = memref.load %arg3[%c117] : memref<225xf32, #tpu.memory_space<smem>>
    %599 = vector.broadcast %598 : f32 to vector<12x12xf32>
    %600 = arith.mulf %599, %593 : vector<12x12xf32>
    %601 = arith.addf %588, %600 : vector<12x12xf32>
    %c192 = arith.constant 192 : index
    %602 = memref.load %arg3[%c192] : memref<225xf32, #tpu.memory_space<smem>>
    %603 = vector.broadcast %602 : f32 to vector<12x12xf32>
    %604 = arith.mulf %603, %593 : vector<12x12xf32>
    %605 = arith.addf %592, %604 : vector<12x12xf32>
    %606 = vector.extract_strided_slice %553 {offsets = [8, 0], sizes = [12, 12], strides = [1, 1]} : vector<20x12xf32> to vector<12x12xf32>
    %c47 = arith.constant 47 : index
    %607 = memref.load %arg3[%c47] : memref<225xf32, #tpu.memory_space<smem>>
    %608 = vector.broadcast %607 : f32 to vector<12x12xf32>
    %609 = arith.mulf %608, %606 : vector<12x12xf32>
    %610 = arith.addf %597, %609 : vector<12x12xf32>
    %c122 = arith.constant 122 : index
    %611 = memref.load %arg3[%c122] : memref<225xf32, #tpu.memory_space<smem>>
    %612 = vector.broadcast %611 : f32 to vector<12x12xf32>
    %613 = arith.mulf %612, %606 : vector<12x12xf32>
    %614 = arith.addf %601, %613 : vector<12x12xf32>
    %c197 = arith.constant 197 : index
    %615 = memref.load %arg3[%c197] : memref<225xf32, #tpu.memory_space<smem>>
    %616 = vector.broadcast %615 : f32 to vector<12x12xf32>
    %617 = arith.mulf %616, %606 : vector<12x12xf32>
    %618 = arith.addf %605, %617 : vector<12x12xf32>
    %c1_78 = arith.constant 1 : index
    %c0_79 = arith.constant 0 : index
    %c6_80 = arith.constant 6 : index
    %619 = vector.load %arg7[%c1_78, %c0_79, %c6_80] : memref<3x20x20xf32, #tpu.memory_space<vmem>>, vector<1x20x12xf32>
    %620 = vector.shape_cast %619 : vector<1x20x12xf32> to vector<20x12xf32>
    %621 = vector.extract_strided_slice %620 {offsets = [0, 0], sizes = [12, 12], strides = [1, 1]} : vector<20x12xf32> to vector<12x12xf32>
    %c28 = arith.constant 28 : index
    %622 = memref.load %arg3[%c28] : memref<225xf32, #tpu.memory_space<smem>>
    %623 = vector.broadcast %622 : f32 to vector<12x12xf32>
    %624 = arith.mulf %623, %621 : vector<12x12xf32>
    %625 = arith.addf %610, %624 : vector<12x12xf32>
    %c103 = arith.constant 103 : index
    %626 = memref.load %arg3[%c103] : memref<225xf32, #tpu.memory_space<smem>>
    %627 = vector.broadcast %626 : f32 to vector<12x12xf32>
    %628 = arith.mulf %627, %621 : vector<12x12xf32>
    %629 = arith.addf %614, %628 : vector<12x12xf32>
    %c178 = arith.constant 178 : index
    %630 = memref.load %arg3[%c178] : memref<225xf32, #tpu.memory_space<smem>>
    %631 = vector.broadcast %630 : f32 to vector<12x12xf32>
    %632 = arith.mulf %631, %621 : vector<12x12xf32>
    %633 = arith.addf %618, %632 : vector<12x12xf32>
    %634 = vector.extract_strided_slice %620 {offsets = [2, 0], sizes = [12, 12], strides = [1, 1]} : vector<20x12xf32> to vector<12x12xf32>
    %c33 = arith.constant 33 : index
    %635 = memref.load %arg3[%c33] : memref<225xf32, #tpu.memory_space<smem>>
    %636 = vector.broadcast %635 : f32 to vector<12x12xf32>
    %637 = arith.mulf %636, %634 : vector<12x12xf32>
    %638 = arith.addf %625, %637 : vector<12x12xf32>
    %c108 = arith.constant 108 : index
    %639 = memref.load %arg3[%c108] : memref<225xf32, #tpu.memory_space<smem>>
    %640 = vector.broadcast %639 : f32 to vector<12x12xf32>
    %641 = arith.mulf %640, %634 : vector<12x12xf32>
    %642 = arith.addf %629, %641 : vector<12x12xf32>
    %c183 = arith.constant 183 : index
    %643 = memref.load %arg3[%c183] : memref<225xf32, #tpu.memory_space<smem>>
    %644 = vector.broadcast %643 : f32 to vector<12x12xf32>
    %645 = arith.mulf %644, %634 : vector<12x12xf32>
    %646 = arith.addf %633, %645 : vector<12x12xf32>
    %647 = vector.extract_strided_slice %620 {offsets = [4, 0], sizes = [12, 12], strides = [1, 1]} : vector<20x12xf32> to vector<12x12xf32>
    %c38 = arith.constant 38 : index
    %648 = memref.load %arg3[%c38] : memref<225xf32, #tpu.memory_space<smem>>
    %649 = vector.broadcast %648 : f32 to vector<12x12xf32>
    %650 = arith.mulf %649, %647 : vector<12x12xf32>
    %651 = arith.addf %638, %650 : vector<12x12xf32>
    %c113 = arith.constant 113 : index
    %652 = memref.load %arg3[%c113] : memref<225xf32, #tpu.memory_space<smem>>
    %653 = vector.broadcast %652 : f32 to vector<12x12xf32>
    %654 = arith.mulf %653, %647 : vector<12x12xf32>
    %655 = arith.addf %642, %654 : vector<12x12xf32>
    %c188 = arith.constant 188 : index
    %656 = memref.load %arg3[%c188] : memref<225xf32, #tpu.memory_space<smem>>
    %657 = vector.broadcast %656 : f32 to vector<12x12xf32>
    %658 = arith.mulf %657, %647 : vector<12x12xf32>
    %659 = arith.addf %646, %658 : vector<12x12xf32>
    %660 = vector.extract_strided_slice %620 {offsets = [6, 0], sizes = [12, 12], strides = [1, 1]} : vector<20x12xf32> to vector<12x12xf32>
    %c43 = arith.constant 43 : index
    %661 = memref.load %arg3[%c43] : memref<225xf32, #tpu.memory_space<smem>>
    %662 = vector.broadcast %661 : f32 to vector<12x12xf32>
    %663 = arith.mulf %662, %660 : vector<12x12xf32>
    %664 = arith.addf %651, %663 : vector<12x12xf32>
    %c118 = arith.constant 118 : index
    %665 = memref.load %arg3[%c118] : memref<225xf32, #tpu.memory_space<smem>>
    %666 = vector.broadcast %665 : f32 to vector<12x12xf32>
    %667 = arith.mulf %666, %660 : vector<12x12xf32>
    %668 = arith.addf %655, %667 : vector<12x12xf32>
    %c193 = arith.constant 193 : index
    %669 = memref.load %arg3[%c193] : memref<225xf32, #tpu.memory_space<smem>>
    %670 = vector.broadcast %669 : f32 to vector<12x12xf32>
    %671 = arith.mulf %670, %660 : vector<12x12xf32>
    %672 = arith.addf %659, %671 : vector<12x12xf32>
    %673 = vector.extract_strided_slice %620 {offsets = [8, 0], sizes = [12, 12], strides = [1, 1]} : vector<20x12xf32> to vector<12x12xf32>
    %c48 = arith.constant 48 : index
    %674 = memref.load %arg3[%c48] : memref<225xf32, #tpu.memory_space<smem>>
    %675 = vector.broadcast %674 : f32 to vector<12x12xf32>
    %676 = arith.mulf %675, %673 : vector<12x12xf32>
    %677 = arith.addf %664, %676 : vector<12x12xf32>
    %c123 = arith.constant 123 : index
    %678 = memref.load %arg3[%c123] : memref<225xf32, #tpu.memory_space<smem>>
    %679 = vector.broadcast %678 : f32 to vector<12x12xf32>
    %680 = arith.mulf %679, %673 : vector<12x12xf32>
    %681 = arith.addf %668, %680 : vector<12x12xf32>
    %c198 = arith.constant 198 : index
    %682 = memref.load %arg3[%c198] : memref<225xf32, #tpu.memory_space<smem>>
    %683 = vector.broadcast %682 : f32 to vector<12x12xf32>
    %684 = arith.mulf %683, %673 : vector<12x12xf32>
    %685 = arith.addf %672, %684 : vector<12x12xf32>
    %c1_81 = arith.constant 1 : index
    %c0_82 = arith.constant 0 : index
    %c8_83 = arith.constant 8 : index
    %686 = vector.load %arg7[%c1_81, %c0_82, %c8_83] : memref<3x20x20xf32, #tpu.memory_space<vmem>>, vector<1x20x12xf32>
    %687 = vector.shape_cast %686 : vector<1x20x12xf32> to vector<20x12xf32>
    %688 = vector.extract_strided_slice %687 {offsets = [0, 0], sizes = [12, 12], strides = [1, 1]} : vector<20x12xf32> to vector<12x12xf32>
    %c29 = arith.constant 29 : index
    %689 = memref.load %arg3[%c29] : memref<225xf32, #tpu.memory_space<smem>>
    %690 = vector.broadcast %689 : f32 to vector<12x12xf32>
    %691 = arith.mulf %690, %688 : vector<12x12xf32>
    %692 = arith.addf %677, %691 : vector<12x12xf32>
    %c104 = arith.constant 104 : index
    %693 = memref.load %arg3[%c104] : memref<225xf32, #tpu.memory_space<smem>>
    %694 = vector.broadcast %693 : f32 to vector<12x12xf32>
    %695 = arith.mulf %694, %688 : vector<12x12xf32>
    %696 = arith.addf %681, %695 : vector<12x12xf32>
    %c179 = arith.constant 179 : index
    %697 = memref.load %arg3[%c179] : memref<225xf32, #tpu.memory_space<smem>>
    %698 = vector.broadcast %697 : f32 to vector<12x12xf32>
    %699 = arith.mulf %698, %688 : vector<12x12xf32>
    %700 = arith.addf %685, %699 : vector<12x12xf32>
    %701 = vector.extract_strided_slice %687 {offsets = [2, 0], sizes = [12, 12], strides = [1, 1]} : vector<20x12xf32> to vector<12x12xf32>
    %c34 = arith.constant 34 : index
    %702 = memref.load %arg3[%c34] : memref<225xf32, #tpu.memory_space<smem>>
    %703 = vector.broadcast %702 : f32 to vector<12x12xf32>
    %704 = arith.mulf %703, %701 : vector<12x12xf32>
    %705 = arith.addf %692, %704 : vector<12x12xf32>
    %c109 = arith.constant 109 : index
    %706 = memref.load %arg3[%c109] : memref<225xf32, #tpu.memory_space<smem>>
    %707 = vector.broadcast %706 : f32 to vector<12x12xf32>
    %708 = arith.mulf %707, %701 : vector<12x12xf32>
    %709 = arith.addf %696, %708 : vector<12x12xf32>
    %c184 = arith.constant 184 : index
    %710 = memref.load %arg3[%c184] : memref<225xf32, #tpu.memory_space<smem>>
    %711 = vector.broadcast %710 : f32 to vector<12x12xf32>
    %712 = arith.mulf %711, %701 : vector<12x12xf32>
    %713 = arith.addf %700, %712 : vector<12x12xf32>
    %714 = vector.extract_strided_slice %687 {offsets = [4, 0], sizes = [12, 12], strides = [1, 1]} : vector<20x12xf32> to vector<12x12xf32>
    %c39 = arith.constant 39 : index
    %715 = memref.load %arg3[%c39] : memref<225xf32, #tpu.memory_space<smem>>
    %716 = vector.broadcast %715 : f32 to vector<12x12xf32>
    %717 = arith.mulf %716, %714 : vector<12x12xf32>
    %718 = arith.addf %705, %717 : vector<12x12xf32>
    %c114 = arith.constant 114 : index
    %719 = memref.load %arg3[%c114] : memref<225xf32, #tpu.memory_space<smem>>
    %720 = vector.broadcast %719 : f32 to vector<12x12xf32>
    %721 = arith.mulf %720, %714 : vector<12x12xf32>
    %722 = arith.addf %709, %721 : vector<12x12xf32>
    %c189 = arith.constant 189 : index
    %723 = memref.load %arg3[%c189] : memref<225xf32, #tpu.memory_space<smem>>
    %724 = vector.broadcast %723 : f32 to vector<12x12xf32>
    %725 = arith.mulf %724, %714 : vector<12x12xf32>
    %726 = arith.addf %713, %725 : vector<12x12xf32>
    %727 = vector.extract_strided_slice %687 {offsets = [6, 0], sizes = [12, 12], strides = [1, 1]} : vector<20x12xf32> to vector<12x12xf32>
    %c44 = arith.constant 44 : index
    %728 = memref.load %arg3[%c44] : memref<225xf32, #tpu.memory_space<smem>>
    %729 = vector.broadcast %728 : f32 to vector<12x12xf32>
    %730 = arith.mulf %729, %727 : vector<12x12xf32>
    %731 = arith.addf %718, %730 : vector<12x12xf32>
    %c119 = arith.constant 119 : index
    %732 = memref.load %arg3[%c119] : memref<225xf32, #tpu.memory_space<smem>>
    %733 = vector.broadcast %732 : f32 to vector<12x12xf32>
    %734 = arith.mulf %733, %727 : vector<12x12xf32>
    %735 = arith.addf %722, %734 : vector<12x12xf32>
    %c194 = arith.constant 194 : index
    %736 = memref.load %arg3[%c194] : memref<225xf32, #tpu.memory_space<smem>>
    %737 = vector.broadcast %736 : f32 to vector<12x12xf32>
    %738 = arith.mulf %737, %727 : vector<12x12xf32>
    %739 = arith.addf %726, %738 : vector<12x12xf32>
    %740 = vector.extract_strided_slice %687 {offsets = [8, 0], sizes = [12, 12], strides = [1, 1]} : vector<20x12xf32> to vector<12x12xf32>
    %c49 = arith.constant 49 : index
    %741 = memref.load %arg3[%c49] : memref<225xf32, #tpu.memory_space<smem>>
    %742 = vector.broadcast %741 : f32 to vector<12x12xf32>
    %743 = arith.mulf %742, %740 : vector<12x12xf32>
    %744 = arith.addf %731, %743 : vector<12x12xf32>
    %c124 = arith.constant 124 : index
    %745 = memref.load %arg3[%c124] : memref<225xf32, #tpu.memory_space<smem>>
    %746 = vector.broadcast %745 : f32 to vector<12x12xf32>
    %747 = arith.mulf %746, %740 : vector<12x12xf32>
    %748 = arith.addf %735, %747 : vector<12x12xf32>
    %c199 = arith.constant 199 : index
    %749 = memref.load %arg3[%c199] : memref<225xf32, #tpu.memory_space<smem>>
    %750 = vector.broadcast %749 : f32 to vector<12x12xf32>
    %751 = arith.mulf %750, %740 : vector<12x12xf32>
    %752 = arith.addf %739, %751 : vector<12x12xf32>
    %c2_84 = arith.constant 2 : index
    %c0_85 = arith.constant 0 : index
    %c0_86 = arith.constant 0 : index
    %753 = vector.load %arg7[%c2_84, %c0_85, %c0_86] : memref<3x20x20xf32, #tpu.memory_space<vmem>>, vector<1x20x12xf32>
    %754 = vector.shape_cast %753 : vector<1x20x12xf32> to vector<20x12xf32>
    %755 = vector.extract_strided_slice %754 {offsets = [0, 0], sizes = [12, 12], strides = [1, 1]} : vector<20x12xf32> to vector<12x12xf32>
    %c50 = arith.constant 50 : index
    %756 = memref.load %arg3[%c50] : memref<225xf32, #tpu.memory_space<smem>>
    %757 = vector.broadcast %756 : f32 to vector<12x12xf32>
    %758 = arith.mulf %757, %755 : vector<12x12xf32>
    %759 = arith.addf %744, %758 : vector<12x12xf32>
    %c125 = arith.constant 125 : index
    %760 = memref.load %arg3[%c125] : memref<225xf32, #tpu.memory_space<smem>>
    %761 = vector.broadcast %760 : f32 to vector<12x12xf32>
    %762 = arith.mulf %761, %755 : vector<12x12xf32>
    %763 = arith.addf %748, %762 : vector<12x12xf32>
    %c200 = arith.constant 200 : index
    %764 = memref.load %arg3[%c200] : memref<225xf32, #tpu.memory_space<smem>>
    %765 = vector.broadcast %764 : f32 to vector<12x12xf32>
    %766 = arith.mulf %765, %755 : vector<12x12xf32>
    %767 = arith.addf %752, %766 : vector<12x12xf32>
    %768 = vector.extract_strided_slice %754 {offsets = [2, 0], sizes = [12, 12], strides = [1, 1]} : vector<20x12xf32> to vector<12x12xf32>
    %c55 = arith.constant 55 : index
    %769 = memref.load %arg3[%c55] : memref<225xf32, #tpu.memory_space<smem>>
    %770 = vector.broadcast %769 : f32 to vector<12x12xf32>
    %771 = arith.mulf %770, %768 : vector<12x12xf32>
    %772 = arith.addf %759, %771 : vector<12x12xf32>
    %c130 = arith.constant 130 : index
    %773 = memref.load %arg3[%c130] : memref<225xf32, #tpu.memory_space<smem>>
    %774 = vector.broadcast %773 : f32 to vector<12x12xf32>
    %775 = arith.mulf %774, %768 : vector<12x12xf32>
    %776 = arith.addf %763, %775 : vector<12x12xf32>
    %c205 = arith.constant 205 : index
    %777 = memref.load %arg3[%c205] : memref<225xf32, #tpu.memory_space<smem>>
    %778 = vector.broadcast %777 : f32 to vector<12x12xf32>
    %779 = arith.mulf %778, %768 : vector<12x12xf32>
    %780 = arith.addf %767, %779 : vector<12x12xf32>
    %781 = vector.extract_strided_slice %754 {offsets = [4, 0], sizes = [12, 12], strides = [1, 1]} : vector<20x12xf32> to vector<12x12xf32>
    %c60 = arith.constant 60 : index
    %782 = memref.load %arg3[%c60] : memref<225xf32, #tpu.memory_space<smem>>
    %783 = vector.broadcast %782 : f32 to vector<12x12xf32>
    %784 = arith.mulf %783, %781 : vector<12x12xf32>
    %785 = arith.addf %772, %784 : vector<12x12xf32>
    %c135 = arith.constant 135 : index
    %786 = memref.load %arg3[%c135] : memref<225xf32, #tpu.memory_space<smem>>
    %787 = vector.broadcast %786 : f32 to vector<12x12xf32>
    %788 = arith.mulf %787, %781 : vector<12x12xf32>
    %789 = arith.addf %776, %788 : vector<12x12xf32>
    %c210 = arith.constant 210 : index
    %790 = memref.load %arg3[%c210] : memref<225xf32, #tpu.memory_space<smem>>
    %791 = vector.broadcast %790 : f32 to vector<12x12xf32>
    %792 = arith.mulf %791, %781 : vector<12x12xf32>
    %793 = arith.addf %780, %792 : vector<12x12xf32>
    %794 = vector.extract_strided_slice %754 {offsets = [6, 0], sizes = [12, 12], strides = [1, 1]} : vector<20x12xf32> to vector<12x12xf32>
    %c65 = arith.constant 65 : index
    %795 = memref.load %arg3[%c65] : memref<225xf32, #tpu.memory_space<smem>>
    %796 = vector.broadcast %795 : f32 to vector<12x12xf32>
    %797 = arith.mulf %796, %794 : vector<12x12xf32>
    %798 = arith.addf %785, %797 : vector<12x12xf32>
    %c140 = arith.constant 140 : index
    %799 = memref.load %arg3[%c140] : memref<225xf32, #tpu.memory_space<smem>>
    %800 = vector.broadcast %799 : f32 to vector<12x12xf32>
    %801 = arith.mulf %800, %794 : vector<12x12xf32>
    %802 = arith.addf %789, %801 : vector<12x12xf32>
    %c215 = arith.constant 215 : index
    %803 = memref.load %arg3[%c215] : memref<225xf32, #tpu.memory_space<smem>>
    %804 = vector.broadcast %803 : f32 to vector<12x12xf32>
    %805 = arith.mulf %804, %794 : vector<12x12xf32>
    %806 = arith.addf %793, %805 : vector<12x12xf32>
    %807 = vector.extract_strided_slice %754 {offsets = [8, 0], sizes = [12, 12], strides = [1, 1]} : vector<20x12xf32> to vector<12x12xf32>
    %c70 = arith.constant 70 : index
    %808 = memref.load %arg3[%c70] : memref<225xf32, #tpu.memory_space<smem>>
    %809 = vector.broadcast %808 : f32 to vector<12x12xf32>
    %810 = arith.mulf %809, %807 : vector<12x12xf32>
    %811 = arith.addf %798, %810 : vector<12x12xf32>
    %c145 = arith.constant 145 : index
    %812 = memref.load %arg3[%c145] : memref<225xf32, #tpu.memory_space<smem>>
    %813 = vector.broadcast %812 : f32 to vector<12x12xf32>
    %814 = arith.mulf %813, %807 : vector<12x12xf32>
    %815 = arith.addf %802, %814 : vector<12x12xf32>
    %c220 = arith.constant 220 : index
    %816 = memref.load %arg3[%c220] : memref<225xf32, #tpu.memory_space<smem>>
    %817 = vector.broadcast %816 : f32 to vector<12x12xf32>
    %818 = arith.mulf %817, %807 : vector<12x12xf32>
    %819 = arith.addf %806, %818 : vector<12x12xf32>
    %c2_87 = arith.constant 2 : index
    %c0_88 = arith.constant 0 : index
    %c2_89 = arith.constant 2 : index
    %820 = vector.load %arg7[%c2_87, %c0_88, %c2_89] : memref<3x20x20xf32, #tpu.memory_space<vmem>>, vector<1x20x12xf32>
    %821 = vector.shape_cast %820 : vector<1x20x12xf32> to vector<20x12xf32>
    %822 = vector.extract_strided_slice %821 {offsets = [0, 0], sizes = [12, 12], strides = [1, 1]} : vector<20x12xf32> to vector<12x12xf32>
    %c51 = arith.constant 51 : index
    %823 = memref.load %arg3[%c51] : memref<225xf32, #tpu.memory_space<smem>>
    %824 = vector.broadcast %823 : f32 to vector<12x12xf32>
    %825 = arith.mulf %824, %822 : vector<12x12xf32>
    %826 = arith.addf %811, %825 : vector<12x12xf32>
    %c126 = arith.constant 126 : index
    %827 = memref.load %arg3[%c126] : memref<225xf32, #tpu.memory_space<smem>>
    %828 = vector.broadcast %827 : f32 to vector<12x12xf32>
    %829 = arith.mulf %828, %822 : vector<12x12xf32>
    %830 = arith.addf %815, %829 : vector<12x12xf32>
    %c201 = arith.constant 201 : index
    %831 = memref.load %arg3[%c201] : memref<225xf32, #tpu.memory_space<smem>>
    %832 = vector.broadcast %831 : f32 to vector<12x12xf32>
    %833 = arith.mulf %832, %822 : vector<12x12xf32>
    %834 = arith.addf %819, %833 : vector<12x12xf32>
    %835 = vector.extract_strided_slice %821 {offsets = [2, 0], sizes = [12, 12], strides = [1, 1]} : vector<20x12xf32> to vector<12x12xf32>
    %c56 = arith.constant 56 : index
    %836 = memref.load %arg3[%c56] : memref<225xf32, #tpu.memory_space<smem>>
    %837 = vector.broadcast %836 : f32 to vector<12x12xf32>
    %838 = arith.mulf %837, %835 : vector<12x12xf32>
    %839 = arith.addf %826, %838 : vector<12x12xf32>
    %c131 = arith.constant 131 : index
    %840 = memref.load %arg3[%c131] : memref<225xf32, #tpu.memory_space<smem>>
    %841 = vector.broadcast %840 : f32 to vector<12x12xf32>
    %842 = arith.mulf %841, %835 : vector<12x12xf32>
    %843 = arith.addf %830, %842 : vector<12x12xf32>
    %c206 = arith.constant 206 : index
    %844 = memref.load %arg3[%c206] : memref<225xf32, #tpu.memory_space<smem>>
    %845 = vector.broadcast %844 : f32 to vector<12x12xf32>
    %846 = arith.mulf %845, %835 : vector<12x12xf32>
    %847 = arith.addf %834, %846 : vector<12x12xf32>
    %848 = vector.extract_strided_slice %821 {offsets = [4, 0], sizes = [12, 12], strides = [1, 1]} : vector<20x12xf32> to vector<12x12xf32>
    %c61 = arith.constant 61 : index
    %849 = memref.load %arg3[%c61] : memref<225xf32, #tpu.memory_space<smem>>
    %850 = vector.broadcast %849 : f32 to vector<12x12xf32>
    %851 = arith.mulf %850, %848 : vector<12x12xf32>
    %852 = arith.addf %839, %851 : vector<12x12xf32>
    %c136 = arith.constant 136 : index
    %853 = memref.load %arg3[%c136] : memref<225xf32, #tpu.memory_space<smem>>
    %854 = vector.broadcast %853 : f32 to vector<12x12xf32>
    %855 = arith.mulf %854, %848 : vector<12x12xf32>
    %856 = arith.addf %843, %855 : vector<12x12xf32>
    %c211 = arith.constant 211 : index
    %857 = memref.load %arg3[%c211] : memref<225xf32, #tpu.memory_space<smem>>
    %858 = vector.broadcast %857 : f32 to vector<12x12xf32>
    %859 = arith.mulf %858, %848 : vector<12x12xf32>
    %860 = arith.addf %847, %859 : vector<12x12xf32>
    %861 = vector.extract_strided_slice %821 {offsets = [6, 0], sizes = [12, 12], strides = [1, 1]} : vector<20x12xf32> to vector<12x12xf32>
    %c66 = arith.constant 66 : index
    %862 = memref.load %arg3[%c66] : memref<225xf32, #tpu.memory_space<smem>>
    %863 = vector.broadcast %862 : f32 to vector<12x12xf32>
    %864 = arith.mulf %863, %861 : vector<12x12xf32>
    %865 = arith.addf %852, %864 : vector<12x12xf32>
    %c141 = arith.constant 141 : index
    %866 = memref.load %arg3[%c141] : memref<225xf32, #tpu.memory_space<smem>>
    %867 = vector.broadcast %866 : f32 to vector<12x12xf32>
    %868 = arith.mulf %867, %861 : vector<12x12xf32>
    %869 = arith.addf %856, %868 : vector<12x12xf32>
    %c216 = arith.constant 216 : index
    %870 = memref.load %arg3[%c216] : memref<225xf32, #tpu.memory_space<smem>>
    %871 = vector.broadcast %870 : f32 to vector<12x12xf32>
    %872 = arith.mulf %871, %861 : vector<12x12xf32>
    %873 = arith.addf %860, %872 : vector<12x12xf32>
    %874 = vector.extract_strided_slice %821 {offsets = [8, 0], sizes = [12, 12], strides = [1, 1]} : vector<20x12xf32> to vector<12x12xf32>
    %c71 = arith.constant 71 : index
    %875 = memref.load %arg3[%c71] : memref<225xf32, #tpu.memory_space<smem>>
    %876 = vector.broadcast %875 : f32 to vector<12x12xf32>
    %877 = arith.mulf %876, %874 : vector<12x12xf32>
    %878 = arith.addf %865, %877 : vector<12x12xf32>
    %c146 = arith.constant 146 : index
    %879 = memref.load %arg3[%c146] : memref<225xf32, #tpu.memory_space<smem>>
    %880 = vector.broadcast %879 : f32 to vector<12x12xf32>
    %881 = arith.mulf %880, %874 : vector<12x12xf32>
    %882 = arith.addf %869, %881 : vector<12x12xf32>
    %c221 = arith.constant 221 : index
    %883 = memref.load %arg3[%c221] : memref<225xf32, #tpu.memory_space<smem>>
    %884 = vector.broadcast %883 : f32 to vector<12x12xf32>
    %885 = arith.mulf %884, %874 : vector<12x12xf32>
    %886 = arith.addf %873, %885 : vector<12x12xf32>
    %c2_90 = arith.constant 2 : index
    %c0_91 = arith.constant 0 : index
    %c4_92 = arith.constant 4 : index
    %887 = vector.load %arg7[%c2_90, %c0_91, %c4_92] : memref<3x20x20xf32, #tpu.memory_space<vmem>>, vector<1x20x12xf32>
    %888 = vector.shape_cast %887 : vector<1x20x12xf32> to vector<20x12xf32>
    %889 = vector.extract_strided_slice %888 {offsets = [0, 0], sizes = [12, 12], strides = [1, 1]} : vector<20x12xf32> to vector<12x12xf32>
    %c52 = arith.constant 52 : index
    %890 = memref.load %arg3[%c52] : memref<225xf32, #tpu.memory_space<smem>>
    %891 = vector.broadcast %890 : f32 to vector<12x12xf32>
    %892 = arith.mulf %891, %889 : vector<12x12xf32>
    %893 = arith.addf %878, %892 : vector<12x12xf32>
    %c127 = arith.constant 127 : index
    %894 = memref.load %arg3[%c127] : memref<225xf32, #tpu.memory_space<smem>>
    %895 = vector.broadcast %894 : f32 to vector<12x12xf32>
    %896 = arith.mulf %895, %889 : vector<12x12xf32>
    %897 = arith.addf %882, %896 : vector<12x12xf32>
    %c202 = arith.constant 202 : index
    %898 = memref.load %arg3[%c202] : memref<225xf32, #tpu.memory_space<smem>>
    %899 = vector.broadcast %898 : f32 to vector<12x12xf32>
    %900 = arith.mulf %899, %889 : vector<12x12xf32>
    %901 = arith.addf %886, %900 : vector<12x12xf32>
    %902 = vector.extract_strided_slice %888 {offsets = [2, 0], sizes = [12, 12], strides = [1, 1]} : vector<20x12xf32> to vector<12x12xf32>
    %c57 = arith.constant 57 : index
    %903 = memref.load %arg3[%c57] : memref<225xf32, #tpu.memory_space<smem>>
    %904 = vector.broadcast %903 : f32 to vector<12x12xf32>
    %905 = arith.mulf %904, %902 : vector<12x12xf32>
    %906 = arith.addf %893, %905 : vector<12x12xf32>
    %c132 = arith.constant 132 : index
    %907 = memref.load %arg3[%c132] : memref<225xf32, #tpu.memory_space<smem>>
    %908 = vector.broadcast %907 : f32 to vector<12x12xf32>
    %909 = arith.mulf %908, %902 : vector<12x12xf32>
    %910 = arith.addf %897, %909 : vector<12x12xf32>
    %c207 = arith.constant 207 : index
    %911 = memref.load %arg3[%c207] : memref<225xf32, #tpu.memory_space<smem>>
    %912 = vector.broadcast %911 : f32 to vector<12x12xf32>
    %913 = arith.mulf %912, %902 : vector<12x12xf32>
    %914 = arith.addf %901, %913 : vector<12x12xf32>
    %915 = vector.extract_strided_slice %888 {offsets = [4, 0], sizes = [12, 12], strides = [1, 1]} : vector<20x12xf32> to vector<12x12xf32>
    %c62 = arith.constant 62 : index
    %916 = memref.load %arg3[%c62] : memref<225xf32, #tpu.memory_space<smem>>
    %917 = vector.broadcast %916 : f32 to vector<12x12xf32>
    %918 = arith.mulf %917, %915 : vector<12x12xf32>
    %919 = arith.addf %906, %918 : vector<12x12xf32>
    %c137 = arith.constant 137 : index
    %920 = memref.load %arg3[%c137] : memref<225xf32, #tpu.memory_space<smem>>
    %921 = vector.broadcast %920 : f32 to vector<12x12xf32>
    %922 = arith.mulf %921, %915 : vector<12x12xf32>
    %923 = arith.addf %910, %922 : vector<12x12xf32>
    %c212 = arith.constant 212 : index
    %924 = memref.load %arg3[%c212] : memref<225xf32, #tpu.memory_space<smem>>
    %925 = vector.broadcast %924 : f32 to vector<12x12xf32>
    %926 = arith.mulf %925, %915 : vector<12x12xf32>
    %927 = arith.addf %914, %926 : vector<12x12xf32>
    %928 = vector.extract_strided_slice %888 {offsets = [6, 0], sizes = [12, 12], strides = [1, 1]} : vector<20x12xf32> to vector<12x12xf32>
    %c67 = arith.constant 67 : index
    %929 = memref.load %arg3[%c67] : memref<225xf32, #tpu.memory_space<smem>>
    %930 = vector.broadcast %929 : f32 to vector<12x12xf32>
    %931 = arith.mulf %930, %928 : vector<12x12xf32>
    %932 = arith.addf %919, %931 : vector<12x12xf32>
    %c142 = arith.constant 142 : index
    %933 = memref.load %arg3[%c142] : memref<225xf32, #tpu.memory_space<smem>>
    %934 = vector.broadcast %933 : f32 to vector<12x12xf32>
    %935 = arith.mulf %934, %928 : vector<12x12xf32>
    %936 = arith.addf %923, %935 : vector<12x12xf32>
    %c217 = arith.constant 217 : index
    %937 = memref.load %arg3[%c217] : memref<225xf32, #tpu.memory_space<smem>>
    %938 = vector.broadcast %937 : f32 to vector<12x12xf32>
    %939 = arith.mulf %938, %928 : vector<12x12xf32>
    %940 = arith.addf %927, %939 : vector<12x12xf32>
    %941 = vector.extract_strided_slice %888 {offsets = [8, 0], sizes = [12, 12], strides = [1, 1]} : vector<20x12xf32> to vector<12x12xf32>
    %c72 = arith.constant 72 : index
    %942 = memref.load %arg3[%c72] : memref<225xf32, #tpu.memory_space<smem>>
    %943 = vector.broadcast %942 : f32 to vector<12x12xf32>
    %944 = arith.mulf %943, %941 : vector<12x12xf32>
    %945 = arith.addf %932, %944 : vector<12x12xf32>
    %c147 = arith.constant 147 : index
    %946 = memref.load %arg3[%c147] : memref<225xf32, #tpu.memory_space<smem>>
    %947 = vector.broadcast %946 : f32 to vector<12x12xf32>
    %948 = arith.mulf %947, %941 : vector<12x12xf32>
    %949 = arith.addf %936, %948 : vector<12x12xf32>
    %c222 = arith.constant 222 : index
    %950 = memref.load %arg3[%c222] : memref<225xf32, #tpu.memory_space<smem>>
    %951 = vector.broadcast %950 : f32 to vector<12x12xf32>
    %952 = arith.mulf %951, %941 : vector<12x12xf32>
    %953 = arith.addf %940, %952 : vector<12x12xf32>
    %c2_93 = arith.constant 2 : index
    %c0_94 = arith.constant 0 : index
    %c6_95 = arith.constant 6 : index
    %954 = vector.load %arg7[%c2_93, %c0_94, %c6_95] : memref<3x20x20xf32, #tpu.memory_space<vmem>>, vector<1x20x12xf32>
    %955 = vector.shape_cast %954 : vector<1x20x12xf32> to vector<20x12xf32>
    %956 = vector.extract_strided_slice %955 {offsets = [0, 0], sizes = [12, 12], strides = [1, 1]} : vector<20x12xf32> to vector<12x12xf32>
    %c53 = arith.constant 53 : index
    %957 = memref.load %arg3[%c53] : memref<225xf32, #tpu.memory_space<smem>>
    %958 = vector.broadcast %957 : f32 to vector<12x12xf32>
    %959 = arith.mulf %958, %956 : vector<12x12xf32>
    %960 = arith.addf %945, %959 : vector<12x12xf32>
    %c128 = arith.constant 128 : index
    %961 = memref.load %arg3[%c128] : memref<225xf32, #tpu.memory_space<smem>>
    %962 = vector.broadcast %961 : f32 to vector<12x12xf32>
    %963 = arith.mulf %962, %956 : vector<12x12xf32>
    %964 = arith.addf %949, %963 : vector<12x12xf32>
    %c203 = arith.constant 203 : index
    %965 = memref.load %arg3[%c203] : memref<225xf32, #tpu.memory_space<smem>>
    %966 = vector.broadcast %965 : f32 to vector<12x12xf32>
    %967 = arith.mulf %966, %956 : vector<12x12xf32>
    %968 = arith.addf %953, %967 : vector<12x12xf32>
    %969 = vector.extract_strided_slice %955 {offsets = [2, 0], sizes = [12, 12], strides = [1, 1]} : vector<20x12xf32> to vector<12x12xf32>
    %c58 = arith.constant 58 : index
    %970 = memref.load %arg3[%c58] : memref<225xf32, #tpu.memory_space<smem>>
    %971 = vector.broadcast %970 : f32 to vector<12x12xf32>
    %972 = arith.mulf %971, %969 : vector<12x12xf32>
    %973 = arith.addf %960, %972 : vector<12x12xf32>
    %c133 = arith.constant 133 : index
    %974 = memref.load %arg3[%c133] : memref<225xf32, #tpu.memory_space<smem>>
    %975 = vector.broadcast %974 : f32 to vector<12x12xf32>
    %976 = arith.mulf %975, %969 : vector<12x12xf32>
    %977 = arith.addf %964, %976 : vector<12x12xf32>
    %c208 = arith.constant 208 : index
    %978 = memref.load %arg3[%c208] : memref<225xf32, #tpu.memory_space<smem>>
    %979 = vector.broadcast %978 : f32 to vector<12x12xf32>
    %980 = arith.mulf %979, %969 : vector<12x12xf32>
    %981 = arith.addf %968, %980 : vector<12x12xf32>
    %982 = vector.extract_strided_slice %955 {offsets = [4, 0], sizes = [12, 12], strides = [1, 1]} : vector<20x12xf32> to vector<12x12xf32>
    %c63 = arith.constant 63 : index
    %983 = memref.load %arg3[%c63] : memref<225xf32, #tpu.memory_space<smem>>
    %984 = vector.broadcast %983 : f32 to vector<12x12xf32>
    %985 = arith.mulf %984, %982 : vector<12x12xf32>
    %986 = arith.addf %973, %985 : vector<12x12xf32>
    %c138 = arith.constant 138 : index
    %987 = memref.load %arg3[%c138] : memref<225xf32, #tpu.memory_space<smem>>
    %988 = vector.broadcast %987 : f32 to vector<12x12xf32>
    %989 = arith.mulf %988, %982 : vector<12x12xf32>
    %990 = arith.addf %977, %989 : vector<12x12xf32>
    %c213 = arith.constant 213 : index
    %991 = memref.load %arg3[%c213] : memref<225xf32, #tpu.memory_space<smem>>
    %992 = vector.broadcast %991 : f32 to vector<12x12xf32>
    %993 = arith.mulf %992, %982 : vector<12x12xf32>
    %994 = arith.addf %981, %993 : vector<12x12xf32>
    %995 = vector.extract_strided_slice %955 {offsets = [6, 0], sizes = [12, 12], strides = [1, 1]} : vector<20x12xf32> to vector<12x12xf32>
    %c68 = arith.constant 68 : index
    %996 = memref.load %arg3[%c68] : memref<225xf32, #tpu.memory_space<smem>>
    %997 = vector.broadcast %996 : f32 to vector<12x12xf32>
    %998 = arith.mulf %997, %995 : vector<12x12xf32>
    %999 = arith.addf %986, %998 : vector<12x12xf32>
    %c143 = arith.constant 143 : index
    %1000 = memref.load %arg3[%c143] : memref<225xf32, #tpu.memory_space<smem>>
    %1001 = vector.broadcast %1000 : f32 to vector<12x12xf32>
    %1002 = arith.mulf %1001, %995 : vector<12x12xf32>
    %1003 = arith.addf %990, %1002 : vector<12x12xf32>
    %c218 = arith.constant 218 : index
    %1004 = memref.load %arg3[%c218] : memref<225xf32, #tpu.memory_space<smem>>
    %1005 = vector.broadcast %1004 : f32 to vector<12x12xf32>
    %1006 = arith.mulf %1005, %995 : vector<12x12xf32>
    %1007 = arith.addf %994, %1006 : vector<12x12xf32>
    %1008 = vector.extract_strided_slice %955 {offsets = [8, 0], sizes = [12, 12], strides = [1, 1]} : vector<20x12xf32> to vector<12x12xf32>
    %c73 = arith.constant 73 : index
    %1009 = memref.load %arg3[%c73] : memref<225xf32, #tpu.memory_space<smem>>
    %1010 = vector.broadcast %1009 : f32 to vector<12x12xf32>
    %1011 = arith.mulf %1010, %1008 : vector<12x12xf32>
    %1012 = arith.addf %999, %1011 : vector<12x12xf32>
    %c148 = arith.constant 148 : index
    %1013 = memref.load %arg3[%c148] : memref<225xf32, #tpu.memory_space<smem>>
    %1014 = vector.broadcast %1013 : f32 to vector<12x12xf32>
    %1015 = arith.mulf %1014, %1008 : vector<12x12xf32>
    %1016 = arith.addf %1003, %1015 : vector<12x12xf32>
    %c223 = arith.constant 223 : index
    %1017 = memref.load %arg3[%c223] : memref<225xf32, #tpu.memory_space<smem>>
    %1018 = vector.broadcast %1017 : f32 to vector<12x12xf32>
    %1019 = arith.mulf %1018, %1008 : vector<12x12xf32>
    %1020 = arith.addf %1007, %1019 : vector<12x12xf32>
    %c2_96 = arith.constant 2 : index
    %c0_97 = arith.constant 0 : index
    %c8_98 = arith.constant 8 : index
    %1021 = vector.load %arg7[%c2_96, %c0_97, %c8_98] : memref<3x20x20xf32, #tpu.memory_space<vmem>>, vector<1x20x12xf32>
    %1022 = vector.shape_cast %1021 : vector<1x20x12xf32> to vector<20x12xf32>
    %1023 = vector.extract_strided_slice %1022 {offsets = [0, 0], sizes = [12, 12], strides = [1, 1]} : vector<20x12xf32> to vector<12x12xf32>
    %c54 = arith.constant 54 : index
    %1024 = memref.load %arg3[%c54] : memref<225xf32, #tpu.memory_space<smem>>
    %1025 = vector.broadcast %1024 : f32 to vector<12x12xf32>
    %1026 = arith.mulf %1025, %1023 : vector<12x12xf32>
    %1027 = arith.addf %1012, %1026 : vector<12x12xf32>
    %c129 = arith.constant 129 : index
    %1028 = memref.load %arg3[%c129] : memref<225xf32, #tpu.memory_space<smem>>
    %1029 = vector.broadcast %1028 : f32 to vector<12x12xf32>
    %1030 = arith.mulf %1029, %1023 : vector<12x12xf32>
    %1031 = arith.addf %1016, %1030 : vector<12x12xf32>
    %c204 = arith.constant 204 : index
    %1032 = memref.load %arg3[%c204] : memref<225xf32, #tpu.memory_space<smem>>
    %1033 = vector.broadcast %1032 : f32 to vector<12x12xf32>
    %1034 = arith.mulf %1033, %1023 : vector<12x12xf32>
    %1035 = arith.addf %1020, %1034 : vector<12x12xf32>
    %1036 = vector.extract_strided_slice %1022 {offsets = [2, 0], sizes = [12, 12], strides = [1, 1]} : vector<20x12xf32> to vector<12x12xf32>
    %c59 = arith.constant 59 : index
    %1037 = memref.load %arg3[%c59] : memref<225xf32, #tpu.memory_space<smem>>
    %1038 = vector.broadcast %1037 : f32 to vector<12x12xf32>
    %1039 = arith.mulf %1038, %1036 : vector<12x12xf32>
    %1040 = arith.addf %1027, %1039 : vector<12x12xf32>
    %c134 = arith.constant 134 : index
    %1041 = memref.load %arg3[%c134] : memref<225xf32, #tpu.memory_space<smem>>
    %1042 = vector.broadcast %1041 : f32 to vector<12x12xf32>
    %1043 = arith.mulf %1042, %1036 : vector<12x12xf32>
    %1044 = arith.addf %1031, %1043 : vector<12x12xf32>
    %c209 = arith.constant 209 : index
    %1045 = memref.load %arg3[%c209] : memref<225xf32, #tpu.memory_space<smem>>
    %1046 = vector.broadcast %1045 : f32 to vector<12x12xf32>
    %1047 = arith.mulf %1046, %1036 : vector<12x12xf32>
    %1048 = arith.addf %1035, %1047 : vector<12x12xf32>
    %1049 = vector.extract_strided_slice %1022 {offsets = [4, 0], sizes = [12, 12], strides = [1, 1]} : vector<20x12xf32> to vector<12x12xf32>
    %c64 = arith.constant 64 : index
    %1050 = memref.load %arg3[%c64] : memref<225xf32, #tpu.memory_space<smem>>
    %1051 = vector.broadcast %1050 : f32 to vector<12x12xf32>
    %1052 = arith.mulf %1051, %1049 : vector<12x12xf32>
    %1053 = arith.addf %1040, %1052 : vector<12x12xf32>
    %c139 = arith.constant 139 : index
    %1054 = memref.load %arg3[%c139] : memref<225xf32, #tpu.memory_space<smem>>
    %1055 = vector.broadcast %1054 : f32 to vector<12x12xf32>
    %1056 = arith.mulf %1055, %1049 : vector<12x12xf32>
    %1057 = arith.addf %1044, %1056 : vector<12x12xf32>
    %c214 = arith.constant 214 : index
    %1058 = memref.load %arg3[%c214] : memref<225xf32, #tpu.memory_space<smem>>
    %1059 = vector.broadcast %1058 : f32 to vector<12x12xf32>
    %1060 = arith.mulf %1059, %1049 : vector<12x12xf32>
    %1061 = arith.addf %1048, %1060 : vector<12x12xf32>
    %1062 = vector.extract_strided_slice %1022 {offsets = [6, 0], sizes = [12, 12], strides = [1, 1]} : vector<20x12xf32> to vector<12x12xf32>
    %c69 = arith.constant 69 : index
    %1063 = memref.load %arg3[%c69] : memref<225xf32, #tpu.memory_space<smem>>
    %1064 = vector.broadcast %1063 : f32 to vector<12x12xf32>
    %1065 = arith.mulf %1064, %1062 : vector<12x12xf32>
    %1066 = arith.addf %1053, %1065 : vector<12x12xf32>
    %c144 = arith.constant 144 : index
    %1067 = memref.load %arg3[%c144] : memref<225xf32, #tpu.memory_space<smem>>
    %1068 = vector.broadcast %1067 : f32 to vector<12x12xf32>
    %1069 = arith.mulf %1068, %1062 : vector<12x12xf32>
    %1070 = arith.addf %1057, %1069 : vector<12x12xf32>
    %c219 = arith.constant 219 : index
    %1071 = memref.load %arg3[%c219] : memref<225xf32, #tpu.memory_space<smem>>
    %1072 = vector.broadcast %1071 : f32 to vector<12x12xf32>
    %1073 = arith.mulf %1072, %1062 : vector<12x12xf32>
    %1074 = arith.addf %1061, %1073 : vector<12x12xf32>
    %1075 = vector.extract_strided_slice %1022 {offsets = [8, 0], sizes = [12, 12], strides = [1, 1]} : vector<20x12xf32> to vector<12x12xf32>
    %c74 = arith.constant 74 : index
    %1076 = memref.load %arg3[%c74] : memref<225xf32, #tpu.memory_space<smem>>
    %1077 = vector.broadcast %1076 : f32 to vector<12x12xf32>
    %1078 = arith.mulf %1077, %1075 : vector<12x12xf32>
    %1079 = arith.addf %1066, %1078 : vector<12x12xf32>
    %c149 = arith.constant 149 : index
    %1080 = memref.load %arg3[%c149] : memref<225xf32, #tpu.memory_space<smem>>
    %1081 = vector.broadcast %1080 : f32 to vector<12x12xf32>
    %1082 = arith.mulf %1081, %1075 : vector<12x12xf32>
    %1083 = arith.addf %1070, %1082 : vector<12x12xf32>
    %c224 = arith.constant 224 : index
    %1084 = memref.load %arg3[%c224] : memref<225xf32, #tpu.memory_space<smem>>
    %1085 = vector.broadcast %1084 : f32 to vector<12x12xf32>
    %1086 = arith.mulf %1085, %1075 : vector<12x12xf32>
    %1087 = arith.addf %1074, %1086 : vector<12x12xf32>
    %cst_99 = arith.constant 1.000000e-01 : f32
    %1088 = vector.broadcast %cst_99 : f32 to vector<12x12xf32>
    %1089 = arith.mulf %38, %1088 : vector<12x12xf32>
    %cst_100 = arith.constant 1.000000e-01 : f32
    %1090 = vector.broadcast %cst_100 : f32 to vector<12x12xf32>
    %1091 = arith.mulf %1079, %1090 : vector<12x12xf32>
    %cst_101 = arith.constant 0.000000e+00 : f32
    %1092 = vector.broadcast %cst_101 : f32 to vector<12x12xf32>
    %1093 = arith.cmpf ogt, %1079, %1092 : vector<12x12xf32>
    %cst_102 = arith.constant 0.000000e+00 : f32
    %1094 = vector.broadcast %cst_102 : f32 to vector<12x12xf32>
    %1095 = arith.cmpf ogt, %38, %1094 : vector<12x12xf32>
    %1096 = arith.select %1095, %1089, %1091 : vector<12x12xi1>, vector<12x12xf32>
    %1097 = arith.select %1093, %1089, %1096 : vector<12x12xi1>, vector<12x12xf32>
    %1098 = arith.select %1093, %1091, %1096 : vector<12x12xi1>, vector<12x12xf32>
    %1099 = arith.select %1093, %38, %1096 : vector<12x12xi1>, vector<12x12xf32>
    %c0_103 = arith.constant 0 : index
    %c0_104 = arith.constant 0 : index
    %c0_105 = arith.constant 0 : index
    %c0_106 = arith.constant 0 : index
    %c0_107 = arith.constant 0 : index
    %1100 = vector.load %arg6[%c0_103, %c0_104, %c0_105, %c0_106, %c0_107] : memref<4x1x6x12x12xf32, #tpu.memory_space<vmem>>, vector<1x1x1x12x12xf32>
    %1101 = vector.shape_cast %1100 : vector<1x1x1x12x12xf32> to vector<12x12xf32>
    %1102 = vector.shape_cast %1099 : vector<12x12xf32> to vector<1x1x1x12x12xf32>
    tpu.vector_store %arg6[%c0_103, %c0_104, %c0_105, %c0_106, %c0_107], %1102 {strides = array<i32>} : memref<4x1x6x12x12xf32, #tpu.memory_space<vmem>>, vector<1x1x1x12x12xf32>,
    %1103 = arith.select %1093, %1079, %1096 : vector<12x12xi1>, vector<12x12xf32>
    %c1_108 = arith.constant 1 : index
    %c0_109 = arith.constant 0 : index
    %c0_110 = arith.constant 0 : index
    %c0_111 = arith.constant 0 : index
    %c0_112 = arith.constant 0 : index
    %1104 = vector.load %arg6[%c1_108, %c0_109, %c0_110, %c0_111, %c0_112] : memref<4x1x6x12x12xf32, #tpu.memory_space<vmem>>, vector<1x1x1x12x12xf32>
    %1105 = vector.shape_cast %1104 : vector<1x1x1x12x12xf32> to vector<12x12xf32>
    %1106 = vector.shape_cast %1103 : vector<12x12xf32> to vector<1x1x1x12x12xf32>
    tpu.vector_store %arg6[%c1_108, %c0_109, %c0_110, %c0_111, %c0_112], %1106 {strides = array<i32>} : memref<4x1x6x12x12xf32, #tpu.memory_space<vmem>>, vector<1x1x1x12x12xf32>,
    %cst_113 = arith.constant 0.000000e+00 : f32
    %1107 = vector.broadcast %cst_113 : f32 to vector<12x12xf32>
    %1108 = arith.subf %1107, %38 : vector<12x12xf32>
    %1109 = arith.select %1093, %1108, %1096 : vector<12x12xi1>, vector<12x12xf32>
    %c2_114 = arith.constant 2 : index
    %c0_115 = arith.constant 0 : index
    %c0_116 = arith.constant 0 : index
    %c0_117 = arith.constant 0 : index
    %c0_118 = arith.constant 0 : index
    %1110 = vector.load %arg6[%c2_114, %c0_115, %c0_116, %c0_117, %c0_118] : memref<4x1x6x12x12xf32, #tpu.memory_space<vmem>>, vector<1x1x1x12x12xf32>
    %1111 = vector.shape_cast %1110 : vector<1x1x1x12x12xf32> to vector<12x12xf32>
    %1112 = vector.shape_cast %1109 : vector<12x12xf32> to vector<1x1x1x12x12xf32>
    tpu.vector_store %arg6[%c2_114, %c0_115, %c0_116, %c0_117, %c0_118], %1112 {strides = array<i32>} : memref<4x1x6x12x12xf32, #tpu.memory_space<vmem>>, vector<1x1x1x12x12xf32>,
    %cst_119 = arith.constant 0.000000e+00 : f32
    %1113 = vector.broadcast %cst_119 : f32 to vector<12x12xf32>
    %1114 = arith.subf %1113, %1079 : vector<12x12xf32>
    %1115 = arith.select %1093, %1114, %1096 : vector<12x12xi1>, vector<12x12xf32>
    %c3_120 = arith.constant 3 : index
    %c0_121 = arith.constant 0 : index
    %c0_122 = arith.constant 0 : index
    %c0_123 = arith.constant 0 : index
    %c0_124 = arith.constant 0 : index
    %1116 = vector.load %arg6[%c3_120, %c0_121, %c0_122, %c0_123, %c0_124] : memref<4x1x6x12x12xf32, #tpu.memory_space<vmem>>, vector<1x1x1x12x12xf32>
    %1117 = vector.shape_cast %1116 : vector<1x1x1x12x12xf32> to vector<12x12xf32>
    %1118 = vector.shape_cast %1115 : vector<12x12xf32> to vector<1x1x1x12x12xf32>
    tpu.vector_store %arg6[%c3_120, %c0_121, %c0_122, %c0_123, %c0_124], %1118 {strides = array<i32>} : memref<4x1x6x12x12xf32, #tpu.memory_space<vmem>>, vector<1x1x1x12x12xf32>,
    %c0_125 = arith.constant 0 : index
    %c0_126 = arith.constant 0 : index
    %c3_127 = arith.constant 3 : index
    %c0_128 = arith.constant 0 : index
    %c0_129 = arith.constant 0 : index
    %1119 = vector.load %arg6[%c0_125, %c0_126, %c3_127, %c0_128, %c0_129] : memref<4x1x6x12x12xf32, #tpu.memory_space<vmem>>, vector<1x1x1x12x12xf32>
    %1120 = vector.shape_cast %1119 : vector<1x1x1x12x12xf32> to vector<12x12xf32>
    %1121 = vector.shape_cast %1097 : vector<12x12xf32> to vector<1x1x1x12x12xf32>
    tpu.vector_store %arg6[%c0_125, %c0_126, %c3_127, %c0_128, %c0_129], %1121 {strides = array<i32>} : memref<4x1x6x12x12xf32, #tpu.memory_space<vmem>>, vector<1x1x1x12x12xf32>,
    %c2_130 = arith.constant 2 : index
    %c0_131 = arith.constant 0 : index
    %c3_132 = arith.constant 3 : index
    %c0_133 = arith.constant 0 : index
    %c0_134 = arith.constant 0 : index
    %1122 = vector.load %arg6[%c2_130, %c0_131, %c3_132, %c0_133, %c0_134] : memref<4x1x6x12x12xf32, #tpu.memory_space<vmem>>, vector<1x1x1x12x12xf32>
    %1123 = vector.shape_cast %1122 : vector<1x1x1x12x12xf32> to vector<12x12xf32>
    %1124 = vector.shape_cast %1097 : vector<12x12xf32> to vector<1x1x1x12x12xf32>
    tpu.vector_store %arg6[%c2_130, %c0_131, %c3_132, %c0_133, %c0_134], %1124 {strides = array<i32>} : memref<4x1x6x12x12xf32, #tpu.memory_space<vmem>>, vector<1x1x1x12x12xf32>,
    %c1_135 = arith.constant 1 : index
    %c0_136 = arith.constant 0 : index
    %c3_137 = arith.constant 3 : index
    %c0_138 = arith.constant 0 : index
    %c0_139 = arith.constant 0 : index
    %1125 = vector.load %arg6[%c1_135, %c0_136, %c3_137, %c0_138, %c0_139] : memref<4x1x6x12x12xf32, #tpu.memory_space<vmem>>, vector<1x1x1x12x12xf32>
    %1126 = vector.shape_cast %1125 : vector<1x1x1x12x12xf32> to vector<12x12xf32>
    %1127 = vector.shape_cast %1098 : vector<12x12xf32> to vector<1x1x1x12x12xf32>
    tpu.vector_store %arg6[%c1_135, %c0_136, %c3_137, %c0_138, %c0_139], %1127 {strides = array<i32>} : memref<4x1x6x12x12xf32, #tpu.memory_space<vmem>>, vector<1x1x1x12x12xf32>,
    %c3_140 = arith.constant 3 : index
    %c0_141 = arith.constant 0 : index
    %c3_142 = arith.constant 3 : index
    %c0_143 = arith.constant 0 : index
    %c0_144 = arith.constant 0 : index
    %1128 = vector.load %arg6[%c3_140, %c0_141, %c3_142, %c0_143, %c0_144] : memref<4x1x6x12x12xf32, #tpu.memory_space<vmem>>, vector<1x1x1x12x12xf32>
    %1129 = vector.shape_cast %1128 : vector<1x1x1x12x12xf32> to vector<12x12xf32>
    %1130 = vector.shape_cast %1098 : vector<12x12xf32> to vector<1x1x1x12x12xf32>
    tpu.vector_store %arg6[%c3_140, %c0_141, %c3_142, %c0_143, %c0_144], %1130 {strides = array<i32>} : memref<4x1x6x12x12xf32, #tpu.memory_space<vmem>>, vector<1x1x1x12x12xf32>,
    %cst_145 = arith.constant 1.000000e-01 : f32
    %1131 = vector.broadcast %cst_145 : f32 to vector<12x12xf32>
    %1132 = arith.mulf %54, %1131 : vector<12x12xf32>
    %cst_146 = arith.constant 1.000000e-01 : f32
    %1133 = vector.broadcast %cst_146 : f32 to vector<12x12xf32>
    %1134 = arith.mulf %1083, %1133 : vector<12x12xf32>
    %cst_147 = arith.constant 0.000000e+00 : f32
    %1135 = vector.broadcast %cst_147 : f32 to vector<12x12xf32>
    %1136 = arith.cmpf ogt, %1083, %1135 : vector<12x12xf32>
    %cst_148 = arith.constant 0.000000e+00 : f32
    %1137 = vector.broadcast %cst_148 : f32 to vector<12x12xf32>
    %1138 = arith.cmpf ogt, %54, %1137 : vector<12x12xf32>
    %1139 = arith.select %1138, %1132, %1134 : vector<12x12xi1>, vector<12x12xf32>
    %1140 = arith.select %1136, %1132, %1139 : vector<12x12xi1>, vector<12x12xf32>
    %1141 = arith.select %1136, %1134, %1139 : vector<12x12xi1>, vector<12x12xf32>
    %1142 = arith.select %1136, %54, %1139 : vector<12x12xi1>, vector<12x12xf32>
    %c0_149 = arith.constant 0 : index
    %c0_150 = arith.constant 0 : index
    %c1_151 = arith.constant 1 : index
    %c0_152 = arith.constant 0 : index
    %c0_153 = arith.constant 0 : index
    %1143 = vector.load %arg6[%c0_149, %c0_150, %c1_151, %c0_152, %c0_153] : memref<4x1x6x12x12xf32, #tpu.memory_space<vmem>>, vector<1x1x1x12x12xf32>
    %1144 = vector.shape_cast %1143 : vector<1x1x1x12x12xf32> to vector<12x12xf32>
    %1145 = vector.shape_cast %1142 : vector<12x12xf32> to vector<1x1x1x12x12xf32>
    tpu.vector_store %arg6[%c0_149, %c0_150, %c1_151, %c0_152, %c0_153], %1145 {strides = array<i32>} : memref<4x1x6x12x12xf32, #tpu.memory_space<vmem>>, vector<1x1x1x12x12xf32>,
    %1146 = arith.select %1136, %1083, %1139 : vector<12x12xi1>, vector<12x12xf32>
    %c1_154 = arith.constant 1 : index
    %c0_155 = arith.constant 0 : index
    %c1_156 = arith.constant 1 : index
    %c0_157 = arith.constant 0 : index
    %c0_158 = arith.constant 0 : index
    %1147 = vector.load %arg6[%c1_154, %c0_155, %c1_156, %c0_157, %c0_158] : memref<4x1x6x12x12xf32, #tpu.memory_space<vmem>>, vector<1x1x1x12x12xf32>
    %1148 = vector.shape_cast %1147 : vector<1x1x1x12x12xf32> to vector<12x12xf32>
    %1149 = vector.shape_cast %1146 : vector<12x12xf32> to vector<1x1x1x12x12xf32>
    tpu.vector_store %arg6[%c1_154, %c0_155, %c1_156, %c0_157, %c0_158], %1149 {strides = array<i32>} : memref<4x1x6x12x12xf32, #tpu.memory_space<vmem>>, vector<1x1x1x12x12xf32>,
    %cst_159 = arith.constant 0.000000e+00 : f32
    %1150 = vector.broadcast %cst_159 : f32 to vector<12x12xf32>
    %1151 = arith.subf %1150, %54 : vector<12x12xf32>
    %1152 = arith.select %1136, %1151, %1139 : vector<12x12xi1>, vector<12x12xf32>
    %c2_160 = arith.constant 2 : index
    %c0_161 = arith.constant 0 : index
    %c1_162 = arith.constant 1 : index
    %c0_163 = arith.constant 0 : index
    %c0_164 = arith.constant 0 : index
    %1153 = vector.load %arg6[%c2_160, %c0_161, %c1_162, %c0_163, %c0_164] : memref<4x1x6x12x12xf32, #tpu.memory_space<vmem>>, vector<1x1x1x12x12xf32>
    %1154 = vector.shape_cast %1153 : vector<1x1x1x12x12xf32> to vector<12x12xf32>
    %1155 = vector.shape_cast %1152 : vector<12x12xf32> to vector<1x1x1x12x12xf32>
    tpu.vector_store %arg6[%c2_160, %c0_161, %c1_162, %c0_163, %c0_164], %1155 {strides = array<i32>} : memref<4x1x6x12x12xf32, #tpu.memory_space<vmem>>, vector<1x1x1x12x12xf32>,
    %cst_165 = arith.constant 0.000000e+00 : f32
    %1156 = vector.broadcast %cst_165 : f32 to vector<12x12xf32>
    %1157 = arith.subf %1156, %1083 : vector<12x12xf32>
    %1158 = arith.select %1136, %1157, %1139 : vector<12x12xi1>, vector<12x12xf32>
    %c3_166 = arith.constant 3 : index
    %c0_167 = arith.constant 0 : index
    %c1_168 = arith.constant 1 : index
    %c0_169 = arith.constant 0 : index
    %c0_170 = arith.constant 0 : index
    %1159 = vector.load %arg6[%c3_166, %c0_167, %c1_168, %c0_169, %c0_170] : memref<4x1x6x12x12xf32, #tpu.memory_space<vmem>>, vector<1x1x1x12x12xf32>
    %1160 = vector.shape_cast %1159 : vector<1x1x1x12x12xf32> to vector<12x12xf32>
    %1161 = vector.shape_cast %1158 : vector<12x12xf32> to vector<1x1x1x12x12xf32>
    tpu.vector_store %arg6[%c3_166, %c0_167, %c1_168, %c0_169, %c0_170], %1161 {strides = array<i32>} : memref<4x1x6x12x12xf32, #tpu.memory_space<vmem>>, vector<1x1x1x12x12xf32>,
    %c0_171 = arith.constant 0 : index
    %c0_172 = arith.constant 0 : index
    %c4_173 = arith.constant 4 : index
    %c0_174 = arith.constant 0 : index
    %c0_175 = arith.constant 0 : index
    %1162 = vector.load %arg6[%c0_171, %c0_172, %c4_173, %c0_174, %c0_175] : memref<4x1x6x12x12xf32, #tpu.memory_space<vmem>>, vector<1x1x1x12x12xf32>
    %1163 = vector.shape_cast %1162 : vector<1x1x1x12x12xf32> to vector<12x12xf32>
    %1164 = vector.shape_cast %1140 : vector<12x12xf32> to vector<1x1x1x12x12xf32>
    tpu.vector_store %arg6[%c0_171, %c0_172, %c4_173, %c0_174, %c0_175], %1164 {strides = array<i32>} : memref<4x1x6x12x12xf32, #tpu.memory_space<vmem>>, vector<1x1x1x12x12xf32>,
    %c2_176 = arith.constant 2 : index
    %c0_177 = arith.constant 0 : index
    %c4_178 = arith.constant 4 : index
    %c0_179 = arith.constant 0 : index
    %c0_180 = arith.constant 0 : index
    %1165 = vector.load %arg6[%c2_176, %c0_177, %c4_178, %c0_179, %c0_180] : memref<4x1x6x12x12xf32, #tpu.memory_space<vmem>>, vector<1x1x1x12x12xf32>
    %1166 = vector.shape_cast %1165 : vector<1x1x1x12x12xf32> to vector<12x12xf32>
    %1167 = vector.shape_cast %1140 : vector<12x12xf32> to vector<1x1x1x12x12xf32>
    tpu.vector_store %arg6[%c2_176, %c0_177, %c4_178, %c0_179, %c0_180], %1167 {strides = array<i32>} : memref<4x1x6x12x12xf32, #tpu.memory_space<vmem>>, vector<1x1x1x12x12xf32>,
    %c1_181 = arith.constant 1 : index
    %c0_182 = arith.constant 0 : index
    %c4_183 = arith.constant 4 : index
    %c0_184 = arith.constant 0 : index
    %c0_185 = arith.constant 0 : index
    %1168 = vector.load %arg6[%c1_181, %c0_182, %c4_183, %c0_184, %c0_185] : memref<4x1x6x12x12xf32, #tpu.memory_space<vmem>>, vector<1x1x1x12x12xf32>
    %1169 = vector.shape_cast %1168 : vector<1x1x1x12x12xf32> to vector<12x12xf32>
    %1170 = vector.shape_cast %1141 : vector<12x12xf32> to vector<1x1x1x12x12xf32>
    tpu.vector_store %arg6[%c1_181, %c0_182, %c4_183, %c0_184, %c0_185], %1170 {strides = array<i32>} : memref<4x1x6x12x12xf32, #tpu.memory_space<vmem>>, vector<1x1x1x12x12xf32>,
    %c3_186 = arith.constant 3 : index
    %c0_187 = arith.constant 0 : index
    %c4_188 = arith.constant 4 : index
    %c0_189 = arith.constant 0 : index
    %c0_190 = arith.constant 0 : index
    %1171 = vector.load %arg6[%c3_186, %c0_187, %c4_188, %c0_189, %c0_190] : memref<4x1x6x12x12xf32, #tpu.memory_space<vmem>>, vector<1x1x1x12x12xf32>
    %1172 = vector.shape_cast %1171 : vector<1x1x1x12x12xf32> to vector<12x12xf32>
    %1173 = vector.shape_cast %1141 : vector<12x12xf32> to vector<1x1x1x12x12xf32>
    tpu.vector_store %arg6[%c3_186, %c0_187, %c4_188, %c0_189, %c0_190], %1173 {strides = array<i32>} : memref<4x1x6x12x12xf32, #tpu.memory_space<vmem>>, vector<1x1x1x12x12xf32>,
    %cst_191 = arith.constant 1.000000e-01 : f32
    %1174 = vector.broadcast %cst_191 : f32 to vector<12x12xf32>
    %1175 = arith.mulf %70, %1174 : vector<12x12xf32>
    %cst_192 = arith.constant 1.000000e-01 : f32
    %1176 = vector.broadcast %cst_192 : f32 to vector<12x12xf32>
    %1177 = arith.mulf %1087, %1176 : vector<12x12xf32>
    %cst_193 = arith.constant 0.000000e+00 : f32
    %1178 = vector.broadcast %cst_193 : f32 to vector<12x12xf32>
    %1179 = arith.cmpf ogt, %1087, %1178 : vector<12x12xf32>
    %cst_194 = arith.constant 0.000000e+00 : f32
    %1180 = vector.broadcast %cst_194 : f32 to vector<12x12xf32>
    %1181 = arith.cmpf ogt, %70, %1180 : vector<12x12xf32>
    %1182 = arith.select %1181, %1175, %1177 : vector<12x12xi1>, vector<12x12xf32>
    %1183 = arith.select %1179, %1175, %1182 : vector<12x12xi1>, vector<12x12xf32>
    %1184 = arith.select %1179, %1177, %1182 : vector<12x12xi1>, vector<12x12xf32>
    %1185 = arith.select %1179, %70, %1182 : vector<12x12xi1>, vector<12x12xf32>
    %c0_195 = arith.constant 0 : index
    %c0_196 = arith.constant 0 : index
    %c2_197 = arith.constant 2 : index
    %c0_198 = arith.constant 0 : index
    %c0_199 = arith.constant 0 : index
    %1186 = vector.load %arg6[%c0_195, %c0_196, %c2_197, %c0_198, %c0_199] : memref<4x1x6x12x12xf32, #tpu.memory_space<vmem>>, vector<1x1x1x12x12xf32>
    %1187 = vector.shape_cast %1186 : vector<1x1x1x12x12xf32> to vector<12x12xf32>
    %1188 = vector.shape_cast %1185 : vector<12x12xf32> to vector<1x1x1x12x12xf32>
    tpu.vector_store %arg6[%c0_195, %c0_196, %c2_197, %c0_198, %c0_199], %1188 {strides = array<i32>} : memref<4x1x6x12x12xf32, #tpu.memory_space<vmem>>, vector<1x1x1x12x12xf32>,
    %1189 = arith.select %1179, %1087, %1182 : vector<12x12xi1>, vector<12x12xf32>
    %c1_200 = arith.constant 1 : index
    %c0_201 = arith.constant 0 : index
    %c2_202 = arith.constant 2 : index
    %c0_203 = arith.constant 0 : index
    %c0_204 = arith.constant 0 : index
    %1190 = vector.load %arg6[%c1_200, %c0_201, %c2_202, %c0_203, %c0_204] : memref<4x1x6x12x12xf32, #tpu.memory_space<vmem>>, vector<1x1x1x12x12xf32>
    %1191 = vector.shape_cast %1190 : vector<1x1x1x12x12xf32> to vector<12x12xf32>
    %1192 = vector.shape_cast %1189 : vector<12x12xf32> to vector<1x1x1x12x12xf32>
    tpu.vector_store %arg6[%c1_200, %c0_201, %c2_202, %c0_203, %c0_204], %1192 {strides = array<i32>} : memref<4x1x6x12x12xf32, #tpu.memory_space<vmem>>, vector<1x1x1x12x12xf32>,
    %cst_205 = arith.constant 0.000000e+00 : f32
    %1193 = vector.broadcast %cst_205 : f32 to vector<12x12xf32>
    %1194 = arith.subf %1193, %70 : vector<12x12xf32>
    %1195 = arith.select %1179, %1194, %1182 : vector<12x12xi1>, vector<12x12xf32>
    %c2_206 = arith.constant 2 : index
    %c0_207 = arith.constant 0 : index
    %c2_208 = arith.constant 2 : index
    %c0_209 = arith.constant 0 : index
    %c0_210 = arith.constant 0 : index
    %1196 = vector.load %arg6[%c2_206, %c0_207, %c2_208, %c0_209, %c0_210] : memref<4x1x6x12x12xf32, #tpu.memory_space<vmem>>, vector<1x1x1x12x12xf32>
    %1197 = vector.shape_cast %1196 : vector<1x1x1x12x12xf32> to vector<12x12xf32>
    %1198 = vector.shape_cast %1195 : vector<12x12xf32> to vector<1x1x1x12x12xf32>
    tpu.vector_store %arg6[%c2_206, %c0_207, %c2_208, %c0_209, %c0_210], %1198 {strides = array<i32>} : memref<4x1x6x12x12xf32, #tpu.memory_space<vmem>>, vector<1x1x1x12x12xf32>,
    %cst_211 = arith.constant 0.000000e+00 : f32
    %1199 = vector.broadcast %cst_211 : f32 to vector<12x12xf32>
    %1200 = arith.subf %1199, %1087 : vector<12x12xf32>
    %1201 = arith.select %1179, %1200, %1182 : vector<12x12xi1>, vector<12x12xf32>
    %c3_212 = arith.constant 3 : index
    %c0_213 = arith.constant 0 : index
    %c2_214 = arith.constant 2 : index
    %c0_215 = arith.constant 0 : index
    %c0_216 = arith.constant 0 : index
    %1202 = vector.load %arg6[%c3_212, %c0_213, %c2_214, %c0_215, %c0_216] : memref<4x1x6x12x12xf32, #tpu.memory_space<vmem>>, vector<1x1x1x12x12xf32>
    %1203 = vector.shape_cast %1202 : vector<1x1x1x12x12xf32> to vector<12x12xf32>
    %1204 = vector.shape_cast %1201 : vector<12x12xf32> to vector<1x1x1x12x12xf32>
    tpu.vector_store %arg6[%c3_212, %c0_213, %c2_214, %c0_215, %c0_216], %1204 {strides = array<i32>} : memref<4x1x6x12x12xf32, #tpu.memory_space<vmem>>, vector<1x1x1x12x12xf32>,
    %c0_217 = arith.constant 0 : index
    %c0_218 = arith.constant 0 : index
    %c5_219 = arith.constant 5 : index
    %c0_220 = arith.constant 0 : index
    %c0_221 = arith.constant 0 : index
    %1205 = vector.load %arg6[%c0_217, %c0_218, %c5_219, %c0_220, %c0_221] : memref<4x1x6x12x12xf32, #tpu.memory_space<vmem>>, vector<1x1x1x12x12xf32>
    %1206 = vector.shape_cast %1205 : vector<1x1x1x12x12xf32> to vector<12x12xf32>
    %1207 = vector.shape_cast %1183 : vector<12x12xf32> to vector<1x1x1x12x12xf32>
    tpu.vector_store %arg6[%c0_217, %c0_218, %c5_219, %c0_220, %c0_221], %1207 {strides = array<i32>} : memref<4x1x6x12x12xf32, #tpu.memory_space<vmem>>, vector<1x1x1x12x12xf32>,
    %c2_222 = arith.constant 2 : index
    %c0_223 = arith.constant 0 : index
    %c5_224 = arith.constant 5 : index
    %c0_225 = arith.constant 0 : index
    %c0_226 = arith.constant 0 : index
    %1208 = vector.load %arg6[%c2_222, %c0_223, %c5_224, %c0_225, %c0_226] : memref<4x1x6x12x12xf32, #tpu.memory_space<vmem>>, vector<1x1x1x12x12xf32>
    %1209 = vector.shape_cast %1208 : vector<1x1x1x12x12xf32> to vector<12x12xf32>
    %1210 = vector.shape_cast %1183 : vector<12x12xf32> to vector<1x1x1x12x12xf32>
    tpu.vector_store %arg6[%c2_222, %c0_223, %c5_224, %c0_225, %c0_226], %1210 {strides = array<i32>} : memref<4x1x6x12x12xf32, #tpu.memory_space<vmem>>, vector<1x1x1x12x12xf32>,
    %c1_227 = arith.constant 1 : index
    %c0_228 = arith.constant 0 : index
    %c5_229 = arith.constant 5 : index
    %c0_230 = arith.constant 0 : index
    %c0_231 = arith.constant 0 : index
    %1211 = vector.load %arg6[%c1_227, %c0_228, %c5_229, %c0_230, %c0_231] : memref<4x1x6x12x12xf32, #tpu.memory_space<vmem>>, vector<1x1x1x12x12xf32>
    %1212 = vector.shape_cast %1211 : vector<1x1x1x12x12xf32> to vector<12x12xf32>
    %1213 = vector.shape_cast %1184 : vector<12x12xf32> to vector<1x1x1x12x12xf32>
    tpu.vector_store %arg6[%c1_227, %c0_228, %c5_229, %c0_230, %c0_231], %1213 {strides = array<i32>} : memref<4x1x6x12x12xf32, #tpu.memory_space<vmem>>, vector<1x1x1x12x12xf32>,
    %c3_232 = arith.constant 3 : index
    %c0_233 = arith.constant 0 : index
    %c5_234 = arith.constant 5 : index
    %c0_235 = arith.constant 0 : index
    %c0_236 = arith.constant 0 : index
    %1214 = vector.load %arg6[%c3_232, %c0_233, %c5_234, %c0_235, %c0_236] : memref<4x1x6x12x12xf32, #tpu.memory_space<vmem>>, vector<1x1x1x12x12xf32>
    %1215 = vector.shape_cast %1214 : vector<1x1x1x12x12xf32> to vector<12x12xf32>
    %1216 = vector.shape_cast %1184 : vector<12x12xf32> to vector<1x1x1x12x12xf32>
    tpu.vector_store %arg6[%c3_232, %c0_233, %c5_234, %c0_235, %c0_236], %1216 {strides = array<i32>} : memref<4x1x6x12x12xf32, #tpu.memory_space<vmem>>, vector<1x1x1x12x12xf32>,
    return
  }
  func.func @transform_0(%arg0: i32) -> i32 {
    %c0_i32 = arith.constant 0 : i32
    %c0_i32_0 = arith.constant 0 : i32
    return %c0_i32 : i32
  }
  func.func @transform_1(%arg0: i32) -> i32 {
    %c0_i32 = arith.constant 0 : i32
    %c0_i32_0 = arith.constant 0 : i32
    return %c0_i32 : i32
  }
  func.func @transform_2(%arg0: i32) -> i32 {
    %c0_i32 = arith.constant 0 : i32
    %c0_i32_0 = arith.constant 0 : i32
    return %c0_i32 : i32
  }
  func.func @transform_3(%arg0: i32) -> i32 {
    %c0_i32 = arith.constant 0 : i32
    %c0_i32_0 = arith.constant 0 : i32
    return %c0_i32 : i32
  }
  func.func @transform_4(%arg0: i32) -> (i32, i32, i32, i32) {
    %c0_i32 = arith.constant 0 : i32
    %c0_i32_0 = arith.constant 0 : i32
    %c0_i32_1 = arith.constant 0 : i32
    %c0_i32_2 = arith.constant 0 : i32
    return %arg0, %c0_i32, %c0_i32_0, %c0_i32_1 : i32, i32, i32, i32
  }
  func.func @transform_5(%arg0: i32) -> (i32, i32, i32, i32, i32) {
    %c0_i32 = arith.constant 0 : i32
    %c0_i32_0 = arith.constant 0 : i32
    %c0_i32_1 = arith.constant 0 : i32
    %c0_i32_2 = arith.constant 0 : i32
    %c0_i32_3 = arith.constant 0 : i32
    return %c0_i32, %arg0, %c0_i32_0, %c0_i32_1, %c0_i32_2 : i32, i32, i32, i32, i32
  }
}

</mosaic_0001>

<llo_original>
// kernel: tpu_custom_call.1
$region0: #{tpu_custom_call.1}
  #allocation0 [shape = 'u32[]', space=smem, size = 0x4, offset = 0x4, fixed_abs, tag = 'smem constant byte address 0x4 - core index']
  #allocation1 [shape = 'u32[144,128]{1,0:T(1,128)}', space=vmem, size = 0x12000, scoped, tag = 'internal scratch']
  #allocation2 [shape = 'f32[3,20,20]{2,1,0:T(8,128)}', space=vmem, size = 0x9000, scoped, tag = 'scratch operand']
  %s0 = inlined_call_operand.hbm [shape: f32[9], index: 0, kind: input, shape index: {}]
  %s1 = inlined_call_operand.vmem [shape: f32[3], index: 1, kind: input, shape index: {}]
  %s2 = inlined_call_operand.vmem [shape: f32[225], index: 2, kind: input, shape index: {}]
  %s3 = inlined_call_operand.vmem [shape: f32[3], index: 3, kind: input, shape index: {}]
  %s4 = inlined_call_operand.hbm [shape: f32[2,3,16,16], index: 4, kind: input, shape index: {}]
  %s5 = inlined_call_operand.vmem [shape: f32[4,2,6,12,12], index: 5, kind: output, shape index: {}]
  %s6 = sld [smem:[#allocation0]]
  $region107: #{tpu_custom_call.1} parent=0
    _
  %s8 = ssub.s32 1, %s6
  %s9 = scalar_select 0, %s8, %s6
  $region1: #{tpu_custom_call.1} parent=0
    #allocation3 [shape = 'u8[512]{0}', space=smem, size = 0x200, scoped, tag = 'input window, operand 0, single buffered']
    #allocation4 [shape = 's32[2]{0}', space=sflag, size = 0x8, scoped, tag = 'scoped memory for tpu_custom_call.1']
    #allocation5 [shape = 's32[2]{0}', space=sflag, size = 0x8, scoped, tag = 'scoped memory for tpu_custom_call.1']
    #allocation6 [shape = 's32[2]{0}', space=sflag, size = 0x8, scoped, tag = 'scoped memory for tpu_custom_call.1']
    #allocation7 [shape = 'u8[512]{0}', space=smem, size = 0x200, scoped, tag = 'input window, operand 1, single buffered']
    #allocation8 [shape = 'u8[1024]{0}', space=smem, size = 0x400, scoped, tag = 'input window, operand 2, single buffered']
    #allocation9 [shape = 's32[1]{0}', space=sflag, size = 0x4, scoped, tag = 'scoped memory for tpu_custom_call.1']
    #allocation10 [shape = 'u8[512]{0}', space=smem, size = 0x200, scoped, tag = 'input window, operand 3, single buffered']
    #allocation11 [shape = 'u8[49152]{0}', space=vmem, size = 0xc000, scoped, tag = 'input window, operand 4']
    #allocation12 [shape = 'u8[393216]{0}', space=vmem, size = 0x60000, scoped, tag = 'output window, operand 0']
    %10 = vsyncpa [#allocation5], 0
    %11 = vsyncpa [#allocation6], 0
    %12 = vsyncpa [#allocation9], 0
    %13 = vsyncpa [#allocation4], 0
    %s14 = scalar_lea.sflag [#allocation4], 1
    %15 = vsyncpa %s14, 0
    loop: start=0, step=1, limit=4
    $region2: #{tpu_custom_call.1} parent=1 // loop_pre_header
      _
    $region3: #{tpu_custom_call.1} parent=1 // loop_header
      %s17 = sphi 0, %s21
      %p18 = scmp.ge.s32.totalorder %s17, 4
      %s25 = sphi 0, %s25
      %s27 = sphi 0, %s25
      %s28 = sphi 0, %s27
      %s42 = sphi 0, %s28
      %s46 = sphi 0, %s46
      %s48 = sphi 0, %s46
      %s49 = sphi 0, %s48
      %s63 = sphi 0, %s49
      %s67 = sphi 0, %s67
      %s69 = sphi 0, %s67
      %s70 = sphi 0, %s69
      %s84 = sphi 0, %s70
      %s88 = sphi 0, %s88
      %s90 = sphi 0, %s88
      %s91 = sphi 0, %s90
      %s105 = sphi 0, %s91
      %s111 = sphi 0, %s113
      %s114 = sphi 0, %s111
      %s115 = sphi 0, %s114
      %s131 = sphi 0, %s115
      %s137 = sphi 0, %s139
      %s140 = sphi 0, %s137
      %s141 = sphi 0, %s140
      %s157 = sphi 0, %s141
    $region4: #{tpu_custom_call.1} parent=1 // loop_header_branch
      %20 = sbr.rel (%p18) target = $region8
    $region5: #{tpu_custom_call.1} parent=1 // loop_body
      %s22 = ssub.s32 %s17, 1
      %s23 = ssub.s32 %s17, 2
      %s24 = sadd.s32 %s17, 1
      %s26 = sadd.s32 %s25, 1
      %p29 = scmp.eq.s32.totalorder %s17, 1
      %p30 = scmp.ne.s32.totalorder %s25, %s27
      %p31 = scmp.eq.s32.totalorder %s17, 0
      %p32 = por %p30, %p31
      %p33 = scmp.ne.s32.totalorder %s25, %s27
      %p34 = scmp.eq.s32.totalorder %s22, 1
      %p35 = por %p33, %p34
      %p36 = scmp.ne.s32.totalorder %s27, %s28
      %p37 = scmp.eq.s32.totalorder %s22, 0
      %p38 = por %p36, %p37
      %p39 = scmp.ne.s32.totalorder %s27, %s28
      %p40 = scmp.eq.s32.totalorder %s23, 1
      %p41 = por %p39, %p40
      %p43 = scmp.ne.s32.totalorder %s28, %s42
      %p44 = scmp.eq.s32.totalorder %s23, 0
      %p45 = por %p43, %p44
      %s47 = sadd.s32 %s46, 1
      %p50 = scmp.eq.s32.totalorder %s17, 1
      %p51 = scmp.ne.s32.totalorder %s46, %s48
      %p52 = scmp.eq.s32.totalorder %s17, 0
      %p53 = por %p51, %p52
      %p54 = scmp.ne.s32.totalorder %s46, %s48
      %p55 = scmp.eq.s32.totalorder %s22, 1
      %p56 = por %p54, %p55
      %p57 = scmp.ne.s32.totalorder %s48, %s49
      %p58 = scmp.eq.s32.totalorder %s22, 0
      %p59 = por %p57, %p58
      %p60 = scmp.ne.s32.totalorder %s48, %s49
      %p61 = scmp.eq.s32.totalorder %s23, 1
      %p62 = por %p60, %p61
      %p64 = scmp.ne.s32.totalorder %s49, %s63
      %p65 = scmp.eq.s32.totalorder %s23, 0
      %p66 = por %p64, %p65
      %s68 = sadd.s32 %s67, 1
      %p71 = scmp.eq.s32.totalorder %s17, 1
      %p72 = scmp.ne.s32.totalorder %s67, %s69
      %p73 = scmp.eq.s32.totalorder %s17, 0
      %p74 = por %p72, %p73
      %p75 = scmp.ne.s32.totalorder %s67, %s69
      %p76 = scmp.eq.s32.totalorder %s22, 1
      %p77 = por %p75, %p76
      %p78 = scmp.ne.s32.totalorder %s69, %s70
      %p79 = scmp.eq.s32.totalorder %s22, 0
      %p80 = por %p78, %p79
      %p81 = scmp.ne.s32.totalorder %s69, %s70
      %p82 = scmp.eq.s32.totalorder %s23, 1
      %p83 = por %p81, %p82
      %p85 = scmp.ne.s32.totalorder %s70, %s84
      %p86 = scmp.eq.s32.totalorder %s23, 0
      %p87 = por %p85, %p86
      %s89 = sadd.s32 %s88, 1
      %p92 = scmp.eq.s32.totalorder %s17, 1
      %p93 = scmp.ne.s32.totalorder %s88, %s90
      %p94 = scmp.eq.s32.totalorder %s17, 0
      %p95 = por %p93, %p94
      %p96 = scmp.ne.s32.totalorder %s88, %s90
      %p97 = scmp.eq.s32.totalorder %s22, 1
      %p98 = por %p96, %p97
      %p99 = scmp.ne.s32.totalorder %s90, %s91
      %p100 = scmp.eq.s32.totalorder %s22, 0
      %p101 = por %p99, %p100
      %p102 = scmp.ne.s32.totalorder %s90, %s91
      %p103 = scmp.eq.s32.totalorder %s23, 1
      %p104 = por %p102, %p103
      %p106 = scmp.ne.s32.totalorder %s91, %s105
      %p107 = scmp.eq.s32.totalorder %s23, 0
      %p108 = por %p106, %p107
      %s109 = ssub.s32 %s17, %s24
      %p110 = scmp.eq.s32.totalorder %s109, 0
      %s112 = sadd.s32 %s111, 1
      %s113 = scalar_select %p110, %s111, %s112
      %p116 = pneg %p110
      %p117 = scmp.eq.s32.totalorder %s17, 1
      %p118 = por %p116, %p117
      %p119 = scmp.ne.s32.totalorder %s111, %s114
      %p120 = scmp.eq.s32.totalorder %s17, 0
      %p121 = por %p119, %p120
      %p122 = scmp.ne.s32.totalorder %s111, %s114
      %p123 = scmp.eq.s32.totalorder %s22, 1
      %p124 = por %p122, %p123
      %p125 = scmp.ne.s32.totalorder %s114, %s115
      %p126 = scmp.eq.s32.totalorder %s22, 0
      %p127 = por %p125, %p126
      %p128 = scmp.ne.s32.totalorder %s114, %s115
      %p129 = scmp.eq.s32.totalorder %s23, 1
      %p130 = por %p128, %p129
      %p132 = scmp.ne.s32.totalorder %s115, %s131
      %p133 = scmp.eq.s32.totalorder %s23, 0
      %p134 = por %p132, %p133
      %s135 = ssub.s32 %s17, %s24
      %p136 = scmp.eq.s32.totalorder %s135, 0
      %s138 = sadd.s32 %s137, 1
      %s139 = scalar_select %p136, %s137, %s138
      %p142 = pneg %p136
      %p143 = scmp.eq.s32.totalorder %s17, 1
      %p144 = por %p142, %p143
      %p145 = scmp.ne.s32.totalorder %s137, %s140
      %p146 = scmp.eq.s32.totalorder %s17, 0
      %p147 = por %p145, %p146
      %p148 = scmp.ne.s32.totalorder %s137, %s140
      %p149 = scmp.eq.s32.totalorder %s22, 1
      %p150 = por %p148, %p149
      %p151 = scmp.ne.s32.totalorder %s140, %s141
      %p152 = scmp.eq.s32.totalorder %s22, 0
      %p153 = por %p151, %p152
      %p154 = scmp.ne.s32.totalorder %s140, %s141
      %p155 = scmp.eq.s32.totalorder %s23, 1
      %p156 = por %p154, %p155
      %p158 = scmp.ne.s32.totalorder %s141, %s157
      %p159 = scmp.eq.s32.totalorder %s23, 0
      %p160 = por %p158, %p159
      %p161 = scmp.le.s32.totalorder 1, %s17
      %p162 = scmp.lt.s32.totalorder %s17, 3
      %p163 = pnand %p161, %p162
      %p164 = pneg %p163
      // Predicated region
      $region9: #{tpu_custom_call.1} parent=5 // pred_check
        _
      $region10: #{tpu_custom_call.1} parent=5 // pred_check_branch
        %166 = sbr.rel (%p163) target = $region12
      $region11: #{tpu_custom_call.1} parent=5 // pred_region
        %s167 = ssub.s32 %s17, 1
        // Predicated region
        $region13: #{tpu_custom_call.1} parent=11 // pred_check
          %p168 = pneg %p38
        $region14: #{tpu_custom_call.1} parent=11 // pred_check_branch
          %170 = sbr.rel (%p168) target = $region16
        $region15: #{tpu_custom_call.1} parent=11 // pred_region
          %s172 = ssub.s32 16, 16
          %173 = vsyncadd [#allocation5], %s172
          %176 = dma.hbm_to_smem %s0, 16, [#allocation3], [#allocation5]
        $region16: #{tpu_custom_call.1} parent=11 // pred_fallthru
          _
        // Predicated region
        $region17: #{tpu_custom_call.1} parent=11 // pred_check
          %p177 = pneg %p59
        $region18: #{tpu_custom_call.1} parent=11 // pred_check_branch
          %179 = sbr.rel (%p177) target = $region20
        $region19: #{tpu_custom_call.1} parent=11 // pred_region
          %s181 = ssub.s32 16, 16
          %182 = vsyncadd [#allocation6], %s181
          %s184 = sshll.u32 %s1, 4
          %s185 = int_to_ptr.vmem [resolvable:$true] %s184
          %187 = dma.vmem_to_smem %s185, 16, [#allocation7], [#allocation6]
        $region20: #{tpu_custom_call.1} parent=11 // pred_fallthru
          _
        // Predicated region
        $region21: #{tpu_custom_call.1} parent=11 // pred_check
          %p188 = pneg %p80
        $region22: #{tpu_custom_call.1} parent=11 // pred_check_branch
          %190 = sbr.rel (%p188) target = $region24
        $region23: #{tpu_custom_call.1} parent=11 // pred_region
          %s192 = ssub.s32 32, 32
          %193 = vsyncadd [#allocation9], %s192
          %s195 = sshll.u32 %s2, 4
          %s196 = int_to_ptr.vmem [resolvable:$true] %s195
          %198 = dma.vmem_to_smem %s196, 32, [#allocation8], [#allocation9]
        $region24: #{tpu_custom_call.1} parent=11 // pred_fallthru
          _
        // Predicated region
        $region25: #{tpu_custom_call.1} parent=11 // pred_check
          %p199 = pneg %p101
        $region26: #{tpu_custom_call.1} parent=11 // pred_check_branch
          %201 = sbr.rel (%p199) target = $region28
        $region27: #{tpu_custom_call.1} parent=11 // pred_region
          %s203 = ssub.s32 16, 16
          %204 = vsyncadd [#allocation9], %s203
          %s206 = sshll.u32 %s3, 4
          %s207 = int_to_ptr.vmem [resolvable:$true] %s206
          %209 = dma.vmem_to_smem %s207, 16, [#allocation10], [#allocation9]
        $region28: #{tpu_custom_call.1} parent=11 // pred_fallthru
          _
      $region12: #{tpu_custom_call.1} parent=5 // pred_fallthru
        _
      %p210 = scmp.lt.s32.totalorder %s17, 2
      // Predicated region
      $region29: #{tpu_custom_call.1} parent=5 // pred_check
        %p211 = pneg %p210
      $region30: #{tpu_custom_call.1} parent=5 // pred_check_branch
        %213 = sbr.rel (%p211) target = $region32
      $region31: #{tpu_custom_call.1} parent=5 // pred_region
        // Predicated region
        $region33: #{tpu_custom_call.1} parent=31 // pred_check
          %p214 = pneg %p121
        $region34: #{tpu_custom_call.1} parent=31 // pred_check_branch
          %216 = sbr.rel (%p214) target = $region36
        $region35: #{tpu_custom_call.1} parent=31 // pred_region
          %s217 = sand.u32 %s111, 1
          %s218 = scalar_lea.sflag [#allocation4], %s217
          %s219 = sand.u32 %s111, 1
          %s220 = smul.addr %s219, 48
          %s221 = scalar_lea.vmem [#allocation11], %s220
          %s223 = ssub.s32 768, 768
          %224 = vsyncadd %s218, %s223
          %s225 = smul.addr %s17, 6
          %s226 = smul.addr %s225, 128
          %s227 = scalar_lea.hbm %s4, %s226
          %s228 = sshll.u32 %s221, 4
          %s229 = int_to_ptr.vmem [resolvable:$true] %s228
          %234 = dma.hbm_to_vmem [thread:$0]  %s227, 768, %s229, %s218, 128, 128, 8
        $region36: #{tpu_custom_call.1} parent=31 // pred_fallthru
          _
      $region32: #{tpu_custom_call.1} parent=5 // pred_fallthru
        _
      %p235 = scmp.le.s32.totalorder 1, %s17
      %p236 = scmp.lt.s32.totalorder %s17, 3
      %p237 = pnand %p235, %p236
      %p238 = pneg %p237
      // Predicated region
      $region37: #{tpu_custom_call.1} parent=5 // pred_check
        _
      $region38: #{tpu_custom_call.1} parent=5 // pred_check_branch
        %240 = sbr.rel (%p237) target = $region40
      $region39: #{tpu_custom_call.1} parent=5 // pred_region
        %s241 = ssub.s32 %s17, 1
        // Predicated region
        $region41: #{tpu_custom_call.1} parent=39 // pred_check
          %p242 = pneg %p38
        $region42: #{tpu_custom_call.1} parent=39 // pred_check_branch
          %244 = sbr.rel (%p242) target = $region44
        $region43: #{tpu_custom_call.1} parent=39 // pred_region
          %245 = dma.done [#allocation5], 16
        $region44: #{tpu_custom_call.1} parent=39 // pred_fallthru
          _
        // Predicated region
        $region45: #{tpu_custom_call.1} parent=39 // pred_check
          %p246 = pneg %p59
        $region46: #{tpu_custom_call.1} parent=39 // pred_check_branch
          %248 = sbr.rel (%p246) target = $region48
        $region47: #{tpu_custom_call.1} parent=39 // pred_region
          %249 = dma.done [#allocation6], 16
        $region48: #{tpu_custom_call.1} parent=39 // pred_fallthru
          _
        // Predicated region
        $region49: #{tpu_custom_call.1} parent=39 // pred_check
          %p250 = pneg %p80
        $region50: #{tpu_custom_call.1} parent=39 // pred_check_branch
          %252 = sbr.rel (%p250) target = $region52
        $region51: #{tpu_custom_call.1} parent=39 // pred_region
          %253 = dma.done [#allocation9], 32
        $region52: #{tpu_custom_call.1} parent=39 // pred_fallthru
          _
        // Predicated region
        $region53: #{tpu_custom_call.1} parent=39 // pred_check
          %p254 = pneg %p101
        $region54: #{tpu_custom_call.1} parent=39 // pred_check_branch
          %256 = sbr.rel (%p254) target = $region56
        $region55: #{tpu_custom_call.1} parent=39 // pred_region
          %257 = dma.done [#allocation9], 16
        $region56: #{tpu_custom_call.1} parent=39 // pred_fallthru
          _
        %s258 = sand.u32 %s114, 1
        %s259 = scalar_lea.sflag [#allocation4], %s258
        %s260 = sand.u32 %s114, 1
        %s261 = smul.addr %s260, 48
        %s262 = scalar_lea.vmem [#allocation11], %s261
        // Predicated region
        $region57: #{tpu_custom_call.1} parent=39 // pred_check
          %p263 = pneg %p127
        $region58: #{tpu_custom_call.1} parent=39 // pred_check_branch
          %265 = sbr.rel (%p263) target = $region60
        $region59: #{tpu_custom_call.1} parent=39 // pred_region
          %266 = dma.done %s259, 768
        $region60: #{tpu_custom_call.1} parent=39 // pred_fallthru
          _
        %267 = sfence
        %p268 = pneg %p38
        %p269 = pneg %p35
        %p270 = pneg %p59
        %p271 = pneg %p56
        %p272 = pneg %p80
        %p273 = pneg %p77
        %p274 = pneg %p101
        %p275 = pneg %p98
        %s276 = sand.u32 %s114, 1
        %s277 = scalar_lea.sflag [#allocation4], %s276
        %s278 = sand.u32 %s114, 1
        %s279 = smul.addr %s278, 48
        %s280 = scalar_lea.vmem [#allocation11], %s279
        %p281 = pneg %p127
        %p282 = pneg %p124
        %p283 = pneg %p153
        %p284 = pneg %p150
        %s285 = sand.u32 %s140, 1
        %s286 = sand.u32 %s140, 1
        %s287 = smul.addr %s286, 384
        %s288 = scalar_lea.vmem [#allocation12], %s287
        %vm289 = vcmask 162816
        %290 = vst.msk [vmem:[#allocation2] sm:$0xff] %vm289, 0.0
        %291 = vst.msk [vmem:[#allocation2 + $0x8] sm:$0xff] %vm289, 0.0
        %vm292 = vcmask 158720
        %293 = vst.msk [vmem:[#allocation2 + $0x10] sm:$0xf] %vm292, 0.0
        %294 = vst.msk [vmem:[#allocation2 + $0x18] sm:$0xff] %vm289, 0.0
        %295 = vst.msk [vmem:[#allocation2 + $0x20] sm:$0xff] %vm289, 0.0
        %296 = vst.msk [vmem:[#allocation2 + $0x28] sm:$0xf] %vm292, 0.0
        %297 = vst.msk [vmem:[#allocation2 + $0x30] sm:$0xff] %vm289, 0.0
        %298 = vst.msk [vmem:[#allocation2 + $0x38] sm:$0xff] %vm289, 0.0
        %299 = vst.msk [vmem:[#allocation2 + $0x40] sm:$0xf] %vm292, 0.0
        %v300 = vld [vmem:[%s262] sm:$0xff]
        %v301 = vld [vmem:[%s262 + $0x8] sm:$0xff]
        %304 = vrot.lane.b32.xlu0 %v300, 2
        %v305 = vpop.permute.xlu0 %304
        %306 = vrot.lane.b32.xlu0 %v301, 2
        %v307 = vpop.permute.xlu0 %306
        %vm310 = vcmask 146448
        %311 = vst.msk [vmem:[#allocation2 + $0x2] sm:$0xff] %vm310, %v305
        %312 = vst.msk [vmem:[#allocation2 + $0xa] sm:$0xff] %vm310, %v307
        %s313 = scalar_lea.vmem %s262, 16 [#allocation11]
        %v314 = vld [vmem:[%s313] sm:$0xff]
        %v315 = vld [vmem:[%s313 + $0x8] sm:$0xff]
        %318 = vrot.lane.b32.xlu0 %v314, 2
        %v319 = vpop.permute.xlu0 %318
        %320 = vrot.lane.b32.xlu0 %v315, 2
        %v321 = vpop.permute.xlu0 %320
        %s324 = scalar_lea.vmem [#allocation2], 24
        %325 = vst.msk [vmem:[%s324 + $0x2] sm:$0xff] %vm310, %v319
        %326 = vst.msk [vmem:[%s324 + $0xa] sm:$0xff] %vm310, %v321
        %s327 = scalar_lea.vmem %s262, 32 [#allocation11]
        %v328 = vld [vmem:[%s327] sm:$0xff]
        %v329 = vld [vmem:[%s327 + $0x8] sm:$0xff]
        %332 = vrot.lane.b32.xlu0 %v328, 2
        %v333 = vpop.permute.xlu0 %332
        %334 = vrot.lane.b32.xlu0 %v329, 2
        %v335 = vpop.permute.xlu0 %334
        %s338 = scalar_lea.vmem [#allocation2], 48
        %339 = vst.msk [vmem:[%s338 + $0x2] sm:$0xff] %vm310, %v333
        %340 = vst.msk [vmem:[%s338 + $0xa] sm:$0xff] %vm310, %v335
        %v341 = vld [vmem:[#allocation2 + $0x4] sm:$0xff]
        %v342 = vld [vmem:[#allocation2 + $0xc] sm:$0xf]
        %v343 = vld [vmem:[%s324 + $0x4] sm:$0xff]
        %v344 = vld [vmem:[%s324 + $0xc] sm:$0xf]
        %v345 = vld [vmem:[%s338 + $0x4] sm:$0xff]
        %v346 = vld [vmem:[%s338 + $0xc] sm:$0xf]
        %s347 = sld [smem:[#allocation7]]
        %v348 = vstv %s347
        %v349 = vadd.f32 %v348, 0.0
        %s350 = sld [smem:[#allocation3]]
        %v351 = vstv %s350
        %v352 = vmul.f32 %v351, %v341
        %v353 = vmul.f32 %v351, %v342
        %v354 = vadd.f32 %v349, %v352
        %v355 = vadd.f32 %v349, %v353
        %s356 = sld [smem:[#allocation3 + $0x1]]
        %v357 = vstv %s356
        %v358 = vmul.f32 %v357, %v343
        %v359 = vmul.f32 %v357, %v344
        %v360 = vadd.f32 %v354, %v358
        %v361 = vadd.f32 %v355, %v359
        %s362 = sld [smem:[#allocation3 + $0x2]]
        %v363 = vstv %s362
        %v364 = vmul.f32 %v363, %v345
        %v365 = vmul.f32 %v363, %v346
        %v366 = vadd.f32 %v360, %v364
        %v367 = vadd.f32 %v361, %v365
        %s368 = sld [smem:[#allocation7 + $0x1]]
        %v369 = vstv %s368
        %v370 = vadd.f32 %v369, 0.0
        %s371 = sld [smem:[#allocation3 + $0x3]]
        %v372 = vstv %s371
        %v373 = vmul.f32 %v372, %v341
        %v374 = vmul.f32 %v372, %v342
        %v375 = vadd.f32 %v370, %v373
        %v376 = vadd.f32 %v370, %v374
        %s377 = sld [smem:[#allocation3 + $0x4]]
        %v378 = vstv %s377
        %v379 = vmul.f32 %v378, %v343
        %v380 = vmul.f32 %v378, %v344
        %v381 = vadd.f32 %v375, %v379
        %v382 = vadd.f32 %v376, %v380
        %s383 = sld [smem:[#allocation3 + $0x5]]
        %v384 = vstv %s383
        %v385 = vmul.f32 %v384, %v345
        %v386 = vmul.f32 %v384, %v346
        %v387 = vadd.f32 %v381, %v385
        %v388 = vadd.f32 %v382, %v386
        %s389 = sld [smem:[#allocation7 + $0x2]]
        %v390 = vstv %s389
        %v391 = vadd.f32 %v390, 0.0
        %s392 = sld [smem:[#allocation3 + $0x6]]
        %v393 = vstv %s392
        %v394 = vmul.f32 %v393, %v341
        %v395 = vmul.f32 %v393, %v342
        %v396 = vadd.f32 %v391, %v394
        %v397 = vadd.f32 %v391, %v395
        %s398 = sld [smem:[#allocation3 + $0x7]]
        %v399 = vstv %s398
        %v400 = vmul.f32 %v399, %v343
        %v401 = vmul.f32 %v399, %v344
        %v402 = vadd.f32 %v396, %v400
        %v403 = vadd.f32 %v397, %v401
        %s404 = sld [smem:[#allocation3 + $0x8]]
        %v405 = vstv %s404
        %v406 = vmul.f32 %v405, %v345
        %v407 = vmul.f32 %v405, %v346
        %v408 = vadd.f32 %v402, %v406
        %v409 = vadd.f32 %v403, %v407
        %s410 = sld [smem:[#allocation10]]
        %v411 = vstv %s410
        %v412 = vadd.f32 %v411, 0.0
        %s413 = sld [smem:[#allocation10 + $0x1]]
        %v414 = vstv %s413
        %v415 = vadd.f32 %v414, 0.0
        %s416 = sld [smem:[#allocation10 + $0x2]]
        %v417 = vstv %s416
        %v418 = vadd.f32 %v417, 0.0
        %v419 = vld [vmem:[#allocation2] sm:$0xff]
        %v420 = vld [vmem:[#allocation2 + $0x8] sm:$0xff]
        %v421 = vld [vmem:[#allocation2 + $0x10] sm:$0xf]
        %s422 = sld [smem:[#allocation8]]
        %v423 = vstv %s422
        %v424 = vmul.f32 %v423, %v419
        %v425 = vmul.f32 %v423, %v420
        %v426 = vadd.f32 %v412, %v424
        %v427 = vadd.f32 %v412, %v425
        %s428 = sld [smem:[#allocation8 + $0x4b]]
        %v429 = vstv %s428
        %v430 = vmul.f32 %v429, %v419
        %v431 = vmul.f32 %v429, %v420
        %v432 = vadd.f32 %v415, %v430
        %v433 = vadd.f32 %v415, %v431
        %s434 = sld [smem:[#allocation8 + $0x96]]
        %v435 = vstv %s434
        %v436 = vmul.f32 %v435, %v419
        %v437 = vmul.f32 %v435, %v420
        %v438 = vadd.f32 %v418, %v436
        %v439 = vadd.f32 %v418, %v437
        %s440 = sld [smem:[#allocation8 + $0x5]]
        %v441 = vstv %s440
        %v442 = vmul.f32 %v441, %v419
        %v443 = vmul.f32 %v441, %v420
        %vm446 = vcmask 1045504
        %v447 = vrot.slane %v442, 2
        %v448 = vrot.slane %v443, 2
        %v449 = vsel %vm446, %v447, %v448
        %v452 = vadd.f32 %v426, %v449
        %v453 = vadd.f32 %v427, %v448
        %s454 = sld [smem:[#allocation8 + $0x50]]
        %v455 = vstv %s454
        %v456 = vmul.f32 %v455, %v419
        %v457 = vmul.f32 %v455, %v420
        %v460 = vrot.slane %v456, 2
        %v461 = vrot.slane %v457, 2
        %v462 = vsel %vm446, %v460, %v461
        %v465 = vadd.f32 %v432, %v462
        %v466 = vadd.f32 %v433, %v461
        %s467 = sld [smem:[#allocation8 + $0x9b]]
        %v468 = vstv %s467
        %v469 = vmul.f32 %v468, %v419
        %v470 = vmul.f32 %v468, %v420
        %v473 = vrot.slane %v469, 2
        %v474 = vrot.slane %v470, 2
        %v475 = vsel %vm446, %v473, %v474
        %v478 = vadd.f32 %v438, %v475
        %v479 = vadd.f32 %v439, %v474
        %s480 = sld [smem:[#allocation8 + $0xa]]
        %v481 = vstv %s480
        %v482 = vmul.f32 %v481, %v419
        %v483 = vmul.f32 %v481, %v420
        %vm486 = vcmask 1043456
        %v487 = vrot.slane %v482, 4
        %v488 = vrot.slane %v483, 4
        %v489 = vsel %vm486, %v487, %v488
        %v492 = vadd.f32 %v452, %v489
        %v493 = vadd.f32 %v453, %v488
        %s494 = sld [smem:[#allocation8 + $0x55]]
        %v495 = vstv %s494
        %v496 = vmul.f32 %v495, %v419
        %v497 = vmul.f32 %v495, %v420
        %v500 = vrot.slane %v496, 4
        %v501 = vrot.slane %v497, 4
        %v502 = vsel %vm486, %v500, %v501
        %v505 = vadd.f32 %v465, %v502
        %v506 = vadd.f32 %v466, %v501
        %s507 = sld [smem:[#allocation8 + $0xa0]]
        %v508 = vstv %s507
        %v509 = vmul.f32 %v508, %v419
        %v510 = vmul.f32 %v508, %v420
        %v513 = vrot.slane %v509, 4
        %v514 = vrot.slane %v510, 4
        %v515 = vsel %vm486, %v513, %v514
        %v518 = vadd.f32 %v478, %v515
        %v519 = vadd.f32 %v479, %v514
        %s520 = sld [smem:[#allocation8 + $0xf]]
        %v521 = vstv %s520
        %v522 = vmul.f32 %v521, %v419
        %v523 = vmul.f32 %v521, %v420
        %v524 = vmul.f32 %v521, %v421
        %vm528 = vcmask 1041408
        %v529 = vrot.slane %v522, 6
        %v530 = vrot.slane %v523, 6
        %v531 = vsel %vm528, %v529, %v530
        %v532 = vrot.slane %v524, 6
        %v533 = vsel %vm528, %v530, %v532
        %v536 = vadd.f32 %v492, %v531
        %v537 = vadd.f32 %v493, %v533
        %s538 = sld [smem:[#allocation8 + $0x5a]]
        %v539 = vstv %s538
        %v540 = vmul.f32 %v539, %v419
        %v541 = vmul.f32 %v539, %v420
        %v542 = vmul.f32 %v539, %v421
        %v546 = vrot.slane %v540, 6
        %v547 = vrot.slane %v541, 6
        %v548 = vsel %vm528, %v546, %v547
        %v549 = vrot.slane %v542, 6
        %v550 = vsel %vm528, %v547, %v549
        %v553 = vadd.f32 %v505, %v548
        %v554 = vadd.f32 %v506, %v550
        %s555 = sld [smem:[#allocation8 + $0xa5]]
        %v556 = vstv %s555
        %v557 = vmul.f32 %v556, %v419
        %v558 = vmul.f32 %v556, %v420
        %v559 = vmul.f32 %v556, %v421
        %v563 = vrot.slane %v557, 6
        %v564 = vrot.slane %v558, 6
        %v565 = vsel %vm528, %v563, %v564
        %v566 = vrot.slane %v559, 6
        %v567 = vsel %vm528, %v564, %v566
        %v570 = vadd.f32 %v518, %v565
        %v571 = vadd.f32 %v519, %v567
        %s572 = sld [smem:[#allocation8 + $0x14]]
        %v573 = vstv %s572
        %v574 = vmul.f32 %v573, %v420
        %v575 = vmul.f32 %v573, %v421
        %v576 = vadd.f32 %v536, %v574
        %v577 = vadd.f32 %v537, %v575
        %s578 = sld [smem:[#allocation8 + $0x5f]]
        %v579 = vstv %s578
        %v580 = vmul.f32 %v579, %v420
        %v581 = vmul.f32 %v579, %v421
        %v582 = vadd.f32 %v553, %v580
        %v583 = vadd.f32 %v554, %v581
        %s584 = sld [smem:[#allocation8 + $0xaa]]
        %v585 = vstv %s584
        %v586 = vmul.f32 %v585, %v420
        %v587 = vmul.f32 %v585, %v421
        %v588 = vadd.f32 %v570, %v586
        %v589 = vadd.f32 %v571, %v587
        %s590 = sld [smem:[#allocation8 + $0x1]]
        %v591 = vstv %s590
        %v592 = vmul.f32 %v591, %v419
        %v593 = vmul.f32 %v591, %v420
        %596 = vrot.lane.b32.xlu0 %v592, 126
        %v597 = vpop.permute.xlu0 %596
        %598 = vrot.lane.b32.xlu0 %v593, 126
        %v599 = vpop.permute.xlu0 %598
        %v602 = vadd.f32 %v576, %v597
        %v603 = vadd.f32 %v577, %v599
        %s604 = sld [smem:[#allocation8 + $0x4c]]
        %v605 = vstv %s604
        %v606 = vmul.f32 %v605, %v419
        %v607 = vmul.f32 %v605, %v420
        %610 = vrot.lane.b32.xlu0 %v606, 126
        %v611 = vpop.permute.xlu0 %610
        %612 = vrot.lane.b32.xlu0 %v607, 126
        %v613 = vpop.permute.xlu0 %612
        %v616 = vadd.f32 %v582, %v611
        %v617 = vadd.f32 %v583, %v613
        %s618 = sld [smem:[#allocation8 + $0x97]]
        %v619 = vstv %s618
        %v620 = vmul.f32 %v619, %v419
        %v621 = vmul.f32 %v619, %v420
        %624 = vrot.lane.b32.xlu0 %v620, 126
        %v625 = vpop.permute.xlu0 %624
        %626 = vrot.lane.b32.xlu0 %v621, 126
        %v627 = vpop.permute.xlu0 %626
        %v630 = vadd.f32 %v588, %v625
        %v631 = vadd.f32 %v589, %v627
        %s632 = sld [smem:[#allocation8 + $0x6]]
        %v633 = vstv %s632
        %v634 = vmul.f32 %v633, %v419
        %v635 = vmul.f32 %v633, %v420
        %v638 = vrot.slane %v634, 2
        %v639 = vrot.slane %v635, 2
        %v640 = vsel %vm446, %v638, %v639
        %641 = vrot.lane.b32.xlu0 %v640, 126
        %v642 = vpop.permute.xlu0 %641
        %643 = vrot.lane.b32.xlu0 %v639, 126
        %v644 = vpop.permute.xlu0 %643
        %v647 = vadd.f32 %v602, %v642
        %v648 = vadd.f32 %v603, %v644
        %s649 = sld [smem:[#allocation8 + $0x51]]
        %v650 = vstv %s649
        %v651 = vmul.f32 %v650, %v419
        %v652 = vmul.f32 %v650, %v420
        %v655 = vrot.slane %v651, 2
        %v656 = vrot.slane %v652, 2
        %v657 = vsel %vm446, %v655, %v656
        %658 = vrot.lane.b32.xlu0 %v657, 126
        %v659 = vpop.permute.xlu0 %658
        %660 = vrot.lane.b32.xlu0 %v656, 126
        %v661 = vpop.permute.xlu0 %660
        %v664 = vadd.f32 %v616, %v659
        %v665 = vadd.f32 %v617, %v661
        %s666 = sld [smem:[#allocation8 + $0x9c]]
        %v667 = vstv %s666
        %v668 = vmul.f32 %v667, %v419
        %v669 = vmul.f32 %v667, %v420
        %v672 = vrot.slane %v668, 2
        %v673 = vrot.slane %v669, 2
        %v674 = vsel %vm446, %v672, %v673
        %675 = vrot.lane.b32.xlu0 %v674, 126
        %v676 = vpop.permute.xlu0 %675
        %677 = vrot.lane.b32.xlu0 %v673, 126
        %v678 = vpop.permute.xlu0 %677
        %v681 = vadd.f32 %v630, %v676
        %v682 = vadd.f32 %v631, %v678
        %s683 = sld [smem:[#allocation8 + $0xb]]
        %v684 = vstv %s683
        %v685 = vmul.f32 %v684, %v419
        %v686 = vmul.f32 %v684, %v420
        %v689 = vrot.slane %v685, 4
        %v690 = vrot.slane %v686, 4
        %v691 = vsel %vm486, %v689, %v690
        %692 = vrot.lane.b32.xlu0 %v691, 126
        %v693 = vpop.permute.xlu0 %692
        %694 = vrot.lane.b32.xlu0 %v690, 126
        %v695 = vpop.permute.xlu0 %694
        %v698 = vadd.f32 %v647, %v693
        %v699 = vadd.f32 %v648, %v695
        %s700 = sld [smem:[#allocation8 + $0x56]]
        %v701 = vstv %s700
        %v702 = vmul.f32 %v701, %v419
        %v703 = vmul.f32 %v701, %v420
        %v706 = vrot.slane %v702, 4
        %v707 = vrot.slane %v703, 4
        %v708 = vsel %vm486, %v706, %v707
        %709 = vrot.lane.b32.xlu0 %v708, 126
        %v710 = vpop.permute.xlu0 %709
        %711 = vrot.lane.b32.xlu0 %v707, 126
        %v712 = vpop.permute.xlu0 %711
        %v715 = vadd.f32 %v664, %v710
        %v716 = vadd.f32 %v665, %v712
        %s717 = sld [smem:[#allocation8 + $0xa1]]
        %v718 = vstv %s717
        %v719 = vmul.f32 %v718, %v419
        %v720 = vmul.f32 %v718, %v420
        %v723 = vrot.slane %v719, 4
        %v724 = vrot.slane %v720, 4
        %v725 = vsel %vm486, %v723, %v724
        %726 = vrot.lane.b32.xlu0 %v725, 126
        %v727 = vpop.permute.xlu0 %726
        %728 = vrot.lane.b32.xlu0 %v724, 126
        %v729 = vpop.permute.xlu0 %728
        %v732 = vadd.f32 %v681, %v727
        %v733 = vadd.f32 %v682, %v729
        %s734 = sld [smem:[#allocation8 + $0x10]]
        %v735 = vstv %s734
        %v736 = vmul.f32 %v735, %v419
        %v737 = vmul.f32 %v735, %v420
        %v738 = vmul.f32 %v735, %v421
        %v742 = vrot.slane %v736, 6
        %v743 = vrot.slane %v737, 6
        %v744 = vsel %vm528, %v742, %v743
        %v745 = vrot.slane %v738, 6
        %v746 = vsel %vm528, %v743, %v745
        %747 = vrot.lane.b32.xlu0 %v744, 126
        %v748 = vpop.permute.xlu0 %747
        %749 = vrot.lane.b32.xlu0 %v746, 126
        %v750 = vpop.permute.xlu0 %749
        %v753 = vadd.f32 %v698, %v748
        %v754 = vadd.f32 %v699, %v750
        %s755 = sld [smem:[#allocation8 + $0x5b]]
        %v756 = vstv %s755
        %v757 = vmul.f32 %v756, %v419
        %v758 = vmul.f32 %v756, %v420
        %v759 = vmul.f32 %v756, %v421
        %v763 = vrot.slane %v757, 6
        %v764 = vrot.slane %v758, 6
        %v765 = vsel %vm528, %v763, %v764
        %v766 = vrot.slane %v759, 6
        %v767 = vsel %vm528, %v764, %v766
        %768 = vrot.lane.b32.xlu0 %v765, 126
        %v769 = vpop.permute.xlu0 %768
        %770 = vrot.lane.b32.xlu0 %v767, 126
        %v771 = vpop.permute.xlu0 %770
        %v774 = vadd.f32 %v715, %v769
        %v775 = vadd.f32 %v716, %v771
        %s776 = sld [smem:[#allocation8 + $0xa6]]
        %v777 = vstv %s776
        %v778 = vmul.f32 %v777, %v419
        %v779 = vmul.f32 %v777, %v420
        %v780 = vmul.f32 %v777, %v421
        %v784 = vrot.slane %v778, 6
        %v785 = vrot.slane %v779, 6
        %v786 = vsel %vm528, %v784, %v785
        %v787 = vrot.slane %v780, 6
        %v788 = vsel %vm528, %v785, %v787
        %789 = vrot.lane.b32.xlu0 %v786, 126
        %v790 = vpop.permute.xlu0 %789
        %791 = vrot.lane.b32.xlu0 %v788, 126
        %v792 = vpop.permute.xlu0 %791
        %v795 = vadd.f32 %v732, %v790
        %v796 = vadd.f32 %v733, %v792
        %s797 = sld [smem:[#allocation8 + $0x15]]
        %v798 = vstv %s797
        %v799 = vmul.f32 %v798, %v420
        %v800 = vmul.f32 %v798, %v421
        %803 = vrot.lane.b32.xlu0 %v799, 126
        %v804 = vpop.permute.xlu0 %803
        %805 = vrot.lane.b32.xlu0 %v800, 126
        %v806 = vpop.permute.xlu0 %805
        %v809 = vadd.f32 %v753, %v804
        %v810 = vadd.f32 %v754, %v806
        %s811 = sld [smem:[#allocation8 + $0x60]]
        %v812 = vstv %s811
        %v813 = vmul.f32 %v812, %v420
        %v814 = vmul.f32 %v812, %v421
        %817 = vrot.lane.b32.xlu0 %v813, 126
        %v818 = vpop.permute.xlu0 %817
        %819 = vrot.lane.b32.xlu0 %v814, 126
        %v820 = vpop.permute.xlu0 %819
        %v823 = vadd.f32 %v774, %v818
        %v824 = vadd.f32 %v775, %v820
        %s825 = sld [smem:[#allocation8 + $0xab]]
        %v826 = vstv %s825
        %v827 = vmul.f32 %v826, %v420
        %v828 = vmul.f32 %v826, %v421
        %831 = vrot.lane.b32.xlu0 %v827, 126
        %v832 = vpop.permute.xlu0 %831
        %833 = vrot.lane.b32.xlu0 %v828, 126
        %v834 = vpop.permute.xlu0 %833
        %v837 = vadd.f32 %v795, %v832
        %v838 = vadd.f32 %v796, %v834
        %s839 = sld [smem:[#allocation8 + $0x2]]
        %v840 = vstv %s839
        %v841 = vmul.f32 %v840, %v419
        %v842 = vmul.f32 %v840, %v420
        %845 = vrot.lane.b32.xlu0 %v841, 124
        %v846 = vpop.permute.xlu0 %845
        %847 = vrot.lane.b32.xlu0 %v842, 124
        %v848 = vpop.permute.xlu0 %847
        %v851 = vadd.f32 %v809, %v846
        %v852 = vadd.f32 %v810, %v848
        %s853 = sld [smem:[#allocation8 + $0x4d]]
        %v854 = vstv %s853
        %v855 = vmul.f32 %v854, %v419
        %v856 = vmul.f32 %v854, %v420
        %859 = vrot.lane.b32.xlu0 %v855, 124
        %v860 = vpop.permute.xlu0 %859
        %861 = vrot.lane.b32.xlu0 %v856, 124
        %v862 = vpop.permute.xlu0 %861
        %v865 = vadd.f32 %v823, %v860
        %v866 = vadd.f32 %v824, %v862
        %s867 = sld [smem:[#allocation8 + $0x98]]
        %v868 = vstv %s867
        %v869 = vmul.f32 %v868, %v419
        %v870 = vmul.f32 %v868, %v420
        %873 = vrot.lane.b32.xlu0 %v869, 124
        %v874 = vpop.permute.xlu0 %873
        %875 = vrot.lane.b32.xlu0 %v870, 124
        %v876 = vpop.permute.xlu0 %875
        %v879 = vadd.f32 %v837, %v874
        %v880 = vadd.f32 %v838, %v876
        %s881 = sld [smem:[#allocation8 + $0x7]]
        %v882 = vstv %s881
        %v883 = vmul.f32 %v882, %v419
        %v884 = vmul.f32 %v882, %v420
        %v887 = vrot.slane %v883, 2
        %v888 = vrot.slane %v884, 2
        %v889 = vsel %vm446, %v887, %v888
        %890 = vrot.lane.b32.xlu0 %v889, 124
        %v891 = vpop.permute.xlu0 %890
        %892 = vrot.lane.b32.xlu0 %v888, 124
        %v893 = vpop.permute.xlu0 %892
        %v896 = vadd.f32 %v851, %v891
        %v897 = vadd.f32 %v852, %v893
        %s898 = sld [smem:[#allocation8 + $0x52]]
        %v899 = vstv %s898
        %v900 = vmul.f32 %v899, %v419
        %v901 = vmul.f32 %v899, %v420
        %v904 = vrot.slane %v900, 2
        %v905 = vrot.slane %v901, 2
        %v906 = vsel %vm446, %v904, %v905
        %907 = vrot.lane.b32.xlu0 %v906, 124
        %v908 = vpop.permute.xlu0 %907
        %909 = vrot.lane.b32.xlu0 %v905, 124
        %v910 = vpop.permute.xlu0 %909
        %v913 = vadd.f32 %v865, %v908
        %v914 = vadd.f32 %v866, %v910
        %s915 = sld [smem:[#allocation8 + $0x9d]]
        %v916 = vstv %s915
        %v917 = vmul.f32 %v916, %v419
        %v918 = vmul.f32 %v916, %v420
        %v921 = vrot.slane %v917, 2
        %v922 = vrot.slane %v918, 2
        %v923 = vsel %vm446, %v921, %v922
        %924 = vrot.lane.b32.xlu0 %v923, 124
        %v925 = vpop.permute.xlu0 %924
        %926 = vrot.lane.b32.xlu0 %v922, 124
        %v927 = vpop.permute.xlu0 %926
        %v930 = vadd.f32 %v879, %v925
        %v931 = vadd.f32 %v880, %v927
        %s932 = sld [smem:[#allocation8 + $0xc]]
        %v933 = vstv %s932
        %v934 = vmul.f32 %v933, %v419
        %v935 = vmul.f32 %v933, %v420
        %v938 = vrot.slane %v934, 4
        %v939 = vrot.slane %v935, 4
        %v940 = vsel %vm486, %v938, %v939
        %941 = vrot.lane.b32.xlu0 %v940, 124
        %v942 = vpop.permute.xlu0 %941
        %943 = vrot.lane.b32.xlu0 %v939, 124
        %v944 = vpop.permute.xlu0 %943
        %v947 = vadd.f32 %v896, %v942
        %v948 = vadd.f32 %v897, %v944
        %s949 = sld [smem:[#allocation8 + $0x57]]
        %v950 = vstv %s949
        %v951 = vmul.f32 %v950, %v419
        %v952 = vmul.f32 %v950, %v420
        %v955 = vrot.slane %v951, 4
        %v956 = vrot.slane %v952, 4
        %v957 = vsel %vm486, %v955, %v956
        %958 = vrot.lane.b32.xlu0 %v957, 124
        %v959 = vpop.permute.xlu0 %958
        %960 = vrot.lane.b32.xlu0 %v956, 124
        %v961 = vpop.permute.xlu0 %960
        %v964 = vadd.f32 %v913, %v959
        %v965 = vadd.f32 %v914, %v961
        %s966 = sld [smem:[#allocation8 + $0xa2]]
        %v967 = vstv %s966
        %v968 = vmul.f32 %v967, %v419
        %v969 = vmul.f32 %v967, %v420
        %v972 = vrot.slane %v968, 4
        %v973 = vrot.slane %v969, 4
        %v974 = vsel %vm486, %v972, %v973
        %975 = vrot.lane.b32.xlu0 %v974, 124
        %v976 = vpop.permute.xlu0 %975
        %977 = vrot.lane.b32.xlu0 %v973, 124
        %v978 = vpop.permute.xlu0 %977
        %v981 = vadd.f32 %v930, %v976
        %v982 = vadd.f32 %v931, %v978
        %s983 = sld [smem:[#allocation8 + $0x11]]
        %v984 = vstv %s983
        %v985 = vmul.f32 %v984, %v419
        %v986 = vmul.f32 %v984, %v420
        %v987 = vmul.f32 %v984, %v421
        %v991 = vrot.slane %v985, 6
        %v992 = vrot.slane %v986, 6
        %v993 = vsel %vm528, %v991, %v992
        %v994 = vrot.slane %v987, 6
        %v995 = vsel %vm528, %v992, %v994
        %996 = vrot.lane.b32.xlu0 %v993, 124
        %v997 = vpop.permute.xlu0 %996
        %998 = vrot.lane.b32.xlu0 %v995, 124
        %v999 = vpop.permute.xlu0 %998
        %v1002 = vadd.f32 %v947, %v997
        %v1003 = vadd.f32 %v948, %v999
        %s1004 = sld [smem:[#allocation8 + $0x5c]]
        %v1005 = vstv %s1004
        %v1006 = vmul.f32 %v1005, %v419
        %v1007 = vmul.f32 %v1005, %v420
        %v1008 = vmul.f32 %v1005, %v421
        %v1012 = vrot.slane %v1006, 6
        %v1013 = vrot.slane %v1007, 6
        %v1014 = vsel %vm528, %v1012, %v1013
        %v1015 = vrot.slane %v1008, 6
        %v1016 = vsel %vm528, %v1013, %v1015
        %1017 = vrot.lane.b32.xlu0 %v1014, 124
        %v1018 = vpop.permute.xlu0 %1017
        %1019 = vrot.lane.b32.xlu0 %v1016, 124
        %v1020 = vpop.permute.xlu0 %1019
        %v1023 = vadd.f32 %v964, %v1018
        %v1024 = vadd.f32 %v965, %v1020
        %s1025 = sld [smem:[#allocation8 + $0xa7]]
        %v1026 = vstv %s1025
        %v1027 = vmul.f32 %v1026, %v419
        %v1028 = vmul.f32 %v1026, %v420
        %v1029 = vmul.f32 %v1026, %v421
        %v1033 = vrot.slane %v1027, 6
        %v1034 = vrot.slane %v1028, 6
        %v1035 = vsel %vm528, %v1033, %v1034
        %v1036 = vrot.slane %v1029, 6
        %v1037 = vsel %vm528, %v1034, %v1036
        %1038 = vrot.lane.b32.xlu0 %v1035, 124
        %v1039 = vpop.permute.xlu0 %1038
        %1040 = vrot.lane.b32.xlu0 %v1037, 124
        %v1041 = vpop.permute.xlu0 %1040
        %v1044 = vadd.f32 %v981, %v1039
        %v1045 = vadd.f32 %v982, %v1041
        %s1046 = sld [smem:[#allocation8 + $0x16]]
        %v1047 = vstv %s1046
        %v1048 = vmul.f32 %v1047, %v420
        %v1049 = vmul.f32 %v1047, %v421
        %1052 = vrot.lane.b32.xlu0 %v1048, 124
        %v1053 = vpop.permute.xlu0 %1052
        %1054 = vrot.lane.b32.xlu0 %v1049, 124
        %v1055 = vpop.permute.xlu0 %1054
        %v1058 = vadd.f32 %v1002, %v1053
        %v1059 = vadd.f32 %v1003, %v1055
        %s1060 = sld [smem:[#allocation8 + $0x61]]
        %v1061 = vstv %s1060
        %v1062 = vmul.f32 %v1061, %v420
        %v1063 = vmul.f32 %v1061, %v421
        %1066 = vrot.lane.b32.xlu0 %v1062, 124
        %v1067 = vpop.permute.xlu0 %1066
        %1068 = vrot.lane.b32.xlu0 %v1063, 124
        %v1069 = vpop.permute.xlu0 %1068
        %v1072 = vadd.f32 %v1023, %v1067
        %v1073 = vadd.f32 %v1024, %v1069
        %s1074 = sld [smem:[#allocation8 + $0xac]]
        %v1075 = vstv %s1074
        %v1076 = vmul.f32 %v1075, %v420
        %v1077 = vmul.f32 %v1075, %v421
        %1080 = vrot.lane.b32.xlu0 %v1076, 124
        %v1081 = vpop.permute.xlu0 %1080
        %1082 = vrot.lane.b32.xlu0 %v1077, 124
        %v1083 = vpop.permute.xlu0 %1082
        %v1086 = vadd.f32 %v1044, %v1081
        %v1087 = vadd.f32 %v1045, %v1083
        %s1088 = sld [smem:[#allocation8 + $0x3]]
        %v1089 = vstv %s1088
        %v1090 = vmul.f32 %v1089, %v419
        %v1091 = vmul.f32 %v1089, %v420
        %1094 = vrot.lane.b32.xlu0 %v1090, 122
        %v1095 = vpop.permute.xlu0 %1094
        %1096 = vrot.lane.b32.xlu0 %v1091, 122
        %v1097 = vpop.permute.xlu0 %1096
        %v1100 = vadd.f32 %v1058, %v1095
        %v1101 = vadd.f32 %v1059, %v1097
        %s1102 = sld [smem:[#allocation8 + $0x4e]]
        %v1103 = vstv %s1102
        %v1104 = vmul.f32 %v1103, %v419
        %v1105 = vmul.f32 %v1103, %v420
        %1108 = vrot.lane.b32.xlu0 %v1104, 122
        %v1109 = vpop.permute.xlu0 %1108
        %1110 = vrot.lane.b32.xlu0 %v1105, 122
        %v1111 = vpop.permute.xlu0 %1110
        %v1114 = vadd.f32 %v1072, %v1109
        %v1115 = vadd.f32 %v1073, %v1111
        %s1116 = sld [smem:[#allocation8 + $0x99]]
        %v1117 = vstv %s1116
        %v1118 = vmul.f32 %v1117, %v419
        %v1119 = vmul.f32 %v1117, %v420
        %1122 = vrot.lane.b32.xlu0 %v1118, 122
        %v1123 = vpop.permute.xlu0 %1122
        %1124 = vrot.lane.b32.xlu0 %v1119, 122
        %v1125 = vpop.permute.xlu0 %1124
        %v1128 = vadd.f32 %v1086, %v1123
        %v1129 = vadd.f32 %v1087, %v1125
        %s1130 = sld [smem:[#allocation8 + $0x8]]
        %v1131 = vstv %s1130
        %v1132 = vmul.f32 %v1131, %v419
        %v1133 = vmul.f32 %v1131, %v420
        %v1136 = vrot.slane %v1132, 2
        %v1137 = vrot.slane %v1133, 2
        %v1138 = vsel %vm446, %v1136, %v1137
        %1139 = vrot.lane.b32.xlu0 %v1138, 122
        %v1140 = vpop.permute.xlu0 %1139
        %1141 = vrot.lane.b32.xlu0 %v1137, 122
        %v1142 = vpop.permute.xlu0 %1141
        %v1145 = vadd.f32 %v1100, %v1140
        %v1146 = vadd.f32 %v1101, %v1142
        %s1147 = sld [smem:[#allocation8 + $0x53]]
        %v1148 = vstv %s1147
        %v1149 = vmul.f32 %v1148, %v419
        %v1150 = vmul.f32 %v1148, %v420
        %v1153 = vrot.slane %v1149, 2
        %v1154 = vrot.slane %v1150, 2
        %v1155 = vsel %vm446, %v1153, %v1154
        %1156 = vrot.lane.b32.xlu0 %v1155, 122
        %v1157 = vpop.permute.xlu0 %1156
        %1158 = vrot.lane.b32.xlu0 %v1154, 122
        %v1159 = vpop.permute.xlu0 %1158
        %v1162 = vadd.f32 %v1114, %v1157
        %v1163 = vadd.f32 %v1115, %v1159
        %s1164 = sld [smem:[#allocation8 + $0x9e]]
        %v1165 = vstv %s1164
        %v1166 = vmul.f32 %v1165, %v419
        %v1167 = vmul.f32 %v1165, %v420
        %v1170 = vrot.slane %v1166, 2
        %v1171 = vrot.slane %v1167, 2
        %v1172 = vsel %vm446, %v1170, %v1171
        %1173 = vrot.lane.b32.xlu0 %v1172, 122
        %v1174 = vpop.permute.xlu0 %1173
        %1175 = vrot.lane.b32.xlu0 %v1171, 122
        %v1176 = vpop.permute.xlu0 %1175
        %v1179 = vadd.f32 %v1128, %v1174
        %v1180 = vadd.f32 %v1129, %v1176
        %s1181 = sld [smem:[#allocation8 + $0xd]]
        %v1182 = vstv %s1181
        %v1183 = vmul.f32 %v1182, %v419
        %v1184 = vmul.f32 %v1182, %v420
        %v1187 = vrot.slane %v1183, 4
        %v1188 = vrot.slane %v1184, 4
        %v1189 = vsel %vm486, %v1187, %v1188
        %1190 = vrot.lane.b32.xlu0 %v1189, 122
        %v1191 = vpop.permute.xlu0 %1190
        %1192 = vrot.lane.b32.xlu0 %v1188, 122
        %v1193 = vpop.permute.xlu0 %1192
        %v1196 = vadd.f32 %v1145, %v1191
        %v1197 = vadd.f32 %v1146, %v1193
        %s1198 = sld [smem:[#allocation8 + $0x58]]
        %v1199 = vstv %s1198
        %v1200 = vmul.f32 %v1199, %v419
        %v1201 = vmul.f32 %v1199, %v420
        %v1204 = vrot.slane %v1200, 4
        %v1205 = vrot.slane %v1201, 4
        %v1206 = vsel %vm486, %v1204, %v1205
        %1207 = vrot.lane.b32.xlu0 %v1206, 122
        %v1208 = vpop.permute.xlu0 %1207
        %1209 = vrot.lane.b32.xlu0 %v1205, 122
        %v1210 = vpop.permute.xlu0 %1209
        %v1213 = vadd.f32 %v1162, %v1208
        %v1214 = vadd.f32 %v1163, %v1210
        %s1215 = sld [smem:[#allocation8 + $0xa3]]
        %v1216 = vstv %s1215
        %v1217 = vmul.f32 %v1216, %v419
        %v1218 = vmul.f32 %v1216, %v420
        %v1221 = vrot.slane %v1217, 4
        %v1222 = vrot.slane %v1218, 4
        %v1223 = vsel %vm486, %v1221, %v1222
        %1224 = vrot.lane.b32.xlu0 %v1223, 122
        %v1225 = vpop.permute.xlu0 %1224
        %1226 = vrot.lane.b32.xlu0 %v1222, 122
        %v1227 = vpop.permute.xlu0 %1226
        %v1230 = vadd.f32 %v1179, %v1225
        %v1231 = vadd.f32 %v1180, %v1227
        %s1232 = sld [smem:[#allocation8 + $0x12]]
        %v1233 = vstv %s1232
        %v1234 = vmul.f32 %v1233, %v419
        %v1235 = vmul.f32 %v1233, %v420
        %v1236 = vmul.f32 %v1233, %v421
        %v1240 = vrot.slane %v1234, 6
        %v1241 = vrot.slane %v1235, 6
        %v1242 = vsel %vm528, %v1240, %v1241
        %v1243 = vrot.slane %v1236, 6
        %v1244 = vsel %vm528, %v1241, %v1243
        %1245 = vrot.lane.b32.xlu0 %v1242, 122
        %v1246 = vpop.permute.xlu0 %1245
        %1247 = vrot.lane.b32.xlu0 %v1244, 122
        %v1248 = vpop.permute.xlu0 %1247
        %v1251 = vadd.f32 %v1196, %v1246
        %v1252 = vadd.f32 %v1197, %v1248
        %s1253 = sld [smem:[#allocation8 + $0x5d]]
        %v1254 = vstv %s1253
        %v1255 = vmul.f32 %v1254, %v419
        %v1256 = vmul.f32 %v1254, %v420
        %v1257 = vmul.f32 %v1254, %v421
        %v1261 = vrot.slane %v1255, 6
        %v1262 = vrot.slane %v1256, 6
        %v1263 = vsel %vm528, %v1261, %v1262
        %v1264 = vrot.slane %v1257, 6
        %v1265 = vsel %vm528, %v1262, %v1264
        %1266 = vrot.lane.b32.xlu0 %v1263, 122
        %v1267 = vpop.permute.xlu0 %1266
        %1268 = vrot.lane.b32.xlu0 %v1265, 122
        %v1269 = vpop.permute.xlu0 %1268
        %v1272 = vadd.f32 %v1213, %v1267
        %v1273 = vadd.f32 %v1214, %v1269
        %s1274 = sld [smem:[#allocation8 + $0xa8]]
        %v1275 = vstv %s1274
        %v1276 = vmul.f32 %v1275, %v419
        %v1277 = vmul.f32 %v1275, %v420
        %v1278 = vmul.f32 %v1275, %v421
        %v1282 = vrot.slane %v1276, 6
        %v1283 = vrot.slane %v1277, 6
        %v1284 = vsel %vm528, %v1282, %v1283
        %v1285 = vrot.slane %v1278, 6
        %v1286 = vsel %vm528, %v1283, %v1285
        %1287 = vrot.lane.b32.xlu0 %v1284, 122
        %v1288 = vpop.permute.xlu0 %1287
        %1289 = vrot.lane.b32.xlu0 %v1286, 122
        %v1290 = vpop.permute.xlu0 %1289
        %v1293 = vadd.f32 %v1230, %v1288
        %v1294 = vadd.f32 %v1231, %v1290
        %s1295 = sld [smem:[#allocation8 + $0x17]]
        %v1296 = vstv %s1295
        %v1297 = vmul.f32 %v1296, %v420
        %v1298 = vmul.f32 %v1296, %v421
        %1301 = vrot.lane.b32.xlu0 %v1297, 122
        %v1302 = vpop.permute.xlu0 %1301
        %1303 = vrot.lane.b32.xlu0 %v1298, 122
        %v1304 = vpop.permute.xlu0 %1303
        %v1307 = vadd.f32 %v1251, %v1302
        %v1308 = vadd.f32 %v1252, %v1304
        %s1309 = sld [smem:[#allocation8 + $0x62]]
        %v1310 = vstv %s1309
        %v1311 = vmul.f32 %v1310, %v420
        %v1312 = vmul.f32 %v1310, %v421
        %1315 = vrot.lane.b32.xlu0 %v1311, 122
        %v1316 = vpop.permute.xlu0 %1315
        %1317 = vrot.lane.b32.xlu0 %v1312, 122
        %v1318 = vpop.permute.xlu0 %1317
        %v1321 = vadd.f32 %v1272, %v1316
        %v1322 = vadd.f32 %v1273, %v1318
        %s1323 = sld [smem:[#allocation8 + $0xad]]
        %v1324 = vstv %s1323
        %v1325 = vmul.f32 %v1324, %v420
        %v1326 = vmul.f32 %v1324, %v421
        %1329 = vrot.lane.b32.xlu0 %v1325, 122
        %v1330 = vpop.permute.xlu0 %1329
        %1331 = vrot.lane.b32.xlu0 %v1326, 122
        %v1332 = vpop.permute.xlu0 %1331
        %v1335 = vadd.f32 %v1293, %v1330
        %v1336 = vadd.f32 %v1294, %v1332
        %s1337 = sld [smem:[#allocation8 + $0x4]]
        %v1338 = vstv %s1337
        %v1339 = vmul.f32 %v1338, %v419
        %v1340 = vmul.f32 %v1338, %v420
        %1343 = vrot.lane.b32.xlu0 %v1339, 120
        %v1344 = vpop.permute.xlu0 %1343
        %1345 = vrot.lane.b32.xlu0 %v1340, 120
        %v1346 = vpop.permute.xlu0 %1345
        %v1349 = vadd.f32 %v1307, %v1344
        %v1350 = vadd.f32 %v1308, %v1346
        %s1351 = sld [smem:[#allocation8 + $0x4f]]
        %v1352 = vstv %s1351
        %v1353 = vmul.f32 %v1352, %v419
        %v1354 = vmul.f32 %v1352, %v420
        %1357 = vrot.lane.b32.xlu0 %v1353, 120
        %v1358 = vpop.permute.xlu0 %1357
        %1359 = vrot.lane.b32.xlu0 %v1354, 120
        %v1360 = vpop.permute.xlu0 %1359
        %v1363 = vadd.f32 %v1321, %v1358
        %v1364 = vadd.f32 %v1322, %v1360
        %s1365 = sld [smem:[#allocation8 + $0x9a]]
        %v1366 = vstv %s1365
        %v1367 = vmul.f32 %v1366, %v419
        %v1368 = vmul.f32 %v1366, %v420
        %1371 = vrot.lane.b32.xlu0 %v1367, 120
        %v1372 = vpop.permute.xlu0 %1371
        %1373 = vrot.lane.b32.xlu0 %v1368, 120
        %v1374 = vpop.permute.xlu0 %1373
        %v1377 = vadd.f32 %v1335, %v1372
        %v1378 = vadd.f32 %v1336, %v1374
        %s1379 = sld [smem:[#allocation8 + $0x9]]
        %v1380 = vstv %s1379
        %v1381 = vmul.f32 %v1380, %v419
        %v1382 = vmul.f32 %v1380, %v420
        %v1385 = vrot.slane %v1381, 2
        %v1386 = vrot.slane %v1382, 2
        %v1387 = vsel %vm446, %v1385, %v1386
        %1388 = vrot.lane.b32.xlu0 %v1387, 120
        %v1389 = vpop.permute.xlu0 %1388
        %1390 = vrot.lane.b32.xlu0 %v1386, 120
        %v1391 = vpop.permute.xlu0 %1390
        %v1394 = vadd.f32 %v1349, %v1389
        %v1395 = vadd.f32 %v1350, %v1391
        %s1396 = sld [smem:[#allocation8 + $0x54]]
        %v1397 = vstv %s1396
        %v1398 = vmul.f32 %v1397, %v419
        %v1399 = vmul.f32 %v1397, %v420
        %v1402 = vrot.slane %v1398, 2
        %v1403 = vrot.slane %v1399, 2
        %v1404 = vsel %vm446, %v1402, %v1403
        %1405 = vrot.lane.b32.xlu0 %v1404, 120
        %v1406 = vpop.permute.xlu0 %1405
        %1407 = vrot.lane.b32.xlu0 %v1403, 120
        %v1408 = vpop.permute.xlu0 %1407
        %v1411 = vadd.f32 %v1363, %v1406
        %v1412 = vadd.f32 %v1364, %v1408
        %s1413 = sld [smem:[#allocation8 + $0x9f]]
        %v1414 = vstv %s1413
        %v1415 = vmul.f32 %v1414, %v419
        %v1416 = vmul.f32 %v1414, %v420
        %v1419 = vrot.slane %v1415, 2
        %v1420 = vrot.slane %v1416, 2
        %v1421 = vsel %vm446, %v1419, %v1420
        %1422 = vrot.lane.b32.xlu0 %v1421, 120
        %v1423 = vpop.permute.xlu0 %1422
        %1424 = vrot.lane.b32.xlu0 %v1420, 120
        %v1425 = vpop.permute.xlu0 %1424
        %v1428 = vadd.f32 %v1377, %v1423
        %v1429 = vadd.f32 %v1378, %v1425
        %s1430 = sld [smem:[#allocation8 + $0xe]]
        %v1431 = vstv %s1430
        %v1432 = vmul.f32 %v1431, %v419
        %v1433 = vmul.f32 %v1431, %v420
        %v1436 = vrot.slane %v1432, 4
        %v1437 = vrot.slane %v1433, 4
        %v1438 = vsel %vm486, %v1436, %v1437
        %1439 = vrot.lane.b32.xlu0 %v1438, 120
        %v1440 = vpop.permute.xlu0 %1439
        %1441 = vrot.lane.b32.xlu0 %v1437, 120
        %v1442 = vpop.permute.xlu0 %1441
        %v1445 = vadd.f32 %v1394, %v1440
        %v1446 = vadd.f32 %v1395, %v1442
        %s1447 = sld [smem:[#allocation8 + $0x59]]
        %v1448 = vstv %s1447
        %v1449 = vmul.f32 %v1448, %v419
        %v1450 = vmul.f32 %v1448, %v420
        %v1453 = vrot.slane %v1449, 4
        %v1454 = vrot.slane %v1450, 4
        %v1455 = vsel %vm486, %v1453, %v1454
        %1456 = vrot.lane.b32.xlu0 %v1455, 120
        %v1457 = vpop.permute.xlu0 %1456
        %1458 = vrot.lane.b32.xlu0 %v1454, 120
        %v1459 = vpop.permute.xlu0 %1458
        %v1462 = vadd.f32 %v1411, %v1457
        %v1463 = vadd.f32 %v1412, %v1459
        %s1464 = sld [smem:[#allocation8 + $0xa4]]
        %v1465 = vstv %s1464
        %v1466 = vmul.f32 %v1465, %v419
        %v1467 = vmul.f32 %v1465, %v420
        %v1470 = vrot.slane %v1466, 4
        %v1471 = vrot.slane %v1467, 4
        %v1472 = vsel %vm486, %v1470, %v1471
        %1473 = vrot.lane.b32.xlu0 %v1472, 120
        %v1474 = vpop.permute.xlu0 %1473
        %1475 = vrot.lane.b32.xlu0 %v1471, 120
        %v1476 = vpop.permute.xlu0 %1475
        %v1479 = vadd.f32 %v1428, %v1474
        %v1480 = vadd.f32 %v1429, %v1476
        %s1481 = sld [smem:[#allocation8 + $0x13]]
        %v1482 = vstv %s1481
        %v1483 = vmul.f32 %v1482, %v419
        %v1484 = vmul.f32 %v1482, %v420
        %v1485 = vmul.f32 %v1482, %v421
        %v1489 = vrot.slane %v1483, 6
        %v1490 = vrot.slane %v1484, 6
        %v1491 = vsel %vm528, %v1489, %v1490
        %v1492 = vrot.slane %v1485, 6
        %v1493 = vsel %vm528, %v1490, %v1492
        %1494 = vrot.lane.b32.xlu0 %v1491, 120
        %v1495 = vpop.permute.xlu0 %1494
        %1496 = vrot.lane.b32.xlu0 %v1493, 120
        %v1497 = vpop.permute.xlu0 %1496
        %v1500 = vadd.f32 %v1445, %v1495
        %v1501 = vadd.f32 %v1446, %v1497
        %s1502 = sld [smem:[#allocation8 + $0x5e]]
        %v1503 = vstv %s1502
        %v1504 = vmul.f32 %v1503, %v419
        %v1505 = vmul.f32 %v1503, %v420
        %v1506 = vmul.f32 %v1503, %v421
        %v1510 = vrot.slane %v1504, 6
        %v1511 = vrot.slane %v1505, 6
        %v1512 = vsel %vm528, %v1510, %v1511
        %v1513 = vrot.slane %v1506, 6
        %v1514 = vsel %vm528, %v1511, %v1513
        %1515 = vrot.lane.b32.xlu0 %v1512, 120
        %v1516 = vpop.permute.xlu0 %1515
        %1517 = vrot.lane.b32.xlu0 %v1514, 120
        %v1518 = vpop.permute.xlu0 %1517
        %v1521 = vadd.f32 %v1462, %v1516
        %v1522 = vadd.f32 %v1463, %v1518
        %s1523 = sld [smem:[#allocation8 + $0xa9]]
        %v1524 = vstv %s1523
        %v1525 = vmul.f32 %v1524, %v419
        %v1526 = vmul.f32 %v1524, %v420
        %v1527 = vmul.f32 %v1524, %v421
        %v1531 = vrot.slane %v1525, 6
        %v1532 = vrot.slane %v1526, 6
        %v1533 = vsel %vm528, %v1531, %v1532
        %v1534 = vrot.slane %v1527, 6
        %v1535 = vsel %vm528, %v1532, %v1534
        %1536 = vrot.lane.b32.xlu0 %v1533, 120
        %v1537 = vpop.permute.xlu0 %1536
        %1538 = vrot.lane.b32.xlu0 %v1535, 120
        %v1539 = vpop.permute.xlu0 %1538
        %v1542 = vadd.f32 %v1479, %v1537
        %v1543 = vadd.f32 %v1480, %v1539
        %s1544 = sld [smem:[#allocation8 + $0x18]]
        %v1545 = vstv %s1544
        %v1546 = vmul.f32 %v1545, %v420
        %v1547 = vmul.f32 %v1545, %v421
        %1550 = vrot.lane.b32.xlu0 %v1546, 120
        %v1551 = vpop.permute.xlu0 %1550
        %1552 = vrot.lane.b32.xlu0 %v1547, 120
        %v1553 = vpop.permute.xlu0 %1552
        %v1556 = vadd.f32 %v1500, %v1551
        %v1557 = vadd.f32 %v1501, %v1553
        %s1558 = sld [smem:[#allocation8 + $0x63]]
        %v1559 = vstv %s1558
        %v1560 = vmul.f32 %v1559, %v420
        %v1561 = vmul.f32 %v1559, %v421
        %1564 = vrot.lane.b32.xlu0 %v1560, 120
        %v1565 = vpop.permute.xlu0 %1564
        %1566 = vrot.lane.b32.xlu0 %v1561, 120
        %v1567 = vpop.permute.xlu0 %1566
        %v1570 = vadd.f32 %v1521, %v1565
        %v1571 = vadd.f32 %v1522, %v1567
        %s1572 = sld [smem:[#allocation8 + $0xae]]
        %v1573 = vstv %s1572
        %v1574 = vmul.f32 %v1573, %v420
        %v1575 = vmul.f32 %v1573, %v421
        %1578 = vrot.lane.b32.xlu0 %v1574, 120
        %v1579 = vpop.permute.xlu0 %1578
        %1580 = vrot.lane.b32.xlu0 %v1575, 120
        %v1581 = vpop.permute.xlu0 %1580
        %v1584 = vadd.f32 %v1542, %v1579
        %v1585 = vadd.f32 %v1543, %v1581
        %v1586 = vld [vmem:[%s324] sm:$0xff]
        %v1587 = vld [vmem:[%s324 + $0x8] sm:$0xff]
        %v1588 = vld [vmem:[%s324 + $0x10] sm:$0xf]
        %s1589 = sld [smem:[#allocation8 + $0x19]]
        %v1590 = vstv %s1589
        %v1591 = vmul.f32 %v1590, %v1586
        %v1592 = vmul.f32 %v1590, %v1587
        %v1593 = vadd.f32 %v1556, %v1591
        %v1594 = vadd.f32 %v1557, %v1592
        %s1595 = sld [smem:[#allocation8 + $0x64]]
        %v1596 = vstv %s1595
        %v1597 = vmul.f32 %v1596, %v1586
        %v1598 = vmul.f32 %v1596, %v1587
        %v1599 = vadd.f32 %v1570, %v1597
        %v1600 = vadd.f32 %v1571, %v1598
        %s1601 = sld [smem:[#allocation8 + $0xaf]]
        %v1602 = vstv %s1601
        %v1603 = vmul.f32 %v1602, %v1586
        %v1604 = vmul.f32 %v1602, %v1587
        %v1605 = vadd.f32 %v1584, %v1603
        %v1606 = vadd.f32 %v1585, %v1604
        %s1607 = sld [smem:[#allocation8 + $0x1e]]
        %v1608 = vstv %s1607
        %v1609 = vmul.f32 %v1608, %v1586
        %v1610 = vmul.f32 %v1608, %v1587
        %v1613 = vrot.slane %v1609, 2
        %v1614 = vrot.slane %v1610, 2
        %v1615 = vsel %vm446, %v1613, %v1614
        %v1618 = vadd.f32 %v1593, %v1615
        %v1619 = vadd.f32 %v1594, %v1614
        %s1620 = sld [smem:[#allocation8 + $0x69]]
        %v1621 = vstv %s1620
        %v1622 = vmul.f32 %v1621, %v1586
        %v1623 = vmul.f32 %v1621, %v1587
        %v1626 = vrot.slane %v1622, 2
        %v1627 = vrot.slane %v1623, 2
        %v1628 = vsel %vm446, %v1626, %v1627
        %v1631 = vadd.f32 %v1599, %v1628
        %v1632 = vadd.f32 %v1600, %v1627
        %s1633 = sld [smem:[#allocation8 + $0xb4]]
        %v1634 = vstv %s1633
        %v1635 = vmul.f32 %v1634, %v1586
        %v1636 = vmul.f32 %v1634, %v1587
        %v1639 = vrot.slane %v1635, 2
        %v1640 = vrot.slane %v1636, 2
        %v1641 = vsel %vm446, %v1639, %v1640
        %v1644 = vadd.f32 %v1605, %v1641
        %v1645 = vadd.f32 %v1606, %v1640
        %s1646 = sld [smem:[#allocation8 + $0x23]]
        %v1647 = vstv %s1646
        %v1648 = vmul.f32 %v1647, %v1586
        %v1649 = vmul.f32 %v1647, %v1587
        %v1652 = vrot.slane %v1648, 4
        %v1653 = vrot.slane %v1649, 4
        %v1654 = vsel %vm486, %v1652, %v1653
        %v1657 = vadd.f32 %v1618, %v1654
        %v1658 = vadd.f32 %v1619, %v1653
        %s1659 = sld [smem:[#allocation8 + $0x6e]]
        %v1660 = vstv %s1659
        %v1661 = vmul.f32 %v1660, %v1586
        %v1662 = vmul.f32 %v1660, %v1587
        %v1665 = vrot.slane %v1661, 4
        %v1666 = vrot.slane %v1662, 4
        %v1667 = vsel %vm486, %v1665, %v1666
        %v1670 = vadd.f32 %v1631, %v1667
        %v1671 = vadd.f32 %v1632, %v1666
        %s1672 = sld [smem:[#allocation8 + $0xb9]]
        %v1673 = vstv %s1672
        %v1674 = vmul.f32 %v1673, %v1586
        %v1675 = vmul.f32 %v1673, %v1587
        %v1678 = vrot.slane %v1674, 4
        %v1679 = vrot.slane %v1675, 4
        %v1680 = vsel %vm486, %v1678, %v1679
        %v1683 = vadd.f32 %v1644, %v1680
        %v1684 = vadd.f32 %v1645, %v1679
        %s1685 = sld [smem:[#allocation8 + $0x28]]
        %v1686 = vstv %s1685
        %v1687 = vmul.f32 %v1686, %v1586
        %v1688 = vmul.f32 %v1686, %v1587
        %v1689 = vmul.f32 %v1686, %v1588
        %v1693 = vrot.slane %v1687, 6
        %v1694 = vrot.slane %v1688, 6
        %v1695 = vsel %vm528, %v1693, %v1694
        %v1696 = vrot.slane %v1689, 6
        %v1697 = vsel %vm528, %v1694, %v1696
        %v1700 = vadd.f32 %v1657, %v1695
        %v1701 = vadd.f32 %v1658, %v1697
        %s1702 = sld [smem:[#allocation8 + $0x73]]
        %v1703 = vstv %s1702
        %v1704 = vmul.f32 %v1703, %v1586
        %v1705 = vmul.f32 %v1703, %v1587
        %v1706 = vmul.f32 %v1703, %v1588
        %v1710 = vrot.slane %v1704, 6
        %v1711 = vrot.slane %v1705, 6
        %v1712 = vsel %vm528, %v1710, %v1711
        %v1713 = vrot.slane %v1706, 6
        %v1714 = vsel %vm528, %v1711, %v1713
        %v1717 = vadd.f32 %v1670, %v1712
        %v1718 = vadd.f32 %v1671, %v1714
        %s1719 = sld [smem:[#allocation8 + $0xbe]]
        %v1720 = vstv %s1719
        %v1721 = vmul.f32 %v1720, %v1586
        %v1722 = vmul.f32 %v1720, %v1587
        %v1723 = vmul.f32 %v1720, %v1588
        %v1727 = vrot.slane %v1721, 6
        %v1728 = vrot.slane %v1722, 6
        %v1729 = vsel %vm528, %v1727, %v1728
        %v1730 = vrot.slane %v1723, 6
        %v1731 = vsel %vm528, %v1728, %v1730
        %v1734 = vadd.f32 %v1683, %v1729
        %v1735 = vadd.f32 %v1684, %v1731
        %s1736 = sld [smem:[#allocation8 + $0x2d]]
        %v1737 = vstv %s1736
        %v1738 = vmul.f32 %v1737, %v1587
        %v1739 = vmul.f32 %v1737, %v1588
        %v1740 = vadd.f32 %v1700, %v1738
        %v1741 = vadd.f32 %v1701, %v1739
        %s1742 = sld [smem:[#allocation8 + $0x78]]
        %v1743 = vstv %s1742
        %v1744 = vmul.f32 %v1743, %v1587
        %v1745 = vmul.f32 %v1743, %v1588
        %v1746 = vadd.f32 %v1717, %v1744
        %v1747 = vadd.f32 %v1718, %v1745
        %s1748 = sld [smem:[#allocation8 + $0xc3]]
        %v1749 = vstv %s1748
        %v1750 = vmul.f32 %v1749, %v1587
        %v1751 = vmul.f32 %v1749, %v1588
        %v1752 = vadd.f32 %v1734, %v1750
        %v1753 = vadd.f32 %v1735, %v1751
        %s1754 = sld [smem:[#allocation8 + $0x1a]]
        %v1755 = vstv %s1754
        %v1756 = vmul.f32 %v1755, %v1586
        %v1757 = vmul.f32 %v1755, %v1587
        %1760 = vrot.lane.b32.xlu0 %v1756, 126
        %v1761 = vpop.permute.xlu0 %1760
        %1762 = vrot.lane.b32.xlu0 %v1757, 126
        %v1763 = vpop.permute.xlu0 %1762
        %v1766 = vadd.f32 %v1740, %v1761
        %v1767 = vadd.f32 %v1741, %v1763
        %s1768 = sld [smem:[#allocation8 + $0x65]]
        %v1769 = vstv %s1768
        %v1770 = vmul.f32 %v1769, %v1586
        %v1771 = vmul.f32 %v1769, %v1587
        %1774 = vrot.lane.b32.xlu0 %v1770, 126
        %v1775 = vpop.permute.xlu0 %1774
        %1776 = vrot.lane.b32.xlu0 %v1771, 126
        %v1777 = vpop.permute.xlu0 %1776
        %v1780 = vadd.f32 %v1746, %v1775
        %v1781 = vadd.f32 %v1747, %v1777
        %s1782 = sld [smem:[#allocation8 + $0xb0]]
        %v1783 = vstv %s1782
        %v1784 = vmul.f32 %v1783, %v1586
        %v1785 = vmul.f32 %v1783, %v1587
        %1788 = vrot.lane.b32.xlu0 %v1784, 126
        %v1789 = vpop.permute.xlu0 %1788
        %1790 = vrot.lane.b32.xlu0 %v1785, 126
        %v1791 = vpop.permute.xlu0 %1790
        %v1794 = vadd.f32 %v1752, %v1789
        %v1795 = vadd.f32 %v1753, %v1791
        %s1796 = sld [smem:[#allocation8 + $0x1f]]
        %v1797 = vstv %s1796
        %v1798 = vmul.f32 %v1797, %v1586
        %v1799 = vmul.f32 %v1797, %v1587
        %v1802 = vrot.slane %v1798, 2
        %v1803 = vrot.slane %v1799, 2
        %v1804 = vsel %vm446, %v1802, %v1803
        %1805 = vrot.lane.b32.xlu0 %v1804, 126
        %v1806 = vpop.permute.xlu0 %1805
        %1807 = vrot.lane.b32.xlu0 %v1803, 126
        %v1808 = vpop.permute.xlu0 %1807
        %v1811 = vadd.f32 %v1766, %v1806
        %v1812 = vadd.f32 %v1767, %v1808
        %s1813 = sld [smem:[#allocation8 + $0x6a]]
        %v1814 = vstv %s1813
        %v1815 = vmul.f32 %v1814, %v1586
        %v1816 = vmul.f32 %v1814, %v1587
        %v1819 = vrot.slane %v1815, 2
        %v1820 = vrot.slane %v1816, 2
        %v1821 = vsel %vm446, %v1819, %v1820
        %1822 = vrot.lane.b32.xlu0 %v1821, 126
        %v1823 = vpop.permute.xlu0 %1822
        %1824 = vrot.lane.b32.xlu0 %v1820, 126
        %v1825 = vpop.permute.xlu0 %1824
        %v1828 = vadd.f32 %v1780, %v1823
        %v1829 = vadd.f32 %v1781, %v1825
        %s1830 = sld [smem:[#allocation8 + $0xb5]]
        %v1831 = vstv %s1830
        %v1832 = vmul.f32 %v1831, %v1586
        %v1833 = vmul.f32 %v1831, %v1587
        %v1836 = vrot.slane %v1832, 2
        %v1837 = vrot.slane %v1833, 2
        %v1838 = vsel %vm446, %v1836, %v1837
        %1839 = vrot.lane.b32.xlu0 %v1838, 126
        %v1840 = vpop.permute.xlu0 %1839
        %1841 = vrot.lane.b32.xlu0 %v1837, 126
        %v1842 = vpop.permute.xlu0 %1841
        %v1845 = vadd.f32 %v1794, %v1840
        %v1846 = vadd.f32 %v1795, %v1842
        %s1847 = sld [smem:[#allocation8 + $0x24]]
        %v1848 = vstv %s1847
        %v1849 = vmul.f32 %v1848, %v1586
        %v1850 = vmul.f32 %v1848, %v1587
        %v1853 = vrot.slane %v1849, 4
        %v1854 = vrot.slane %v1850, 4
        %v1855 = vsel %vm486, %v1853, %v1854
        %1856 = vrot.lane.b32.xlu0 %v1855, 126
        %v1857 = vpop.permute.xlu0 %1856
        %1858 = vrot.lane.b32.xlu0 %v1854, 126
        %v1859 = vpop.permute.xlu0 %1858
        %v1862 = vadd.f32 %v1811, %v1857
        %v1863 = vadd.f32 %v1812, %v1859
        %s1864 = sld [smem:[#allocation8 + $0x6f]]
        %v1865 = vstv %s1864
        %v1866 = vmul.f32 %v1865, %v1586
        %v1867 = vmul.f32 %v1865, %v1587
        %v1870 = vrot.slane %v1866, 4
        %v1871 = vrot.slane %v1867, 4
        %v1872 = vsel %vm486, %v1870, %v1871
        %1873 = vrot.lane.b32.xlu0 %v1872, 126
        %v1874 = vpop.permute.xlu0 %1873
        %1875 = vrot.lane.b32.xlu0 %v1871, 126
        %v1876 = vpop.permute.xlu0 %1875
        %v1879 = vadd.f32 %v1828, %v1874
        %v1880 = vadd.f32 %v1829, %v1876
        %s1881 = sld [smem:[#allocation8 + $0xba]]
        %v1882 = vstv %s1881
        %v1883 = vmul.f32 %v1882, %v1586
        %v1884 = vmul.f32 %v1882, %v1587
        %v1887 = vrot.slane %v1883, 4
        %v1888 = vrot.slane %v1884, 4
        %v1889 = vsel %vm486, %v1887, %v1888
        %1890 = vrot.lane.b32.xlu0 %v1889, 126
        %v1891 = vpop.permute.xlu0 %1890
        %1892 = vrot.lane.b32.xlu0 %v1888, 126
        %v1893 = vpop.permute.xlu0 %1892
        %v1896 = vadd.f32 %v1845, %v1891
        %v1897 = vadd.f32 %v1846, %v1893
        %s1898 = sld [smem:[#allocation8 + $0x29]]
        %v1899 = vstv %s1898
        %v1900 = vmul.f32 %v1899, %v1586
        %v1901 = vmul.f32 %v1899, %v1587
        %v1902 = vmul.f32 %v1899, %v1588
        %v1906 = vrot.slane %v1900, 6
        %v1907 = vrot.slane %v1901, 6
        %v1908 = vsel %vm528, %v1906, %v1907
        %v1909 = vrot.slane %v1902, 6
        %v1910 = vsel %vm528, %v1907, %v1909
        %1911 = vrot.lane.b32.xlu0 %v1908, 126
        %v1912 = vpop.permute.xlu0 %1911
        %1913 = vrot.lane.b32.xlu0 %v1910, 126
        %v1914 = vpop.permute.xlu0 %1913
        %v1917 = vadd.f32 %v1862, %v1912
        %v1918 = vadd.f32 %v1863, %v1914
        %s1919 = sld [smem:[#allocation8 + $0x74]]
        %v1920 = vstv %s1919
        %v1921 = vmul.f32 %v1920, %v1586
        %v1922 = vmul.f32 %v1920, %v1587
        %v1923 = vmul.f32 %v1920, %v1588
        %v1927 = vrot.slane %v1921, 6
        %v1928 = vrot.slane %v1922, 6
        %v1929 = vsel %vm528, %v1927, %v1928
        %v1930 = vrot.slane %v1923, 6
        %v1931 = vsel %vm528, %v1928, %v1930
        %1932 = vrot.lane.b32.xlu0 %v1929, 126
        %v1933 = vpop.permute.xlu0 %1932
        %1934 = vrot.lane.b32.xlu0 %v1931, 126
        %v1935 = vpop.permute.xlu0 %1934
        %v1938 = vadd.f32 %v1879, %v1933
        %v1939 = vadd.f32 %v1880, %v1935
        %s1940 = sld [smem:[#allocation8 + $0xbf]]
        %v1941 = vstv %s1940
        %v1942 = vmul.f32 %v1941, %v1586
        %v1943 = vmul.f32 %v1941, %v1587
        %v1944 = vmul.f32 %v1941, %v1588
        %v1948 = vrot.slane %v1942, 6
        %v1949 = vrot.slane %v1943, 6
        %v1950 = vsel %vm528, %v1948, %v1949
        %v1951 = vrot.slane %v1944, 6
        %v1952 = vsel %vm528, %v1949, %v1951
        %1953 = vrot.lane.b32.xlu0 %v1950, 126
        %v1954 = vpop.permute.xlu0 %1953
        %1955 = vrot.lane.b32.xlu0 %v1952, 126
        %v1956 = vpop.permute.xlu0 %1955
        %v1959 = vadd.f32 %v1896, %v1954
        %v1960 = vadd.f32 %v1897, %v1956
        %s1961 = sld [smem:[#allocation8 + $0x2e]]
        %v1962 = vstv %s1961
        %v1963 = vmul.f32 %v1962, %v1587
        %v1964 = vmul.f32 %v1962, %v1588
        %1967 = vrot.lane.b32.xlu0 %v1963, 126
        %v1968 = vpop.permute.xlu0 %1967
        %1969 = vrot.lane.b32.xlu0 %v1964, 126
        %v1970 = vpop.permute.xlu0 %1969
        %v1973 = vadd.f32 %v1917, %v1968
        %v1974 = vadd.f32 %v1918, %v1970
        %s1975 = sld [smem:[#allocation8 + $0x79]]
        %v1976 = vstv %s1975
        %v1977 = vmul.f32 %v1976, %v1587
        %v1978 = vmul.f32 %v1976, %v1588
        %1981 = vrot.lane.b32.xlu0 %v1977, 126
        %v1982 = vpop.permute.xlu0 %1981
        %1983 = vrot.lane.b32.xlu0 %v1978, 126
        %v1984 = vpop.permute.xlu0 %1983
        %v1987 = vadd.f32 %v1938, %v1982
        %v1988 = vadd.f32 %v1939, %v1984
        %s1989 = sld [smem:[#allocation8 + $0xc4]]
        %v1990 = vstv %s1989
        %v1991 = vmul.f32 %v1990, %v1587
        %v1992 = vmul.f32 %v1990, %v1588
        %1995 = vrot.lane.b32.xlu0 %v1991, 126
        %v1996 = vpop.permute.xlu0 %1995
        %1997 = vrot.lane.b32.xlu0 %v1992, 126
        %v1998 = vpop.permute.xlu0 %1997
        %v2001 = vadd.f32 %v1959, %v1996
        %v2002 = vadd.f32 %v1960, %v1998
        %s2003 = sld [smem:[#allocation8 + $0x1b]]
        %v2004 = vstv %s2003
        %v2005 = vmul.f32 %v2004, %v1586
        %v2006 = vmul.f32 %v2004, %v1587
        %2009 = vrot.lane.b32.xlu0 %v2005, 124
        %v2010 = vpop.permute.xlu0 %2009
        %2011 = vrot.lane.b32.xlu0 %v2006, 124
        %v2012 = vpop.permute.xlu0 %2011
        %v2015 = vadd.f32 %v1973, %v2010
        %v2016 = vadd.f32 %v1974, %v2012
        %s2017 = sld [smem:[#allocation8 + $0x66]]
        %v2018 = vstv %s2017
        %v2019 = vmul.f32 %v2018, %v1586
        %v2020 = vmul.f32 %v2018, %v1587
        %2023 = vrot.lane.b32.xlu0 %v2019, 124
        %v2024 = vpop.permute.xlu0 %2023
        %2025 = vrot.lane.b32.xlu0 %v2020, 124
        %v2026 = vpop.permute.xlu0 %2025
        %v2029 = vadd.f32 %v1987, %v2024
        %v2030 = vadd.f32 %v1988, %v2026
        %s2031 = sld [smem:[#allocation8 + $0xb1]]
        %v2032 = vstv %s2031
        %v2033 = vmul.f32 %v2032, %v1586
        %v2034 = vmul.f32 %v2032, %v1587
        %2037 = vrot.lane.b32.xlu0 %v2033, 124
        %v2038 = vpop.permute.xlu0 %2037
        %2039 = vrot.lane.b32.xlu0 %v2034, 124
        %v2040 = vpop.permute.xlu0 %2039
        %v2043 = vadd.f32 %v2001, %v2038
        %v2044 = vadd.f32 %v2002, %v2040
        %s2045 = sld [smem:[#allocation8 + $0x20]]
        %v2046 = vstv %s2045
        %v2047 = vmul.f32 %v2046, %v1586
        %v2048 = vmul.f32 %v2046, %v1587
        %v2051 = vrot.slane %v2047, 2
        %v2052 = vrot.slane %v2048, 2
        %v2053 = vsel %vm446, %v2051, %v2052
        %2054 = vrot.lane.b32.xlu0 %v2053, 124
        %v2055 = vpop.permute.xlu0 %2054
        %2056 = vrot.lane.b32.xlu0 %v2052, 124
        %v2057 = vpop.permute.xlu0 %2056
        %v2060 = vadd.f32 %v2015, %v2055
        %v2061 = vadd.f32 %v2016, %v2057
        %s2062 = sld [smem:[#allocation8 + $0x6b]]
        %v2063 = vstv %s2062
        %v2064 = vmul.f32 %v2063, %v1586
        %v2065 = vmul.f32 %v2063, %v1587
        %v2068 = vrot.slane %v2064, 2
        %v2069 = vrot.slane %v2065, 2
        %v2070 = vsel %vm446, %v2068, %v2069
        %2071 = vrot.lane.b32.xlu0 %v2070, 124
        %v2072 = vpop.permute.xlu0 %2071
        %2073 = vrot.lane.b32.xlu0 %v2069, 124
        %v2074 = vpop.permute.xlu0 %2073
        %v2077 = vadd.f32 %v2029, %v2072
        %v2078 = vadd.f32 %v2030, %v2074
        %s2079 = sld [smem:[#allocation8 + $0xb6]]
        %v2080 = vstv %s2079
        %v2081 = vmul.f32 %v2080, %v1586
        %v2082 = vmul.f32 %v2080, %v1587
        %v2085 = vrot.slane %v2081, 2
        %v2086 = vrot.slane %v2082, 2
        %v2087 = vsel %vm446, %v2085, %v2086
        %2088 = vrot.lane.b32.xlu0 %v2087, 124
        %v2089 = vpop.permute.xlu0 %2088
        %2090 = vrot.lane.b32.xlu0 %v2086, 124
        %v2091 = vpop.permute.xlu0 %2090
        %v2094 = vadd.f32 %v2043, %v2089
        %v2095 = vadd.f32 %v2044, %v2091
        %s2096 = sld [smem:[#allocation8 + $0x25]]
        %v2097 = vstv %s2096
        %v2098 = vmul.f32 %v2097, %v1586
        %v2099 = vmul.f32 %v2097, %v1587
        %v2102 = vrot.slane %v2098, 4
        %v2103 = vrot.slane %v2099, 4
        %v2104 = vsel %vm486, %v2102, %v2103
        %2105 = vrot.lane.b32.xlu0 %v2104, 124
        %v2106 = vpop.permute.xlu0 %2105
        %2107 = vrot.lane.b32.xlu0 %v2103, 124
        %v2108 = vpop.permute.xlu0 %2107
        %v2111 = vadd.f32 %v2060, %v2106
        %v2112 = vadd.f32 %v2061, %v2108
        %s2113 = sld [smem:[#allocation8 + $0x70]]
        %v2114 = vstv %s2113
        %v2115 = vmul.f32 %v2114, %v1586
        %v2116 = vmul.f32 %v2114, %v1587
        %v2119 = vrot.slane %v2115, 4
        %v2120 = vrot.slane %v2116, 4
        %v2121 = vsel %vm486, %v2119, %v2120
        %2122 = vrot.lane.b32.xlu0 %v2121, 124
        %v2123 = vpop.permute.xlu0 %2122
        %2124 = vrot.lane.b32.xlu0 %v2120, 124
        %v2125 = vpop.permute.xlu0 %2124
        %v2128 = vadd.f32 %v2077, %v2123
        %v2129 = vadd.f32 %v2078, %v2125
        %s2130 = sld [smem:[#allocation8 + $0xbb]]
        %v2131 = vstv %s2130
        %v2132 = vmul.f32 %v2131, %v1586
        %v2133 = vmul.f32 %v2131, %v1587
        %v2136 = vrot.slane %v2132, 4
        %v2137 = vrot.slane %v2133, 4
        %v2138 = vsel %vm486, %v2136, %v2137
        %2139 = vrot.lane.b32.xlu0 %v2138, 124
        %v2140 = vpop.permute.xlu0 %2139
        %2141 = vrot.lane.b32.xlu0 %v2137, 124
        %v2142 = vpop.permute.xlu0 %2141
        %v2145 = vadd.f32 %v2094, %v2140
        %v2146 = vadd.f32 %v2095, %v2142
        %s2147 = sld [smem:[#allocation8 + $0x2a]]
        %v2148 = vstv %s2147
        %v2149 = vmul.f32 %v2148, %v1586
        %v2150 = vmul.f32 %v2148, %v1587
        %v2151 = vmul.f32 %v2148, %v1588
        %v2155 = vrot.slane %v2149, 6
        %v2156 = vrot.slane %v2150, 6
        %v2157 = vsel %vm528, %v2155, %v2156
        %v2158 = vrot.slane %v2151, 6
        %v2159 = vsel %vm528, %v2156, %v2158
        %2160 = vrot.lane.b32.xlu0 %v2157, 124
        %v2161 = vpop.permute.xlu0 %2160
        %2162 = vrot.lane.b32.xlu0 %v2159, 124
        %v2163 = vpop.permute.xlu0 %2162
        %v2166 = vadd.f32 %v2111, %v2161
        %v2167 = vadd.f32 %v2112, %v2163
        %s2168 = sld [smem:[#allocation8 + $0x75]]
        %v2169 = vstv %s2168
        %v2170 = vmul.f32 %v2169, %v1586
        %v2171 = vmul.f32 %v2169, %v1587
        %v2172 = vmul.f32 %v2169, %v1588
        %v2176 = vrot.slane %v2170, 6
        %v2177 = vrot.slane %v2171, 6
        %v2178 = vsel %vm528, %v2176, %v2177
        %v2179 = vrot.slane %v2172, 6
        %v2180 = vsel %vm528, %v2177, %v2179
        %2181 = vrot.lane.b32.xlu0 %v2178, 124
        %v2182 = vpop.permute.xlu0 %2181
        %2183 = vrot.lane.b32.xlu0 %v2180, 124
        %v2184 = vpop.permute.xlu0 %2183
        %v2187 = vadd.f32 %v2128, %v2182
        %v2188 = vadd.f32 %v2129, %v2184
        %s2189 = sld [smem:[#allocation8 + $0xc0]]
        %v2190 = vstv %s2189
        %v2191 = vmul.f32 %v2190, %v1586
        %v2192 = vmul.f32 %v2190, %v1587
        %v2193 = vmul.f32 %v2190, %v1588
        %v2197 = vrot.slane %v2191, 6
        %v2198 = vrot.slane %v2192, 6
        %v2199 = vsel %vm528, %v2197, %v2198
        %v2200 = vrot.slane %v2193, 6
        %v2201 = vsel %vm528, %v2198, %v2200
        %2202 = vrot.lane.b32.xlu0 %v2199, 124
        %v2203 = vpop.permute.xlu0 %2202
        %2204 = vrot.lane.b32.xlu0 %v2201, 124
        %v2205 = vpop.permute.xlu0 %2204
        %v2208 = vadd.f32 %v2145, %v2203
        %v2209 = vadd.f32 %v2146, %v2205
        %s2210 = sld [smem:[#allocation8 + $0x2f]]
        %v2211 = vstv %s2210
        %v2212 = vmul.f32 %v2211, %v1587
        %v2213 = vmul.f32 %v2211, %v1588
        %2216 = vrot.lane.b32.xlu0 %v2212, 124
        %v2217 = vpop.permute.xlu0 %2216
        %2218 = vrot.lane.b32.xlu0 %v2213, 124
        %v2219 = vpop.permute.xlu0 %2218
        %v2222 = vadd.f32 %v2166, %v2217
        %v2223 = vadd.f32 %v2167, %v2219
        %s2224 = sld [smem:[#allocation8 + $0x7a]]
        %v2225 = vstv %s2224
        %v2226 = vmul.f32 %v2225, %v1587
        %v2227 = vmul.f32 %v2225, %v1588
        %2230 = vrot.lane.b32.xlu0 %v2226, 124
        %v2231 = vpop.permute.xlu0 %2230
        %2232 = vrot.lane.b32.xlu0 %v2227, 124
        %v2233 = vpop.permute.xlu0 %2232
        %v2236 = vadd.f32 %v2187, %v2231
        %v2237 = vadd.f32 %v2188, %v2233
        %s2238 = sld [smem:[#allocation8 + $0xc5]]
        %v2239 = vstv %s2238
        %v2240 = vmul.f32 %v2239, %v1587
        %v2241 = vmul.f32 %v2239, %v1588
        %2244 = vrot.lane.b32.xlu0 %v2240, 124
        %v2245 = vpop.permute.xlu0 %2244
        %2246 = vrot.lane.b32.xlu0 %v2241, 124
        %v2247 = vpop.permute.xlu0 %2246
        %v2250 = vadd.f32 %v2208, %v2245
        %v2251 = vadd.f32 %v2209, %v2247
        %s2252 = sld [smem:[#allocation8 + $0x1c]]
        %v2253 = vstv %s2252
        %v2254 = vmul.f32 %v2253, %v1586
        %v2255 = vmul.f32 %v2253, %v1587
        %2258 = vrot.lane.b32.xlu0 %v2254, 122
        %v2259 = vpop.permute.xlu0 %2258
        %2260 = vrot.lane.b32.xlu0 %v2255, 122
        %v2261 = vpop.permute.xlu0 %2260
        %v2264 = vadd.f32 %v2222, %v2259
        %v2265 = vadd.f32 %v2223, %v2261
        %s2266 = sld [smem:[#allocation8 + $0x67]]
        %v2267 = vstv %s2266
        %v2268 = vmul.f32 %v2267, %v1586
        %v2269 = vmul.f32 %v2267, %v1587
        %2272 = vrot.lane.b32.xlu0 %v2268, 122
        %v2273 = vpop.permute.xlu0 %2272
        %2274 = vrot.lane.b32.xlu0 %v2269, 122
        %v2275 = vpop.permute.xlu0 %2274
        %v2278 = vadd.f32 %v2236, %v2273
        %v2279 = vadd.f32 %v2237, %v2275
        %s2280 = sld [smem:[#allocation8 + $0xb2]]
        %v2281 = vstv %s2280
        %v2282 = vmul.f32 %v2281, %v1586
        %v2283 = vmul.f32 %v2281, %v1587
        %2286 = vrot.lane.b32.xlu0 %v2282, 122
        %v2287 = vpop.permute.xlu0 %2286
        %2288 = vrot.lane.b32.xlu0 %v2283, 122
        %v2289 = vpop.permute.xlu0 %2288
        %v2292 = vadd.f32 %v2250, %v2287
        %v2293 = vadd.f32 %v2251, %v2289
        %s2294 = sld [smem:[#allocation8 + $0x21]]
        %v2295 = vstv %s2294
        %v2296 = vmul.f32 %v2295, %v1586
        %v2297 = vmul.f32 %v2295, %v1587
        %v2300 = vrot.slane %v2296, 2
        %v2301 = vrot.slane %v2297, 2
        %v2302 = vsel %vm446, %v2300, %v2301
        %2303 = vrot.lane.b32.xlu0 %v2302, 122
        %v2304 = vpop.permute.xlu0 %2303
        %2305 = vrot.lane.b32.xlu0 %v2301, 122
        %v2306 = vpop.permute.xlu0 %2305
        %v2309 = vadd.f32 %v2264, %v2304
        %v2310 = vadd.f32 %v2265, %v2306
        %s2311 = sld [smem:[#allocation8 + $0x6c]]
        %v2312 = vstv %s2311
        %v2313 = vmul.f32 %v2312, %v1586
        %v2314 = vmul.f32 %v2312, %v1587
        %v2317 = vrot.slane %v2313, 2
        %v2318 = vrot.slane %v2314, 2
        %v2319 = vsel %vm446, %v2317, %v2318
        %2320 = vrot.lane.b32.xlu0 %v2319, 122
        %v2321 = vpop.permute.xlu0 %2320
        %2322 = vrot.lane.b32.xlu0 %v2318, 122
        %v2323 = vpop.permute.xlu0 %2322
        %v2326 = vadd.f32 %v2278, %v2321
        %v2327 = vadd.f32 %v2279, %v2323
        %s2328 = sld [smem:[#allocation8 + $0xb7]]
        %v2329 = vstv %s2328
        %v2330 = vmul.f32 %v2329, %v1586
        %v2331 = vmul.f32 %v2329, %v1587
        %v2334 = vrot.slane %v2330, 2
        %v2335 = vrot.slane %v2331, 2
        %v2336 = vsel %vm446, %v2334, %v2335
        %2337 = vrot.lane.b32.xlu0 %v2336, 122
        %v2338 = vpop.permute.xlu0 %2337
        %2339 = vrot.lane.b32.xlu0 %v2335, 122
        %v2340 = vpop.permute.xlu0 %2339
        %v2343 = vadd.f32 %v2292, %v2338
        %v2344 = vadd.f32 %v2293, %v2340
        %s2345 = sld [smem:[#allocation8 + $0x26]]
        %v2346 = vstv %s2345
        %v2347 = vmul.f32 %v2346, %v1586
        %v2348 = vmul.f32 %v2346, %v1587
        %v2351 = vrot.slane %v2347, 4
        %v2352 = vrot.slane %v2348, 4
        %v2353 = vsel %vm486, %v2351, %v2352
        %2354 = vrot.lane.b32.xlu0 %v2353, 122
        %v2355 = vpop.permute.xlu0 %2354
        %2356 = vrot.lane.b32.xlu0 %v2352, 122
        %v2357 = vpop.permute.xlu0 %2356
        %v2360 = vadd.f32 %v2309, %v2355
        %v2361 = vadd.f32 %v2310, %v2357
        %s2362 = sld [smem:[#allocation8 + $0x71]]
        %v2363 = vstv %s2362
        %v2364 = vmul.f32 %v2363, %v1586
        %v2365 = vmul.f32 %v2363, %v1587
        %v2368 = vrot.slane %v2364, 4
        %v2369 = vrot.slane %v2365, 4
        %v2370 = vsel %vm486, %v2368, %v2369
        %2371 = vrot.lane.b32.xlu0 %v2370, 122
        %v2372 = vpop.permute.xlu0 %2371
        %2373 = vrot.lane.b32.xlu0 %v2369, 122
        %v2374 = vpop.permute.xlu0 %2373
        %v2377 = vadd.f32 %v2326, %v2372
        %v2378 = vadd.f32 %v2327, %v2374
        %s2379 = sld [smem:[#allocation8 + $0xbc]]
        %v2380 = vstv %s2379
        %v2381 = vmul.f32 %v2380, %v1586
        %v2382 = vmul.f32 %v2380, %v1587
        %v2385 = vrot.slane %v2381, 4
        %v2386 = vrot.slane %v2382, 4
        %v2387 = vsel %vm486, %v2385, %v2386
        %2388 = vrot.lane.b32.xlu0 %v2387, 122
        %v2389 = vpop.permute.xlu0 %2388
        %2390 = vrot.lane.b32.xlu0 %v2386, 122
        %v2391 = vpop.permute.xlu0 %2390
        %v2394 = vadd.f32 %v2343, %v2389
        %v2395 = vadd.f32 %v2344, %v2391
        %s2396 = sld [smem:[#allocation8 + $0x2b]]
        %v2397 = vstv %s2396
        %v2398 = vmul.f32 %v2397, %v1586
        %v2399 = vmul.f32 %v2397, %v1587
        %v2400 = vmul.f32 %v2397, %v1588
        %v2404 = vrot.slane %v2398, 6
        %v2405 = vrot.slane %v2399, 6
        %v2406 = vsel %vm528, %v2404, %v2405
        %v2407 = vrot.slane %v2400, 6
        %v2408 = vsel %vm528, %v2405, %v2407
        %2409 = vrot.lane.b32.xlu0 %v2406, 122
        %v2410 = vpop.permute.xlu0 %2409
        %2411 = vrot.lane.b32.xlu0 %v2408, 122
        %v2412 = vpop.permute.xlu0 %2411
        %v2415 = vadd.f32 %v2360, %v2410
        %v2416 = vadd.f32 %v2361, %v2412
        %s2417 = sld [smem:[#allocation8 + $0x76]]
        %v2418 = vstv %s2417
        %v2419 = vmul.f32 %v2418, %v1586
        %v2420 = vmul.f32 %v2418, %v1587
        %v2421 = vmul.f32 %v2418, %v1588
        %v2425 = vrot.slane %v2419, 6
        %v2426 = vrot.slane %v2420, 6
        %v2427 = vsel %vm528, %v2425, %v2426
        %v2428 = vrot.slane %v2421, 6
        %v2429 = vsel %vm528, %v2426, %v2428
        %2430 = vrot.lane.b32.xlu0 %v2427, 122
        %v2431 = vpop.permute.xlu0 %2430
        %2432 = vrot.lane.b32.xlu0 %v2429, 122
        %v2433 = vpop.permute.xlu0 %2432
        %v2436 = vadd.f32 %v2377, %v2431
        %v2437 = vadd.f32 %v2378, %v2433
        %s2438 = sld [smem:[#allocation8 + $0xc1]]
        %v2439 = vstv %s2438
        %v2440 = vmul.f32 %v2439, %v1586
        %v2441 = vmul.f32 %v2439, %v1587
        %v2442 = vmul.f32 %v2439, %v1588
        %v2446 = vrot.slane %v2440, 6
        %v2447 = vrot.slane %v2441, 6
        %v2448 = vsel %vm528, %v2446, %v2447
        %v2449 = vrot.slane %v2442, 6
        %v2450 = vsel %vm528, %v2447, %v2449
        %2451 = vrot.lane.b32.xlu0 %v2448, 122
        %v2452 = vpop.permute.xlu0 %2451
        %2453 = vrot.lane.b32.xlu0 %v2450, 122
        %v2454 = vpop.permute.xlu0 %2453
        %v2457 = vadd.f32 %v2394, %v2452
        %v2458 = vadd.f32 %v2395, %v2454
        %s2459 = sld [smem:[#allocation8 + $0x30]]
        %v2460 = vstv %s2459
        %v2461 = vmul.f32 %v2460, %v1587
        %v2462 = vmul.f32 %v2460, %v1588
        %2465 = vrot.lane.b32.xlu0 %v2461, 122
        %v2466 = vpop.permute.xlu0 %2465
        %2467 = vrot.lane.b32.xlu0 %v2462, 122
        %v2468 = vpop.permute.xlu0 %2467
        %v2471 = vadd.f32 %v2415, %v2466
        %v2472 = vadd.f32 %v2416, %v2468
        %s2473 = sld [smem:[#allocation8 + $0x7b]]
        %v2474 = vstv %s2473
        %v2475 = vmul.f32 %v2474, %v1587
        %v2476 = vmul.f32 %v2474, %v1588
        %2479 = vrot.lane.b32.xlu0 %v2475, 122
        %v2480 = vpop.permute.xlu0 %2479
        %2481 = vrot.lane.b32.xlu0 %v2476, 122
        %v2482 = vpop.permute.xlu0 %2481
        %v2485 = vadd.f32 %v2436, %v2480
        %v2486 = vadd.f32 %v2437, %v2482
        %s2487 = sld [smem:[#allocation8 + $0xc6]]
        %v2488 = vstv %s2487
        %v2489 = vmul.f32 %v2488, %v1587
        %v2490 = vmul.f32 %v2488, %v1588
        %2493 = vrot.lane.b32.xlu0 %v2489, 122
        %v2494 = vpop.permute.xlu0 %2493
        %2495 = vrot.lane.b32.xlu0 %v2490, 122
        %v2496 = vpop.permute.xlu0 %2495
        %v2499 = vadd.f32 %v2457, %v2494
        %v2500 = vadd.f32 %v2458, %v2496
        %s2501 = sld [smem:[#allocation8 + $0x1d]]
        %v2502 = vstv %s2501
        %v2503 = vmul.f32 %v2502, %v1586
        %v2504 = vmul.f32 %v2502, %v1587
        %2507 = vrot.lane.b32.xlu0 %v2503, 120
        %v2508 = vpop.permute.xlu0 %2507
        %2509 = vrot.lane.b32.xlu0 %v2504, 120
        %v2510 = vpop.permute.xlu0 %2509
        %v2513 = vadd.f32 %v2471, %v2508
        %v2514 = vadd.f32 %v2472, %v2510
        %s2515 = sld [smem:[#allocation8 + $0x68]]
        %v2516 = vstv %s2515
        %v2517 = vmul.f32 %v2516, %v1586
        %v2518 = vmul.f32 %v2516, %v1587
        %2521 = vrot.lane.b32.xlu0 %v2517, 120
        %v2522 = vpop.permute.xlu0 %2521
        %2523 = vrot.lane.b32.xlu0 %v2518, 120
        %v2524 = vpop.permute.xlu0 %2523
        %v2527 = vadd.f32 %v2485, %v2522
        %v2528 = vadd.f32 %v2486, %v2524
        %s2529 = sld [smem:[#allocation8 + $0xb3]]
        %v2530 = vstv %s2529
        %v2531 = vmul.f32 %v2530, %v1586
        %v2532 = vmul.f32 %v2530, %v1587
        %2535 = vrot.lane.b32.xlu0 %v2531, 120
        %v2536 = vpop.permute.xlu0 %2535
        %2537 = vrot.lane.b32.xlu0 %v2532, 120
        %v2538 = vpop.permute.xlu0 %2537
        %v2541 = vadd.f32 %v2499, %v2536
        %v2542 = vadd.f32 %v2500, %v2538
        %s2543 = sld [smem:[#allocation8 + $0x22]]
        %v2544 = vstv %s2543
        %v2545 = vmul.f32 %v2544, %v1586
        %v2546 = vmul.f32 %v2544, %v1587
        %v2549 = vrot.slane %v2545, 2
        %v2550 = vrot.slane %v2546, 2
        %v2551 = vsel %vm446, %v2549, %v2550
        %2552 = vrot.lane.b32.xlu0 %v2551, 120
        %v2553 = vpop.permute.xlu0 %2552
        %2554 = vrot.lane.b32.xlu0 %v2550, 120
        %v2555 = vpop.permute.xlu0 %2554
        %v2558 = vadd.f32 %v2513, %v2553
        %v2559 = vadd.f32 %v2514, %v2555
        %s2560 = sld [smem:[#allocation8 + $0x6d]]
        %v2561 = vstv %s2560
        %v2562 = vmul.f32 %v2561, %v1586
        %v2563 = vmul.f32 %v2561, %v1587
        %v2566 = vrot.slane %v2562, 2
        %v2567 = vrot.slane %v2563, 2
        %v2568 = vsel %vm446, %v2566, %v2567
        %2569 = vrot.lane.b32.xlu0 %v2568, 120
        %v2570 = vpop.permute.xlu0 %2569
        %2571 = vrot.lane.b32.xlu0 %v2567, 120
        %v2572 = vpop.permute.xlu0 %2571
        %v2575 = vadd.f32 %v2527, %v2570
        %v2576 = vadd.f32 %v2528, %v2572
        %s2577 = sld [smem:[#allocation8 + $0xb8]]
        %v2578 = vstv %s2577
        %v2579 = vmul.f32 %v2578, %v1586
        %v2580 = vmul.f32 %v2578, %v1587
        %v2583 = vrot.slane %v2579, 2
        %v2584 = vrot.slane %v2580, 2
        %v2585 = vsel %vm446, %v2583, %v2584
        %2586 = vrot.lane.b32.xlu0 %v2585, 120
        %v2587 = vpop.permute.xlu0 %2586
        %2588 = vrot.lane.b32.xlu0 %v2584, 120
        %v2589 = vpop.permute.xlu0 %2588
        %v2592 = vadd.f32 %v2541, %v2587
        %v2593 = vadd.f32 %v2542, %v2589
        %s2594 = sld [smem:[#allocation8 + $0x27]]
        %v2595 = vstv %s2594
        %v2596 = vmul.f32 %v2595, %v1586
        %v2597 = vmul.f32 %v2595, %v1587
        %v2600 = vrot.slane %v2596, 4
        %v2601 = vrot.slane %v2597, 4
        %v2602 = vsel %vm486, %v2600, %v2601
        %2603 = vrot.lane.b32.xlu0 %v2602, 120
        %v2604 = vpop.permute.xlu0 %2603
        %2605 = vrot.lane.b32.xlu0 %v2601, 120
        %v2606 = vpop.permute.xlu0 %2605
        %v2609 = vadd.f32 %v2558, %v2604
        %v2610 = vadd.f32 %v2559, %v2606
        %s2611 = sld [smem:[#allocation8 + $0x72]]
        %v2612 = vstv %s2611
        %v2613 = vmul.f32 %v2612, %v1586
        %v2614 = vmul.f32 %v2612, %v1587
        %v2617 = vrot.slane %v2613, 4
        %v2618 = vrot.slane %v2614, 4
        %v2619 = vsel %vm486, %v2617, %v2618
        %2620 = vrot.lane.b32.xlu0 %v2619, 120
        %v2621 = vpop.permute.xlu0 %2620
        %2622 = vrot.lane.b32.xlu0 %v2618, 120
        %v2623 = vpop.permute.xlu0 %2622
        %v2626 = vadd.f32 %v2575, %v2621
        %v2627 = vadd.f32 %v2576, %v2623
        %s2628 = sld [smem:[#allocation8 + $0xbd]]
        %v2629 = vstv %s2628
        %v2630 = vmul.f32 %v2629, %v1586
        %v2631 = vmul.f32 %v2629, %v1587
        %v2634 = vrot.slane %v2630, 4
        %v2635 = vrot.slane %v2631, 4
        %v2636 = vsel %vm486, %v2634, %v2635
        %2637 = vrot.lane.b32.xlu0 %v2636, 120
        %v2638 = vpop.permute.xlu0 %2637
        %2639 = vrot.lane.b32.xlu0 %v2635, 120
        %v2640 = vpop.permute.xlu0 %2639
        %v2643 = vadd.f32 %v2592, %v2638
        %v2644 = vadd.f32 %v2593, %v2640
        %s2645 = sld [smem:[#allocation8 + $0x2c]]
        %v2646 = vstv %s2645
        %v2647 = vmul.f32 %v2646, %v1586
        %v2648 = vmul.f32 %v2646, %v1587
        %v2649 = vmul.f32 %v2646, %v1588
        %v2653 = vrot.slane %v2647, 6
        %v2654 = vrot.slane %v2648, 6
        %v2655 = vsel %vm528, %v2653, %v2654
        %v2656 = vrot.slane %v2649, 6
        %v2657 = vsel %vm528, %v2654, %v2656
        %2658 = vrot.lane.b32.xlu0 %v2655, 120
        %v2659 = vpop.permute.xlu0 %2658
        %2660 = vrot.lane.b32.xlu0 %v2657, 120
        %v2661 = vpop.permute.xlu0 %2660
        %v2664 = vadd.f32 %v2609, %v2659
        %v2665 = vadd.f32 %v2610, %v2661
        %s2666 = sld [smem:[#allocation8 + $0x77]]
        %v2667 = vstv %s2666
        %v2668 = vmul.f32 %v2667, %v1586
        %v2669 = vmul.f32 %v2667, %v1587
        %v2670 = vmul.f32 %v2667, %v1588
        %v2674 = vrot.slane %v2668, 6
        %v2675 = vrot.slane %v2669, 6
        %v2676 = vsel %vm528, %v2674, %v2675
        %v2677 = vrot.slane %v2670, 6
        %v2678 = vsel %vm528, %v2675, %v2677
        %2679 = vrot.lane.b32.xlu0 %v2676, 120
        %v2680 = vpop.permute.xlu0 %2679
        %2681 = vrot.lane.b32.xlu0 %v2678, 120
        %v2682 = vpop.permute.xlu0 %2681
        %v2685 = vadd.f32 %v2626, %v2680
        %v2686 = vadd.f32 %v2627, %v2682
        %s2687 = sld [smem:[#allocation8 + $0xc2]]
        %v2688 = vstv %s2687
        %v2689 = vmul.f32 %v2688, %v1586
        %v2690 = vmul.f32 %v2688, %v1587
        %v2691 = vmul.f32 %v2688, %v1588
        %v2695 = vrot.slane %v2689, 6
        %v2696 = vrot.slane %v2690, 6
        %v2697 = vsel %vm528, %v2695, %v2696
        %v2698 = vrot.slane %v2691, 6
        %v2699 = vsel %vm528, %v2696, %v2698
        %2700 = vrot.lane.b32.xlu0 %v2697, 120
        %v2701 = vpop.permute.xlu0 %2700
        %2702 = vrot.lane.b32.xlu0 %v2699, 120
        %v2703 = vpop.permute.xlu0 %2702
        %v2706 = vadd.f32 %v2643, %v2701
        %v2707 = vadd.f32 %v2644, %v2703
        %s2708 = sld [smem:[#allocation8 + $0x31]]
        %v2709 = vstv %s2708
        %v2710 = vmul.f32 %v2709, %v1587
        %v2711 = vmul.f32 %v2709, %v1588
        %2714 = vrot.lane.b32.xlu0 %v2710, 120
        %v2715 = vpop.permute.xlu0 %2714
        %2716 = vrot.lane.b32.xlu0 %v2711, 120
        %v2717 = vpop.permute.xlu0 %2716
        %v2720 = vadd.f32 %v2664, %v2715
        %v2721 = vadd.f32 %v2665, %v2717
        %s2722 = sld [smem:[#allocation8 + $0x7c]]
        %v2723 = vstv %s2722
        %v2724 = vmul.f32 %v2723, %v1587
        %v2725 = vmul.f32 %v2723, %v1588
        %2728 = vrot.lane.b32.xlu0 %v2724, 120
        %v2729 = vpop.permute.xlu0 %2728
        %2730 = vrot.lane.b32.xlu0 %v2725, 120
        %v2731 = vpop.permute.xlu0 %2730
        %v2734 = vadd.f32 %v2685, %v2729
        %v2735 = vadd.f32 %v2686, %v2731
        %s2736 = sld [smem:[#allocation8 + $0xc7]]
        %v2737 = vstv %s2736
        %v2738 = vmul.f32 %v2737, %v1587
        %v2739 = vmul.f32 %v2737, %v1588
        %2742 = vrot.lane.b32.xlu0 %v2738, 120
        %v2743 = vpop.permute.xlu0 %2742
        %2744 = vrot.lane.b32.xlu0 %v2739, 120
        %v2745 = vpop.permute.xlu0 %2744
        %v2748 = vadd.f32 %v2706, %v2743
        %v2749 = vadd.f32 %v2707, %v2745
        %v2750 = vld [vmem:[%s338] sm:$0xff]
        %v2751 = vld [vmem:[%s338 + $0x8] sm:$0xff]
        %v2752 = vld [vmem:[%s338 + $0x10] sm:$0xf]
        %s2753 = sld [smem:[#allocation8 + $0x32]]
        %v2754 = vstv %s2753
        %v2755 = vmul.f32 %v2754, %v2750
        %v2756 = vmul.f32 %v2754, %v2751
        %v2757 = vadd.f32 %v2720, %v2755
        %v2758 = vadd.f32 %v2721, %v2756
        %s2759 = sld [smem:[#allocation8 + $0x7d]]
        %v2760 = vstv %s2759
        %v2761 = vmul.f32 %v2760, %v2750
        %v2762 = vmul.f32 %v2760, %v2751
        %v2763 = vadd.f32 %v2734, %v2761
        %v2764 = vadd.f32 %v2735, %v2762
        %s2765 = sld [smem:[#allocation8 + $0xc8]]
        %v2766 = vstv %s2765
        %v2767 = vmul.f32 %v2766, %v2750
        %v2768 = vmul.f32 %v2766, %v2751
        %v2769 = vadd.f32 %v2748, %v2767
        %v2770 = vadd.f32 %v2749, %v2768
        %s2771 = sld [smem:[#allocation8 + $0x37]]
        %v2772 = vstv %s2771
        %v2773 = vmul.f32 %v2772, %v2750
        %v2774 = vmul.f32 %v2772, %v2751
        %v2777 = vrot.slane %v2773, 2
        %v2778 = vrot.slane %v2774, 2
        %v2779 = vsel %vm446, %v2777, %v2778
        %v2782 = vadd.f32 %v2757, %v2779
        %v2783 = vadd.f32 %v2758, %v2778
        %s2784 = sld [smem:[#allocation8 + $0x82]]
        %v2785 = vstv %s2784
        %v2786 = vmul.f32 %v2785, %v2750
        %v2787 = vmul.f32 %v2785, %v2751
        %v2790 = vrot.slane %v2786, 2
        %v2791 = vrot.slane %v2787, 2
        %v2792 = vsel %vm446, %v2790, %v2791
        %v2795 = vadd.f32 %v2763, %v2792
        %v2796 = vadd.f32 %v2764, %v2791
        %s2797 = sld [smem:[#allocation8 + $0xcd]]
        %v2798 = vstv %s2797
        %v2799 = vmul.f32 %v2798, %v2750
        %v2800 = vmul.f32 %v2798, %v2751
        %v2803 = vrot.slane %v2799, 2
        %v2804 = vrot.slane %v2800, 2
        %v2805 = vsel %vm446, %v2803, %v2804
        %v2808 = vadd.f32 %v2769, %v2805
        %v2809 = vadd.f32 %v2770, %v2804
        %s2810 = sld [smem:[#allocation8 + $0x3c]]
        %v2811 = vstv %s2810
        %v2812 = vmul.f32 %v2811, %v2750
        %v2813 = vmul.f32 %v2811, %v2751
        %v2816 = vrot.slane %v2812, 4
        %v2817 = vrot.slane %v2813, 4
        %v2818 = vsel %vm486, %v2816, %v2817
        %v2821 = vadd.f32 %v2782, %v2818
        %v2822 = vadd.f32 %v2783, %v2817
        %s2823 = sld [smem:[#allocation8 + $0x87]]
        %v2824 = vstv %s2823
        %v2825 = vmul.f32 %v2824, %v2750
        %v2826 = vmul.f32 %v2824, %v2751
        %v2829 = vrot.slane %v2825, 4
        %v2830 = vrot.slane %v2826, 4
        %v2831 = vsel %vm486, %v2829, %v2830
        %v2834 = vadd.f32 %v2795, %v2831
        %v2835 = vadd.f32 %v2796, %v2830
        %s2836 = sld [smem:[#allocation8 + $0xd2]]
        %v2837 = vstv %s2836
        %v2838 = vmul.f32 %v2837, %v2750
        %v2839 = vmul.f32 %v2837, %v2751
        %v2842 = vrot.slane %v2838, 4
        %v2843 = vrot.slane %v2839, 4
        %v2844 = vsel %vm486, %v2842, %v2843
        %v2847 = vadd.f32 %v2808, %v2844
        %v2848 = vadd.f32 %v2809, %v2843
        %s2849 = sld [smem:[#allocation8 + $0x41]]
        %v2850 = vstv %s2849
        %v2851 = vmul.f32 %v2850, %v2750
        %v2852 = vmul.f32 %v2850, %v2751
        %v2853 = vmul.f32 %v2850, %v2752
        %v2857 = vrot.slane %v2851, 6
        %v2858 = vrot.slane %v2852, 6
        %v2859 = vsel %vm528, %v2857, %v2858
        %v2860 = vrot.slane %v2853, 6
        %v2861 = vsel %vm528, %v2858, %v2860
        %v2864 = vadd.f32 %v2821, %v2859
        %v2865 = vadd.f32 %v2822, %v2861
        %s2866 = sld [smem:[#allocation8 + $0x8c]]
        %v2867 = vstv %s2866
        %v2868 = vmul.f32 %v2867, %v2750
        %v2869 = vmul.f32 %v2867, %v2751
        %v2870 = vmul.f32 %v2867, %v2752
        %v2874 = vrot.slane %v2868, 6
        %v2875 = vrot.slane %v2869, 6
        %v2876 = vsel %vm528, %v2874, %v2875
        %v2877 = vrot.slane %v2870, 6
        %v2878 = vsel %vm528, %v2875, %v2877
        %v2881 = vadd.f32 %v2834, %v2876
        %v2882 = vadd.f32 %v2835, %v2878
        %s2883 = sld [smem:[#allocation8 + $0xd7]]
        %v2884 = vstv %s2883
        %v2885 = vmul.f32 %v2884, %v2750
        %v2886 = vmul.f32 %v2884, %v2751
        %v2887 = vmul.f32 %v2884, %v2752
        %v2891 = vrot.slane %v2885, 6
        %v2892 = vrot.slane %v2886, 6
        %v2893 = vsel %vm528, %v2891, %v2892
        %v2894 = vrot.slane %v2887, 6
        %v2895 = vsel %vm528, %v2892, %v2894
        %v2898 = vadd.f32 %v2847, %v2893
        %v2899 = vadd.f32 %v2848, %v2895
        %s2900 = sld [smem:[#allocation8 + $0x46]]
        %v2901 = vstv %s2900
        %v2902 = vmul.f32 %v2901, %v2751
        %v2903 = vmul.f32 %v2901, %v2752
        %v2904 = vadd.f32 %v2864, %v2902
        %v2905 = vadd.f32 %v2865, %v2903
        %s2906 = sld [smem:[#allocation8 + $0x91]]
        %v2907 = vstv %s2906
        %v2908 = vmul.f32 %v2907, %v2751
        %v2909 = vmul.f32 %v2907, %v2752
        %v2910 = vadd.f32 %v2881, %v2908
        %v2911 = vadd.f32 %v2882, %v2909
        %s2912 = sld [smem:[#allocation8 + $0xdc]]
        %v2913 = vstv %s2912
        %v2914 = vmul.f32 %v2913, %v2751
        %v2915 = vmul.f32 %v2913, %v2752
        %v2916 = vadd.f32 %v2898, %v2914
        %v2917 = vadd.f32 %v2899, %v2915
        %s2918 = sld [smem:[#allocation8 + $0x33]]
        %v2919 = vstv %s2918
        %v2920 = vmul.f32 %v2919, %v2750
        %v2921 = vmul.f32 %v2919, %v2751
        %2924 = vrot.lane.b32.xlu0 %v2920, 126
        %v2925 = vpop.permute.xlu0 %2924
        %2926 = vrot.lane.b32.xlu0 %v2921, 126
        %v2927 = vpop.permute.xlu0 %2926
        %v2930 = vadd.f32 %v2904, %v2925
        %v2931 = vadd.f32 %v2905, %v2927
        %s2932 = sld [smem:[#allocation8 + $0x7e]]
        %v2933 = vstv %s2932
        %v2934 = vmul.f32 %v2933, %v2750
        %v2935 = vmul.f32 %v2933, %v2751
        %2938 = vrot.lane.b32.xlu0 %v2934, 126
        %v2939 = vpop.permute.xlu0 %2938
        %2940 = vrot.lane.b32.xlu0 %v2935, 126
        %v2941 = vpop.permute.xlu0 %2940
        %v2944 = vadd.f32 %v2910, %v2939
        %v2945 = vadd.f32 %v2911, %v2941
        %s2946 = sld [smem:[#allocation8 + $0xc9]]
        %v2947 = vstv %s2946
        %v2948 = vmul.f32 %v2947, %v2750
        %v2949 = vmul.f32 %v2947, %v2751
        %2952 = vrot.lane.b32.xlu0 %v2948, 126
        %v2953 = vpop.permute.xlu0 %2952
        %2954 = vrot.lane.b32.xlu0 %v2949, 126
        %v2955 = vpop.permute.xlu0 %2954
        %v2958 = vadd.f32 %v2916, %v2953
        %v2959 = vadd.f32 %v2917, %v2955
        %s2960 = sld [smem:[#allocation8 + $0x38]]
        %v2961 = vstv %s2960
        %v2962 = vmul.f32 %v2961, %v2750
        %v2963 = vmul.f32 %v2961, %v2751
        %v2966 = vrot.slane %v2962, 2
        %v2967 = vrot.slane %v2963, 2
        %v2968 = vsel %vm446, %v2966, %v2967
        %2969 = vrot.lane.b32.xlu0 %v2968, 126
        %v2970 = vpop.permute.xlu0 %2969
        %2971 = vrot.lane.b32.xlu0 %v2967, 126
        %v2972 = vpop.permute.xlu0 %2971
        %v2975 = vadd.f32 %v2930, %v2970
        %v2976 = vadd.f32 %v2931, %v2972
        %s2977 = sld [smem:[#allocation8 + $0x83]]
        %v2978 = vstv %s2977
        %v2979 = vmul.f32 %v2978, %v2750
        %v2980 = vmul.f32 %v2978, %v2751
        %v2983 = vrot.slane %v2979, 2
        %v2984 = vrot.slane %v2980, 2
        %v2985 = vsel %vm446, %v2983, %v2984
        %2986 = vrot.lane.b32.xlu0 %v2985, 126
        %v2987 = vpop.permute.xlu0 %2986
        %2988 = vrot.lane.b32.xlu0 %v2984, 126
        %v2989 = vpop.permute.xlu0 %2988
        %v2992 = vadd.f32 %v2944, %v2987
        %v2993 = vadd.f32 %v2945, %v2989
        %s2994 = sld [smem:[#allocation8 + $0xce]]
        %v2995 = vstv %s2994
        %v2996 = vmul.f32 %v2995, %v2750
        %v2997 = vmul.f32 %v2995, %v2751
        %v3000 = vrot.slane %v2996, 2
        %v3001 = vrot.slane %v2997, 2
        %v3002 = vsel %vm446, %v3000, %v3001
        %3003 = vrot.lane.b32.xlu0 %v3002, 126
        %v3004 = vpop.permute.xlu0 %3003
        %3005 = vrot.lane.b32.xlu0 %v3001, 126
        %v3006 = vpop.permute.xlu0 %3005
        %v3009 = vadd.f32 %v2958, %v3004
        %v3010 = vadd.f32 %v2959, %v3006
        %s3011 = sld [smem:[#allocation8 + $0x3d]]
        %v3012 = vstv %s3011
        %v3013 = vmul.f32 %v3012, %v2750
        %v3014 = vmul.f32 %v3012, %v2751
        %v3017 = vrot.slane %v3013, 4
        %v3018 = vrot.slane %v3014, 4
        %v3019 = vsel %vm486, %v3017, %v3018
        %3020 = vrot.lane.b32.xlu0 %v3019, 126
        %v3021 = vpop.permute.xlu0 %3020
        %3022 = vrot.lane.b32.xlu0 %v3018, 126
        %v3023 = vpop.permute.xlu0 %3022
        %v3026 = vadd.f32 %v2975, %v3021
        %v3027 = vadd.f32 %v2976, %v3023
        %s3028 = sld [smem:[#allocation8 + $0x88]]
        %v3029 = vstv %s3028
        %v3030 = vmul.f32 %v3029, %v2750
        %v3031 = vmul.f32 %v3029, %v2751
        %v3034 = vrot.slane %v3030, 4
        %v3035 = vrot.slane %v3031, 4
        %v3036 = vsel %vm486, %v3034, %v3035
        %3037 = vrot.lane.b32.xlu0 %v3036, 126
        %v3038 = vpop.permute.xlu0 %3037
        %3039 = vrot.lane.b32.xlu0 %v3035, 126
        %v3040 = vpop.permute.xlu0 %3039
        %v3043 = vadd.f32 %v2992, %v3038
        %v3044 = vadd.f32 %v2993, %v3040
        %s3045 = sld [smem:[#allocation8 + $0xd3]]
        %v3046 = vstv %s3045
        %v3047 = vmul.f32 %v3046, %v2750
        %v3048 = vmul.f32 %v3046, %v2751
        %v3051 = vrot.slane %v3047, 4
        %v3052 = vrot.slane %v3048, 4
        %v3053 = vsel %vm486, %v3051, %v3052
        %3054 = vrot.lane.b32.xlu0 %v3053, 126
        %v3055 = vpop.permute.xlu0 %3054
        %3056 = vrot.lane.b32.xlu0 %v3052, 126
        %v3057 = vpop.permute.xlu0 %3056
        %v3060 = vadd.f32 %v3009, %v3055
        %v3061 = vadd.f32 %v3010, %v3057
        %s3062 = sld [smem:[#allocation8 + $0x42]]
        %v3063 = vstv %s3062
        %v3064 = vmul.f32 %v3063, %v2750
        %v3065 = vmul.f32 %v3063, %v2751
        %v3066 = vmul.f32 %v3063, %v2752
        %v3070 = vrot.slane %v3064, 6
        %v3071 = vrot.slane %v3065, 6
        %v3072 = vsel %vm528, %v3070, %v3071
        %v3073 = vrot.slane %v3066, 6
        %v3074 = vsel %vm528, %v3071, %v3073
        %3075 = vrot.lane.b32.xlu0 %v3072, 126
        %v3076 = vpop.permute.xlu0 %3075
        %3077 = vrot.lane.b32.xlu0 %v3074, 126
        %v3078 = vpop.permute.xlu0 %3077
        %v3081 = vadd.f32 %v3026, %v3076
        %v3082 = vadd.f32 %v3027, %v3078
        %s3083 = sld [smem:[#allocation8 + $0x8d]]
        %v3084 = vstv %s3083
        %v3085 = vmul.f32 %v3084, %v2750
        %v3086 = vmul.f32 %v3084, %v2751
        %v3087 = vmul.f32 %v3084, %v2752
        %v3091 = vrot.slane %v3085, 6
        %v3092 = vrot.slane %v3086, 6
        %v3093 = vsel %vm528, %v3091, %v3092
        %v3094 = vrot.slane %v3087, 6
        %v3095 = vsel %vm528, %v3092, %v3094
        %3096 = vrot.lane.b32.xlu0 %v3093, 126
        %v3097 = vpop.permute.xlu0 %3096
        %3098 = vrot.lane.b32.xlu0 %v3095, 126
        %v3099 = vpop.permute.xlu0 %3098
        %v3102 = vadd.f32 %v3043, %v3097
        %v3103 = vadd.f32 %v3044, %v3099
        %s3104 = sld [smem:[#allocation8 + $0xd8]]
        %v3105 = vstv %s3104
        %v3106 = vmul.f32 %v3105, %v2750
        %v3107 = vmul.f32 %v3105, %v2751
        %v3108 = vmul.f32 %v3105, %v2752
        %v3112 = vrot.slane %v3106, 6
        %v3113 = vrot.slane %v3107, 6
        %v3114 = vsel %vm528, %v3112, %v3113
        %v3115 = vrot.slane %v3108, 6
        %v3116 = vsel %vm528, %v3113, %v3115
        %3117 = vrot.lane.b32.xlu0 %v3114, 126
        %v3118 = vpop.permute.xlu0 %3117
        %3119 = vrot.lane.b32.xlu0 %v3116, 126
        %v3120 = vpop.permute.xlu0 %3119
        %v3123 = vadd.f32 %v3060, %v3118
        %v3124 = vadd.f32 %v3061, %v3120
        %s3125 = sld [smem:[#allocation8 + $0x47]]
        %v3126 = vstv %s3125
        %v3127 = vmul.f32 %v3126, %v2751
        %v3128 = vmul.f32 %v3126, %v2752
        %3131 = vrot.lane.b32.xlu0 %v3127, 126
        %v3132 = vpop.permute.xlu0 %3131
        %3133 = vrot.lane.b32.xlu0 %v3128, 126
        %v3134 = vpop.permute.xlu0 %3133
        %v3137 = vadd.f32 %v3081, %v3132
        %v3138 = vadd.f32 %v3082, %v3134
        %s3139 = sld [smem:[#allocation8 + $0x92]]
        %v3140 = vstv %s3139
        %v3141 = vmul.f32 %v3140, %v2751
        %v3142 = vmul.f32 %v3140, %v2752
        %3145 = vrot.lane.b32.xlu0 %v3141, 126
        %v3146 = vpop.permute.xlu0 %3145
        %3147 = vrot.lane.b32.xlu0 %v3142, 126
        %v3148 = vpop.permute.xlu0 %3147
        %v3151 = vadd.f32 %v3102, %v3146
        %v3152 = vadd.f32 %v3103, %v3148
        %s3153 = sld [smem:[#allocation8 + $0xdd]]
        %v3154 = vstv %s3153
        %v3155 = vmul.f32 %v3154, %v2751
        %v3156 = vmul.f32 %v3154, %v2752
        %3159 = vrot.lane.b32.xlu0 %v3155, 126
        %v3160 = vpop.permute.xlu0 %3159
        %3161 = vrot.lane.b32.xlu0 %v3156, 126
        %v3162 = vpop.permute.xlu0 %3161
        %v3165 = vadd.f32 %v3123, %v3160
        %v3166 = vadd.f32 %v3124, %v3162
        %s3167 = sld [smem:[#allocation8 + $0x34]]
        %v3168 = vstv %s3167
        %v3169 = vmul.f32 %v3168, %v2750
        %v3170 = vmul.f32 %v3168, %v2751
        %3173 = vrot.lane.b32.xlu0 %v3169, 124
        %v3174 = vpop.permute.xlu0 %3173
        %3175 = vrot.lane.b32.xlu0 %v3170, 124
        %v3176 = vpop.permute.xlu0 %3175
        %v3179 = vadd.f32 %v3137, %v3174
        %v3180 = vadd.f32 %v3138, %v3176
        %s3181 = sld [smem:[#allocation8 + $0x7f]]
        %v3182 = vstv %s3181
        %v3183 = vmul.f32 %v3182, %v2750
        %v3184 = vmul.f32 %v3182, %v2751
        %3187 = vrot.lane.b32.xlu0 %v3183, 124
        %v3188 = vpop.permute.xlu0 %3187
        %3189 = vrot.lane.b32.xlu0 %v3184, 124
        %v3190 = vpop.permute.xlu0 %3189
        %v3193 = vadd.f32 %v3151, %v3188
        %v3194 = vadd.f32 %v3152, %v3190
        %s3195 = sld [smem:[#allocation8 + $0xca]]
        %v3196 = vstv %s3195
        %v3197 = vmul.f32 %v3196, %v2750
        %v3198 = vmul.f32 %v3196, %v2751
        %3201 = vrot.lane.b32.xlu0 %v3197, 124
        %v3202 = vpop.permute.xlu0 %3201
        %3203 = vrot.lane.b32.xlu0 %v3198, 124
        %v3204 = vpop.permute.xlu0 %3203
        %v3207 = vadd.f32 %v3165, %v3202
        %v3208 = vadd.f32 %v3166, %v3204
        %s3209 = sld [smem:[#allocation8 + $0x39]]
        %v3210 = vstv %s3209
        %v3211 = vmul.f32 %v3210, %v2750
        %v3212 = vmul.f32 %v3210, %v2751
        %v3215 = vrot.slane %v3211, 2
        %v3216 = vrot.slane %v3212, 2
        %v3217 = vsel %vm446, %v3215, %v3216
        %3218 = vrot.lane.b32.xlu0 %v3217, 124
        %v3219 = vpop.permute.xlu0 %3218
        %3220 = vrot.lane.b32.xlu0 %v3216, 124
        %v3221 = vpop.permute.xlu0 %3220
        %v3224 = vadd.f32 %v3179, %v3219
        %v3225 = vadd.f32 %v3180, %v3221
        %s3226 = sld [smem:[#allocation8 + $0x84]]
        %v3227 = vstv %s3226
        %v3228 = vmul.f32 %v3227, %v2750
        %v3229 = vmul.f32 %v3227, %v2751
        %v3232 = vrot.slane %v3228, 2
        %v3233 = vrot.slane %v3229, 2
        %v3234 = vsel %vm446, %v3232, %v3233
        %3235 = vrot.lane.b32.xlu0 %v3234, 124
        %v3236 = vpop.permute.xlu0 %3235
        %3237 = vrot.lane.b32.xlu0 %v3233, 124
        %v3238 = vpop.permute.xlu0 %3237
        %v3241 = vadd.f32 %v3193, %v3236
        %v3242 = vadd.f32 %v3194, %v3238
        %s3243 = sld [smem:[#allocation8 + $0xcf]]
        %v3244 = vstv %s3243
        %v3245 = vmul.f32 %v3244, %v2750
        %v3246 = vmul.f32 %v3244, %v2751
        %v3249 = vrot.slane %v3245, 2
        %v3250 = vrot.slane %v3246, 2
        %v3251 = vsel %vm446, %v3249, %v3250
        %3252 = vrot.lane.b32.xlu0 %v3251, 124
        %v3253 = vpop.permute.xlu0 %3252
        %3254 = vrot.lane.b32.xlu0 %v3250, 124
        %v3255 = vpop.permute.xlu0 %3254
        %v3258 = vadd.f32 %v3207, %v3253
        %v3259 = vadd.f32 %v3208, %v3255
        %s3260 = sld [smem:[#allocation8 + $0x3e]]
        %v3261 = vstv %s3260
        %v3262 = vmul.f32 %v3261, %v2750
        %v3263 = vmul.f32 %v3261, %v2751
        %v3266 = vrot.slane %v3262, 4
        %v3267 = vrot.slane %v3263, 4
        %v3268 = vsel %vm486, %v3266, %v3267
        %3269 = vrot.lane.b32.xlu0 %v3268, 124
        %v3270 = vpop.permute.xlu0 %3269
        %3271 = vrot.lane.b32.xlu0 %v3267, 124
        %v3272 = vpop.permute.xlu0 %3271
        %v3275 = vadd.f32 %v3224, %v3270
        %v3276 = vadd.f32 %v3225, %v3272
        %s3277 = sld [smem:[#allocation8 + $0x89]]
        %v3278 = vstv %s3277
        %v3279 = vmul.f32 %v3278, %v2750
        %v3280 = vmul.f32 %v3278, %v2751
        %v3283 = vrot.slane %v3279, 4
        %v3284 = vrot.slane %v3280, 4
        %v3285 = vsel %vm486, %v3283, %v3284
        %3286 = vrot.lane.b32.xlu0 %v3285, 124
        %v3287 = vpop.permute.xlu0 %3286
        %3288 = vrot.lane.b32.xlu0 %v3284, 124
        %v3289 = vpop.permute.xlu0 %3288
        %v3292 = vadd.f32 %v3241, %v3287
        %v3293 = vadd.f32 %v3242, %v3289
        %s3294 = sld [smem:[#allocation8 + $0xd4]]
        %v3295 = vstv %s3294
        %v3296 = vmul.f32 %v3295, %v2750
        %v3297 = vmul.f32 %v3295, %v2751
        %v3300 = vrot.slane %v3296, 4
        %v3301 = vrot.slane %v3297, 4
        %v3302 = vsel %vm486, %v3300, %v3301
        %3303 = vrot.lane.b32.xlu0 %v3302, 124
        %v3304 = vpop.permute.xlu0 %3303
        %3305 = vrot.lane.b32.xlu0 %v3301, 124
        %v3306 = vpop.permute.xlu0 %3305
        %v3309 = vadd.f32 %v3258, %v3304
        %v3310 = vadd.f32 %v3259, %v3306
        %s3311 = sld [smem:[#allocation8 + $0x43]]
        %v3312 = vstv %s3311
        %v3313 = vmul.f32 %v3312, %v2750
        %v3314 = vmul.f32 %v3312, %v2751
        %v3315 = vmul.f32 %v3312, %v2752
        %v3319 = vrot.slane %v3313, 6
        %v3320 = vrot.slane %v3314, 6
        %v3321 = vsel %vm528, %v3319, %v3320
        %v3322 = vrot.slane %v3315, 6
        %v3323 = vsel %vm528, %v3320, %v3322
        %3324 = vrot.lane.b32.xlu0 %v3321, 124
        %v3325 = vpop.permute.xlu0 %3324
        %3326 = vrot.lane.b32.xlu0 %v3323, 124
        %v3327 = vpop.permute.xlu0 %3326
        %v3330 = vadd.f32 %v3275, %v3325
        %v3331 = vadd.f32 %v3276, %v3327
        %s3332 = sld [smem:[#allocation8 + $0x8e]]
        %v3333 = vstv %s3332
        %v3334 = vmul.f32 %v3333, %v2750
        %v3335 = vmul.f32 %v3333, %v2751
        %v3336 = vmul.f32 %v3333, %v2752
        %v3340 = vrot.slane %v3334, 6
        %v3341 = vrot.slane %v3335, 6
        %v3342 = vsel %vm528, %v3340, %v3341
        %v3343 = vrot.slane %v3336, 6
        %v3344 = vsel %vm528, %v3341, %v3343
        %3345 = vrot.lane.b32.xlu0 %v3342, 124
        %v3346 = vpop.permute.xlu0 %3345
        %3347 = vrot.lane.b32.xlu0 %v3344, 124
        %v3348 = vpop.permute.xlu0 %3347
        %v3351 = vadd.f32 %v3292, %v3346
        %v3352 = vadd.f32 %v3293, %v3348
        %s3353 = sld [smem:[#allocation8 + $0xd9]]
        %v3354 = vstv %s3353
        %v3355 = vmul.f32 %v3354, %v2750
        %v3356 = vmul.f32 %v3354, %v2751
        %v3357 = vmul.f32 %v3354, %v2752
        %v3361 = vrot.slane %v3355, 6
        %v3362 = vrot.slane %v3356, 6
        %v3363 = vsel %vm528, %v3361, %v3362
        %v3364 = vrot.slane %v3357, 6
        %v3365 = vsel %vm528, %v3362, %v3364
        %3366 = vrot.lane.b32.xlu0 %v3363, 124
        %v3367 = vpop.permute.xlu0 %3366
        %3368 = vrot.lane.b32.xlu0 %v3365, 124
        %v3369 = vpop.permute.xlu0 %3368
        %v3372 = vadd.f32 %v3309, %v3367
        %v3373 = vadd.f32 %v3310, %v3369
        %s3374 = sld [smem:[#allocation8 + $0x48]]
        %v3375 = vstv %s3374
        %v3376 = vmul.f32 %v3375, %v2751
        %v3377 = vmul.f32 %v3375, %v2752
        %3380 = vrot.lane.b32.xlu0 %v3376, 124
        %v3381 = vpop.permute.xlu0 %3380
        %3382 = vrot.lane.b32.xlu0 %v3377, 124
        %v3383 = vpop.permute.xlu0 %3382
        %v3386 = vadd.f32 %v3330, %v3381
        %v3387 = vadd.f32 %v3331, %v3383
        %s3388 = sld [smem:[#allocation8 + $0x93]]
        %v3389 = vstv %s3388
        %v3390 = vmul.f32 %v3389, %v2751
        %v3391 = vmul.f32 %v3389, %v2752
        %3394 = vrot.lane.b32.xlu0 %v3390, 124
        %v3395 = vpop.permute.xlu0 %3394
        %3396 = vrot.lane.b32.xlu0 %v3391, 124
        %v3397 = vpop.permute.xlu0 %3396
        %v3400 = vadd.f32 %v3351, %v3395
        %v3401 = vadd.f32 %v3352, %v3397
        %s3402 = sld [smem:[#allocation8 + $0xde]]
        %v3403 = vstv %s3402
        %v3404 = vmul.f32 %v3403, %v2751
        %v3405 = vmul.f32 %v3403, %v2752
        %3408 = vrot.lane.b32.xlu0 %v3404, 124
        %v3409 = vpop.permute.xlu0 %3408
        %3410 = vrot.lane.b32.xlu0 %v3405, 124
        %v3411 = vpop.permute.xlu0 %3410
        %v3414 = vadd.f32 %v3372, %v3409
        %v3415 = vadd.f32 %v3373, %v3411
        %s3416 = sld [smem:[#allocation8 + $0x35]]
        %v3417 = vstv %s3416
        %v3418 = vmul.f32 %v3417, %v2750
        %v3419 = vmul.f32 %v3417, %v2751
        %3422 = vrot.lane.b32.xlu0 %v3418, 122
        %v3423 = vpop.permute.xlu0 %3422
        %3424 = vrot.lane.b32.xlu0 %v3419, 122
        %v3425 = vpop.permute.xlu0 %3424
        %v3428 = vadd.f32 %v3386, %v3423
        %v3429 = vadd.f32 %v3387, %v3425
        %s3430 = sld [smem:[#allocation8 + $0x80]]
        %v3431 = vstv %s3430
        %v3432 = vmul.f32 %v3431, %v2750
        %v3433 = vmul.f32 %v3431, %v2751
        %3436 = vrot.lane.b32.xlu0 %v3432, 122
        %v3437 = vpop.permute.xlu0 %3436
        %3438 = vrot.lane.b32.xlu0 %v3433, 122
        %v3439 = vpop.permute.xlu0 %3438
        %v3442 = vadd.f32 %v3400, %v3437
        %v3443 = vadd.f32 %v3401, %v3439
        %s3444 = sld [smem:[#allocation8 + $0xcb]]
        %v3445 = vstv %s3444
        %v3446 = vmul.f32 %v3445, %v2750
        %v3447 = vmul.f32 %v3445, %v2751
        %3450 = vrot.lane.b32.xlu0 %v3446, 122
        %v3451 = vpop.permute.xlu0 %3450
        %3452 = vrot.lane.b32.xlu0 %v3447, 122
        %v3453 = vpop.permute.xlu0 %3452
        %v3456 = vadd.f32 %v3414, %v3451
        %v3457 = vadd.f32 %v3415, %v3453
        %s3458 = sld [smem:[#allocation8 + $0x3a]]
        %v3459 = vstv %s3458
        %v3460 = vmul.f32 %v3459, %v2750
        %v3461 = vmul.f32 %v3459, %v2751
        %v3464 = vrot.slane %v3460, 2
        %v3465 = vrot.slane %v3461, 2
        %v3466 = vsel %vm446, %v3464, %v3465
        %3467 = vrot.lane.b32.xlu0 %v3466, 122
        %v3468 = vpop.permute.xlu0 %3467
        %3469 = vrot.lane.b32.xlu0 %v3465, 122
        %v3470 = vpop.permute.xlu0 %3469
        %v3473 = vadd.f32 %v3428, %v3468
        %v3474 = vadd.f32 %v3429, %v3470
        %s3475 = sld [smem:[#allocation8 + $0x85]]
        %v3476 = vstv %s3475
        %v3477 = vmul.f32 %v3476, %v2750
        %v3478 = vmul.f32 %v3476, %v2751
        %v3481 = vrot.slane %v3477, 2
        %v3482 = vrot.slane %v3478, 2
        %v3483 = vsel %vm446, %v3481, %v3482
        %3484 = vrot.lane.b32.xlu0 %v3483, 122
        %v3485 = vpop.permute.xlu0 %3484
        %3486 = vrot.lane.b32.xlu0 %v3482, 122
        %v3487 = vpop.permute.xlu0 %3486
        %v3490 = vadd.f32 %v3442, %v3485
        %v3491 = vadd.f32 %v3443, %v3487
        %s3492 = sld [smem:[#allocation8 + $0xd0]]
        %v3493 = vstv %s3492
        %v3494 = vmul.f32 %v3493, %v2750
        %v3495 = vmul.f32 %v3493, %v2751
        %v3498 = vrot.slane %v3494, 2
        %v3499 = vrot.slane %v3495, 2
        %v3500 = vsel %vm446, %v3498, %v3499
        %3501 = vrot.lane.b32.xlu0 %v3500, 122
        %v3502 = vpop.permute.xlu0 %3501
        %3503 = vrot.lane.b32.xlu0 %v3499, 122
        %v3504 = vpop.permute.xlu0 %3503
        %v3507 = vadd.f32 %v3456, %v3502
        %v3508 = vadd.f32 %v3457, %v3504
        %s3509 = sld [smem:[#allocation8 + $0x3f]]
        %v3510 = vstv %s3509
        %v3511 = vmul.f32 %v3510, %v2750
        %v3512 = vmul.f32 %v3510, %v2751
        %v3515 = vrot.slane %v3511, 4
        %v3516 = vrot.slane %v3512, 4
        %v3517 = vsel %vm486, %v3515, %v3516
        %3518 = vrot.lane.b32.xlu0 %v3517, 122
        %v3519 = vpop.permute.xlu0 %3518
        %3520 = vrot.lane.b32.xlu0 %v3516, 122
        %v3521 = vpop.permute.xlu0 %3520
        %v3524 = vadd.f32 %v3473, %v3519
        %v3525 = vadd.f32 %v3474, %v3521
        %s3526 = sld [smem:[#allocation8 + $0x8a]]
        %v3527 = vstv %s3526
        %v3528 = vmul.f32 %v3527, %v2750
        %v3529 = vmul.f32 %v3527, %v2751
        %v3532 = vrot.slane %v3528, 4
        %v3533 = vrot.slane %v3529, 4
        %v3534 = vsel %vm486, %v3532, %v3533
        %3535 = vrot.lane.b32.xlu0 %v3534, 122
        %v3536 = vpop.permute.xlu0 %3535
        %3537 = vrot.lane.b32.xlu0 %v3533, 122
        %v3538 = vpop.permute.xlu0 %3537
        %v3541 = vadd.f32 %v3490, %v3536
        %v3542 = vadd.f32 %v3491, %v3538
        %s3543 = sld [smem:[#allocation8 + $0xd5]]
        %v3544 = vstv %s3543
        %v3545 = vmul.f32 %v3544, %v2750
        %v3546 = vmul.f32 %v3544, %v2751
        %v3549 = vrot.slane %v3545, 4
        %v3550 = vrot.slane %v3546, 4
        %v3551 = vsel %vm486, %v3549, %v3550
        %3552 = vrot.lane.b32.xlu0 %v3551, 122
        %v3553 = vpop.permute.xlu0 %3552
        %3554 = vrot.lane.b32.xlu0 %v3550, 122
        %v3555 = vpop.permute.xlu0 %3554
        %v3558 = vadd.f32 %v3507, %v3553
        %v3559 = vadd.f32 %v3508, %v3555
        %s3560 = sld [smem:[#allocation8 + $0x44]]
        %v3561 = vstv %s3560
        %v3562 = vmul.f32 %v3561, %v2750
        %v3563 = vmul.f32 %v3561, %v2751
        %v3564 = vmul.f32 %v3561, %v2752
        %v3568 = vrot.slane %v3562, 6
        %v3569 = vrot.slane %v3563, 6
        %v3570 = vsel %vm528, %v3568, %v3569
        %v3571 = vrot.slane %v3564, 6
        %v3572 = vsel %vm528, %v3569, %v3571
        %3573 = vrot.lane.b32.xlu0 %v3570, 122
        %v3574 = vpop.permute.xlu0 %3573
        %3575 = vrot.lane.b32.xlu0 %v3572, 122
        %v3576 = vpop.permute.xlu0 %3575
        %v3579 = vadd.f32 %v3524, %v3574
        %v3580 = vadd.f32 %v3525, %v3576
        %s3581 = sld [smem:[#allocation8 + $0x8f]]
        %v3582 = vstv %s3581
        %v3583 = vmul.f32 %v3582, %v2750
        %v3584 = vmul.f32 %v3582, %v2751
        %v3585 = vmul.f32 %v3582, %v2752
        %v3589 = vrot.slane %v3583, 6
        %v3590 = vrot.slane %v3584, 6
        %v3591 = vsel %vm528, %v3589, %v3590
        %v3592 = vrot.slane %v3585, 6
        %v3593 = vsel %vm528, %v3590, %v3592
        %3594 = vrot.lane.b32.xlu0 %v3591, 122
        %v3595 = vpop.permute.xlu0 %3594
        %3596 = vrot.lane.b32.xlu0 %v3593, 122
        %v3597 = vpop.permute.xlu0 %3596
        %v3600 = vadd.f32 %v3541, %v3595
        %v3601 = vadd.f32 %v3542, %v3597
        %s3602 = sld [smem:[#allocation8 + $0xda]]
        %v3603 = vstv %s3602
        %v3604 = vmul.f32 %v3603, %v2750
        %v3605 = vmul.f32 %v3603, %v2751
        %v3606 = vmul.f32 %v3603, %v2752
        %v3610 = vrot.slane %v3604, 6
        %v3611 = vrot.slane %v3605, 6
        %v3612 = vsel %vm528, %v3610, %v3611
        %v3613 = vrot.slane %v3606, 6
        %v3614 = vsel %vm528, %v3611, %v3613
        %3615 = vrot.lane.b32.xlu0 %v3612, 122
        %v3616 = vpop.permute.xlu0 %3615
        %3617 = vrot.lane.b32.xlu0 %v3614, 122
        %v3618 = vpop.permute.xlu0 %3617
        %v3621 = vadd.f32 %v3558, %v3616
        %v3622 = vadd.f32 %v3559, %v3618
        %s3623 = sld [smem:[#allocation8 + $0x49]]
        %v3624 = vstv %s3623
        %v3625 = vmul.f32 %v3624, %v2751
        %v3626 = vmul.f32 %v3624, %v2752
        %3629 = vrot.lane.b32.xlu0 %v3625, 122
        %v3630 = vpop.permute.xlu0 %3629
        %3631 = vrot.lane.b32.xlu0 %v3626, 122
        %v3632 = vpop.permute.xlu0 %3631
        %v3635 = vadd.f32 %v3579, %v3630
        %v3636 = vadd.f32 %v3580, %v3632
        %s3637 = sld [smem:[#allocation8 + $0x94]]
        %v3638 = vstv %s3637
        %v3639 = vmul.f32 %v3638, %v2751
        %v3640 = vmul.f32 %v3638, %v2752
        %3643 = vrot.lane.b32.xlu0 %v3639, 122
        %v3644 = vpop.permute.xlu0 %3643
        %3645 = vrot.lane.b32.xlu0 %v3640, 122
        %v3646 = vpop.permute.xlu0 %3645
        %v3649 = vadd.f32 %v3600, %v3644
        %v3650 = vadd.f32 %v3601, %v3646
        %s3651 = sld [smem:[#allocation8 + $0xdf]]
        %v3652 = vstv %s3651
        %v3653 = vmul.f32 %v3652, %v2751
        %v3654 = vmul.f32 %v3652, %v2752
        %3657 = vrot.lane.b32.xlu0 %v3653, 122
        %v3658 = vpop.permute.xlu0 %3657
        %3659 = vrot.lane.b32.xlu0 %v3654, 122
        %v3660 = vpop.permute.xlu0 %3659
        %v3663 = vadd.f32 %v3621, %v3658
        %v3664 = vadd.f32 %v3622, %v3660
        %s3665 = sld [smem:[#allocation8 + $0x36]]
        %v3666 = vstv %s3665
        %v3667 = vmul.f32 %v3666, %v2750
        %v3668 = vmul.f32 %v3666, %v2751
        %3671 = vrot.lane.b32.xlu0 %v3667, 120
        %v3672 = vpop.permute.xlu0 %3671
        %3673 = vrot.lane.b32.xlu0 %v3668, 120
        %v3674 = vpop.permute.xlu0 %3673
        %v3677 = vadd.f32 %v3635, %v3672
        %v3678 = vadd.f32 %v3636, %v3674
        %s3679 = sld [smem:[#allocation8 + $0x81]]
        %v3680 = vstv %s3679
        %v3681 = vmul.f32 %v3680, %v2750
        %v3682 = vmul.f32 %v3680, %v2751
        %3685 = vrot.lane.b32.xlu0 %v3681, 120
        %v3686 = vpop.permute.xlu0 %3685
        %3687 = vrot.lane.b32.xlu0 %v3682, 120
        %v3688 = vpop.permute.xlu0 %3687
        %v3691 = vadd.f32 %v3649, %v3686
        %v3692 = vadd.f32 %v3650, %v3688
        %s3693 = sld [smem:[#allocation8 + $0xcc]]
        %v3694 = vstv %s3693
        %v3695 = vmul.f32 %v3694, %v2750
        %v3696 = vmul.f32 %v3694, %v2751
        %3699 = vrot.lane.b32.xlu0 %v3695, 120
        %v3700 = vpop.permute.xlu0 %3699
        %3701 = vrot.lane.b32.xlu0 %v3696, 120
        %v3702 = vpop.permute.xlu0 %3701
        %v3705 = vadd.f32 %v3663, %v3700
        %v3706 = vadd.f32 %v3664, %v3702
        %s3707 = sld [smem:[#allocation8 + $0x3b]]
        %v3708 = vstv %s3707
        %v3709 = vmul.f32 %v3708, %v2750
        %v3710 = vmul.f32 %v3708, %v2751
        %v3713 = vrot.slane %v3709, 2
        %v3714 = vrot.slane %v3710, 2
        %v3715 = vsel %vm446, %v3713, %v3714
        %3716 = vrot.lane.b32.xlu0 %v3715, 120
        %v3717 = vpop.permute.xlu0 %3716
        %3718 = vrot.lane.b32.xlu0 %v3714, 120
        %v3719 = vpop.permute.xlu0 %3718
        %v3722 = vadd.f32 %v3677, %v3717
        %v3723 = vadd.f32 %v3678, %v3719
        %s3724 = sld [smem:[#allocation8 + $0x86]]
        %v3725 = vstv %s3724
        %v3726 = vmul.f32 %v3725, %v2750
        %v3727 = vmul.f32 %v3725, %v2751
        %v3730 = vrot.slane %v3726, 2
        %v3731 = vrot.slane %v3727, 2
        %v3732 = vsel %vm446, %v3730, %v3731
        %3733 = vrot.lane.b32.xlu0 %v3732, 120
        %v3734 = vpop.permute.xlu0 %3733
        %3735 = vrot.lane.b32.xlu0 %v3731, 120
        %v3736 = vpop.permute.xlu0 %3735
        %v3739 = vadd.f32 %v3691, %v3734
        %v3740 = vadd.f32 %v3692, %v3736
        %s3741 = sld [smem:[#allocation8 + $0xd1]]
        %v3742 = vstv %s3741
        %v3743 = vmul.f32 %v3742, %v2750
        %v3744 = vmul.f32 %v3742, %v2751
        %v3747 = vrot.slane %v3743, 2
        %v3748 = vrot.slane %v3744, 2
        %v3749 = vsel %vm446, %v3747, %v3748
        %3750 = vrot.lane.b32.xlu0 %v3749, 120
        %v3751 = vpop.permute.xlu0 %3750
        %3752 = vrot.lane.b32.xlu0 %v3748, 120
        %v3753 = vpop.permute.xlu0 %3752
        %v3756 = vadd.f32 %v3705, %v3751
        %v3757 = vadd.f32 %v3706, %v3753
        %s3758 = sld [smem:[#allocation8 + $0x40]]
        %v3759 = vstv %s3758
        %v3760 = vmul.f32 %v3759, %v2750
        %v3761 = vmul.f32 %v3759, %v2751
        %v3764 = vrot.slane %v3760, 4
        %v3765 = vrot.slane %v3761, 4
        %v3766 = vsel %vm486, %v3764, %v3765
        %3767 = vrot.lane.b32.xlu0 %v3766, 120
        %v3768 = vpop.permute.xlu0 %3767
        %3769 = vrot.lane.b32.xlu0 %v3765, 120
        %v3770 = vpop.permute.xlu0 %3769
        %v3773 = vadd.f32 %v3722, %v3768
        %v3774 = vadd.f32 %v3723, %v3770
        %s3775 = sld [smem:[#allocation8 + $0x8b]]
        %v3776 = vstv %s3775
        %v3777 = vmul.f32 %v3776, %v2750
        %v3778 = vmul.f32 %v3776, %v2751
        %v3781 = vrot.slane %v3777, 4
        %v3782 = vrot.slane %v3778, 4
        %v3783 = vsel %vm486, %v3781, %v3782
        %3784 = vrot.lane.b32.xlu0 %v3783, 120
        %v3785 = vpop.permute.xlu0 %3784
        %3786 = vrot.lane.b32.xlu0 %v3782, 120
        %v3787 = vpop.permute.xlu0 %3786
        %v3790 = vadd.f32 %v3739, %v3785
        %v3791 = vadd.f32 %v3740, %v3787
        %s3792 = sld [smem:[#allocation8 + $0xd6]]
        %v3793 = vstv %s3792
        %v3794 = vmul.f32 %v3793, %v2750
        %v3795 = vmul.f32 %v3793, %v2751
        %v3798 = vrot.slane %v3794, 4
        %v3799 = vrot.slane %v3795, 4
        %v3800 = vsel %vm486, %v3798, %v3799
        %3801 = vrot.lane.b32.xlu0 %v3800, 120
        %v3802 = vpop.permute.xlu0 %3801
        %3803 = vrot.lane.b32.xlu0 %v3799, 120
        %v3804 = vpop.permute.xlu0 %3803
        %v3807 = vadd.f32 %v3756, %v3802
        %v3808 = vadd.f32 %v3757, %v3804
        %s3809 = sld [smem:[#allocation8 + $0x45]]
        %v3810 = vstv %s3809
        %v3811 = vmul.f32 %v3810, %v2750
        %v3812 = vmul.f32 %v3810, %v2751
        %v3813 = vmul.f32 %v3810, %v2752
        %v3817 = vrot.slane %v3811, 6
        %v3818 = vrot.slane %v3812, 6
        %v3819 = vsel %vm528, %v3817, %v3818
        %v3820 = vrot.slane %v3813, 6
        %v3821 = vsel %vm528, %v3818, %v3820
        %3822 = vrot.lane.b32.xlu0 %v3819, 120
        %v3823 = vpop.permute.xlu0 %3822
        %3824 = vrot.lane.b32.xlu0 %v3821, 120
        %v3825 = vpop.permute.xlu0 %3824
        %v3828 = vadd.f32 %v3773, %v3823
        %v3829 = vadd.f32 %v3774, %v3825
        %s3830 = sld [smem:[#allocation8 + $0x90]]
        %v3831 = vstv %s3830
        %v3832 = vmul.f32 %v3831, %v2750
        %v3833 = vmul.f32 %v3831, %v2751
        %v3834 = vmul.f32 %v3831, %v2752
        %v3838 = vrot.slane %v3832, 6
        %v3839 = vrot.slane %v3833, 6
        %v3840 = vsel %vm528, %v3838, %v3839
        %v3841 = vrot.slane %v3834, 6
        %v3842 = vsel %vm528, %v3839, %v3841
        %3843 = vrot.lane.b32.xlu0 %v3840, 120
        %v3844 = vpop.permute.xlu0 %3843
        %3845 = vrot.lane.b32.xlu0 %v3842, 120
        %v3846 = vpop.permute.xlu0 %3845
        %v3849 = vadd.f32 %v3790, %v3844
        %v3850 = vadd.f32 %v3791, %v3846
        %s3851 = sld [smem:[#allocation8 + $0xdb]]
        %v3852 = vstv %s3851
        %v3853 = vmul.f32 %v3852, %v2750
        %v3854 = vmul.f32 %v3852, %v2751
        %v3855 = vmul.f32 %v3852, %v2752
        %v3859 = vrot.slane %v3853, 6
        %v3860 = vrot.slane %v3854, 6
        %v3861 = vsel %vm528, %v3859, %v3860
        %v3862 = vrot.slane %v3855, 6
        %v3863 = vsel %vm528, %v3860, %v3862
        %3864 = vrot.lane.b32.xlu0 %v3861, 120
        %v3865 = vpop.permute.xlu0 %3864
        %3866 = vrot.lane.b32.xlu0 %v3863, 120
        %v3867 = vpop.permute.xlu0 %3866
        %v3870 = vadd.f32 %v3807, %v3865
        %v3871 = vadd.f32 %v3808, %v3867
        %s3872 = sld [smem:[#allocation8 + $0x4a]]
        %v3873 = vstv %s3872
        %v3874 = vmul.f32 %v3873, %v2751
        %v3875 = vmul.f32 %v3873, %v2752
        %3878 = vrot.lane.b32.xlu0 %v3874, 120
        %v3879 = vpop.permute.xlu0 %3878
        %3880 = vrot.lane.b32.xlu0 %v3875, 120
        %v3881 = vpop.permute.xlu0 %3880
        %v3884 = vadd.f32 %v3828, %v3879
        %v3885 = vadd.f32 %v3829, %v3881
        %s3886 = sld [smem:[#allocation8 + $0x95]]
        %v3887 = vstv %s3886
        %v3888 = vmul.f32 %v3887, %v2751
        %v3889 = vmul.f32 %v3887, %v2752
        %3892 = vrot.lane.b32.xlu0 %v3888, 120
        %v3893 = vpop.permute.xlu0 %3892
        %3894 = vrot.lane.b32.xlu0 %v3889, 120
        %v3895 = vpop.permute.xlu0 %3894
        %v3898 = vadd.f32 %v3849, %v3893
        %v3899 = vadd.f32 %v3850, %v3895
        %s3900 = sld [smem:[#allocation8 + $0xe0]]
        %v3901 = vstv %s3900
        %v3902 = vmul.f32 %v3901, %v2751
        %v3903 = vmul.f32 %v3901, %v2752
        %3906 = vrot.lane.b32.xlu0 %v3902, 120
        %v3907 = vpop.permute.xlu0 %3906
        %3908 = vrot.lane.b32.xlu0 %v3903, 120
        %v3909 = vpop.permute.xlu0 %3908
        %v3912 = vadd.f32 %v3870, %v3907
        %v3913 = vadd.f32 %v3871, %v3909
        %v3914 = vmul.f32 %v366, 0.1
        %v3915 = vmul.f32 %v367, 0.1
        %v3916 = vmul.f32 %v3884, 0.1
        %v3917 = vmul.f32 %v3885, 0.1
        %vm3918 = vcmp.gt.f32.partialorder %v3884, 0.0
        %vm3919 = vcmp.gt.f32.partialorder %v3885, 0.0
        %vm3920 = vcmp.gt.f32.partialorder %v366, 0.0
        %vm3921 = vcmp.gt.f32.partialorder %v367, 0.0
        %3924 = vrot.lane.b32.xlu0 %v3916, 4
        %v3925 = vpop.permute.xlu0 %3924
        %3926 = vrot.lane.b32.xlu0 %v3917, 4
        %v3927 = vpop.permute.xlu0 %3926
        %v3930 = vsel %vm3920, %v3914, %v3925
        %v3931 = vsel %vm3921, %v3915, %v3927
        %3934 = vrot.lane.b32.xlu0 %v3914, 124
        %v3935 = vpop.permute.xlu0 %3934
        %3936 = vrot.lane.b32.xlu0 %v3915, 124
        %v3937 = vpop.permute.xlu0 %3936
        %3942 = vrot.lane.b32.xlu0 %v3930, 124
        %v3943 = vpop.permute.xlu0 %3942
        %3944 = vrot.lane.b32.xlu0 %v3931, 124
        %v3945 = vpop.permute.xlu0 %3944
        %v3948 = vsel %vm3918, %v3935, %v3943
        %v3949 = vsel %vm3919, %v3937, %v3945
        %v3950 = vsel %vm3918, %v3916, %v3943
        %v3951 = vsel %vm3919, %v3917, %v3945
        %3954 = vrot.lane.b32.xlu0 %v366, 124
        %v3955 = vpop.permute.xlu0 %3954
        %3956 = vrot.lane.b32.xlu0 %v367, 124
        %v3957 = vpop.permute.xlu0 %3956
        %v3960 = vsel %vm3918, %v3955, %v3943
        %v3961 = vsel %vm3919, %v3957, %v3945
        %vm3962 = vcmask 97280
        %3963 = vst.msk [vmem:[%s288] sm:$0xff] %vm3962, %v3960
        %vm3964 = vcmask 93184
        %3965 = vst.msk [vmem:[%s288 + $0x8] sm:$0xf] %vm3964, %v3961
        %v3966 = vsel %vm3918, %v3884, %v3943
        %v3967 = vsel %vm3919, %v3885, %v3945
        %s3968 = scalar_lea.vmem %s288, 96 [#allocation12]
        %3969 = vst.msk [vmem:[%s3968] sm:$0xff] %vm3962, %v3966
        %3970 = vst.msk [vmem:[%s3968 + $0x8] sm:$0xf] %vm3964, %v3967
        %v3971 = vsub.f32 0.0, %v366
        %v3972 = vsub.f32 0.0, %v367
        %3975 = vrot.lane.b32.xlu0 %v3971, 124
        %v3976 = vpop.permute.xlu0 %3975
        %3977 = vrot.lane.b32.xlu0 %v3972, 124
        %v3978 = vpop.permute.xlu0 %3977
        %v3981 = vsel %vm3918, %v3976, %v3943
        %v3982 = vsel %vm3919, %v3978, %v3945
        %s3983 = scalar_lea.vmem %s288, 192 [#allocation12]
        %3984 = vst.msk [vmem:[%s3983] sm:$0xff] %vm3962, %v3981
        %3985 = vst.msk [vmem:[%s3983 + $0x8] sm:$0xf] %vm3964, %v3982
        %v3986 = vsub.f32 0.0, %v3884
        %v3987 = vsub.f32 0.0, %v3885
        %v3988 = vsel %vm3918, %v3986, %v3943
        %v3989 = vsel %vm3919, %v3987, %v3945
        %s3990 = scalar_lea.vmem %s288, 288 [#allocation12]
        %3991 = vst.msk [vmem:[%s3990] sm:$0xff] %vm3962, %v3988
        %3992 = vst.msk [vmem:[%s3990 + $0x8] sm:$0xf] %vm3964, %v3989
        %s3993 = scalar_lea.vmem %s288, 48 [#allocation12]
        %3994 = vst.msk [vmem:[%s3993] sm:$0xff] %vm3962, %v3948
        %3995 = vst.msk [vmem:[%s3993 + $0x8] sm:$0xf] %vm3964, %v3949
        %s3996 = scalar_lea.vmem %s288, 240 [#allocation12]
        %3997 = vst.msk [vmem:[%s3996] sm:$0xff] %vm3962, %v3948
        %3998 = vst.msk [vmem:[%s3996 + $0x8] sm:$0xf] %vm3964, %v3949
        %s3999 = scalar_lea.vmem %s288, 144 [#allocation12]
        %4000 = vst.msk [vmem:[%s3999] sm:$0xff] %vm3962, %v3950
        %4001 = vst.msk [vmem:[%s3999 + $0x8] sm:$0xf] %vm3964, %v3951
        %s4002 = scalar_lea.vmem %s288, 336 [#allocation12]
        %4003 = vst.msk [vmem:[%s4002] sm:$0xff] %vm3962, %v3950
        %4004 = vst.msk [vmem:[%s4002 + $0x8] sm:$0xf] %vm3964, %v3951
        %v4005 = vmul.f32 %v387, 0.1
        %v4006 = vmul.f32 %v388, 0.1
        %v4007 = vmul.f32 %v3898, 0.1
        %v4008 = vmul.f32 %v3899, 0.1
        %vm4009 = vcmp.gt.f32.partialorder %v3898, 0.0
        %vm4010 = vcmp.gt.f32.partialorder %v3899, 0.0
        %vm4011 = vcmp.gt.f32.partialorder %v387, 0.0
        %vm4012 = vcmp.gt.f32.partialorder %v388, 0.0
        %4015 = vrot.lane.b32.xlu0 %v4007, 4
        %v4016 = vpop.permute.xlu0 %4015
        %4017 = vrot.lane.b32.xlu0 %v4008, 4
        %v4018 = vpop.permute.xlu0 %4017
        %v4021 = vsel %vm4011, %v4005, %v4016
        %v4022 = vsel %vm4012, %v4006, %v4018
        %4025 = vrot.lane.b32.xlu0 %v4005, 124
        %v4026 = vpop.permute.xlu0 %4025
        %4027 = vrot.lane.b32.xlu0 %v4006, 124
        %v4028 = vpop.permute.xlu0 %4027
        %4033 = vrot.lane.b32.xlu0 %v4021, 124
        %v4034 = vpop.permute.xlu0 %4033
        %4035 = vrot.lane.b32.xlu0 %v4022, 124
        %v4036 = vpop.permute.xlu0 %4035
        %v4039 = vsel %vm4009, %v4026, %v4034
        %v4040 = vsel %vm4010, %v4028, %v4036
        %v4041 = vsel %vm4009, %v4007, %v4034
        %v4042 = vsel %vm4010, %v4008, %v4036
        %4045 = vrot.lane.b32.xlu0 %v387, 124
        %v4046 = vpop.permute.xlu0 %4045
        %4047 = vrot.lane.b32.xlu0 %v388, 124
        %v4048 = vpop.permute.xlu0 %4047
        %v4051 = vsel %vm4009, %v4046, %v4034
        %v4052 = vsel %vm4010, %v4048, %v4036
        %s4053 = scalar_lea.vmem %s288, 16 [#allocation12]
        %4054 = vst.msk [vmem:[%s4053] sm:$0xff] %vm3962, %v4051
        %4055 = vst.msk [vmem:[%s4053 + $0x8] sm:$0xf] %vm3964, %v4052
        %v4056 = vsel %vm4009, %v3898, %v4034
        %v4057 = vsel %vm4010, %v3899, %v4036
        %s4058 = scalar_lea.vmem %s288, 112 [#allocation12]
        %4059 = vst.msk [vmem:[%s4058] sm:$0xff] %vm3962, %v4056
        %4060 = vst.msk [vmem:[%s4058 + $0x8] sm:$0xf] %vm3964, %v4057
        %v4061 = vsub.f32 0.0, %v387
        %v4062 = vsub.f32 0.0, %v388
        %4065 = vrot.lane.b32.xlu0 %v4061, 124
        %v4066 = vpop.permute.xlu0 %4065
        %4067 = vrot.lane.b32.xlu0 %v4062, 124
        %v4068 = vpop.permute.xlu0 %4067
        %v4071 = vsel %vm4009, %v4066, %v4034
        %v4072 = vsel %vm4010, %v4068, %v4036
        %s4073 = scalar_lea.vmem %s288, 208 [#allocation12]
        %4074 = vst.msk [vmem:[%s4073] sm:$0xff] %vm3962, %v4071
        %4075 = vst.msk [vmem:[%s4073 + $0x8] sm:$0xf] %vm3964, %v4072
        %v4076 = vsub.f32 0.0, %v3898
        %v4077 = vsub.f32 0.0, %v3899
        %v4078 = vsel %vm4009, %v4076, %v4034
        %v4079 = vsel %vm4010, %v4077, %v4036
        %s4080 = scalar_lea.vmem %s288, 304 [#allocation12]
        %4081 = vst.msk [vmem:[%s4080] sm:$0xff] %vm3962, %v4078
        %4082 = vst.msk [vmem:[%s4080 + $0x8] sm:$0xf] %vm3964, %v4079
        %s4083 = scalar_lea.vmem %s288, 64 [#allocation12]
        %4084 = vst.msk [vmem:[%s4083] sm:$0xff] %vm3962, %v4039
        %4085 = vst.msk [vmem:[%s4083 + $0x8] sm:$0xf] %vm3964, %v4040
        %s4086 = scalar_lea.vmem %s288, 256 [#allocation12]
        %4087 = vst.msk [vmem:[%s4086] sm:$0xff] %vm3962, %v4039
        %4088 = vst.msk [vmem:[%s4086 + $0x8] sm:$0xf] %vm3964, %v4040
        %s4089 = scalar_lea.vmem %s288, 160 [#allocation12]
        %4090 = vst.msk [vmem:[%s4089] sm:$0xff] %vm3962, %v4041
        %4091 = vst.msk [vmem:[%s4089 + $0x8] sm:$0xf] %vm3964, %v4042
        %s4092 = scalar_lea.vmem %s288, 352 [#allocation12]
        %4093 = vst.msk [vmem:[%s4092] sm:$0xff] %vm3962, %v4041
        %4094 = vst.msk [vmem:[%s4092 + $0x8] sm:$0xf] %vm3964, %v4042
        %v4095 = vmul.f32 %v408, 0.1
        %v4096 = vmul.f32 %v409, 0.1
        %v4097 = vmul.f32 %v3912, 0.1
        %v4098 = vmul.f32 %v3913, 0.1
        %vm4099 = vcmp.gt.f32.partialorder %v3912, 0.0
        %vm4100 = vcmp.gt.f32.partialorder %v3913, 0.0
        %vm4101 = vcmp.gt.f32.partialorder %v408, 0.0
        %vm4102 = vcmp.gt.f32.partialorder %v409, 0.0
        %4105 = vrot.lane.b32.xlu0 %v4097, 4
        %v4106 = vpop.permute.xlu0 %4105
        %4107 = vrot.lane.b32.xlu0 %v4098, 4
        %v4108 = vpop.permute.xlu0 %4107
        %v4111 = vsel %vm4101, %v4095, %v4106
        %v4112 = vsel %vm4102, %v4096, %v4108
        %4115 = vrot.lane.b32.xlu0 %v4095, 124
        %v4116 = vpop.permute.xlu0 %4115
        %4117 = vrot.lane.b32.xlu0 %v4096, 124
        %v4118 = vpop.permute.xlu0 %4117
        %4123 = vrot.lane.b32.xlu0 %v4111, 124
        %v4124 = vpop.permute.xlu0 %4123
        %4125 = vrot.lane.b32.xlu0 %v4112, 124
        %v4126 = vpop.permute.xlu0 %4125
        %v4129 = vsel %vm4099, %v4116, %v4124
        %v4130 = vsel %vm4100, %v4118, %v4126
        %v4131 = vsel %vm4099, %v4097, %v4124
        %v4132 = vsel %vm4100, %v4098, %v4126
        %4135 = vrot.lane.b32.xlu0 %v408, 124
        %v4136 = vpop.permute.xlu0 %4135
        %4137 = vrot.lane.b32.xlu0 %v409, 124
        %v4138 = vpop.permute.xlu0 %4137
        %v4141 = vsel %vm4099, %v4136, %v4124
        %v4142 = vsel %vm4100, %v4138, %v4126
        %s4143 = scalar_lea.vmem %s288, 32 [#allocation12]
        %4144 = vst.msk [vmem:[%s4143] sm:$0xff] %vm3962, %v4141
        %4145 = vst.msk [vmem:[%s4143 + $0x8] sm:$0xf] %vm3964, %v4142
        %v4146 = vsel %vm4099, %v3912, %v4124
        %v4147 = vsel %vm4100, %v3913, %v4126
        %s4148 = scalar_lea.vmem %s288, 128 [#allocation12]
        %4149 = vst.msk [vmem:[%s4148] sm:$0xff] %vm3962, %v4146
        %4150 = vst.msk [vmem:[%s4148 + $0x8] sm:$0xf] %vm3964, %v4147
        %v4151 = vsub.f32 0.0, %v408
        %v4152 = vsub.f32 0.0, %v409
        %4155 = vrot.lane.b32.xlu0 %v4151, 124
        %v4156 = vpop.permute.xlu0 %4155
        %4157 = vrot.lane.b32.xlu0 %v4152, 124
        %v4158 = vpop.permute.xlu0 %4157
        %v4161 = vsel %vm4099, %v4156, %v4124
        %v4162 = vsel %vm4100, %v4158, %v4126
        %s4163 = scalar_lea.vmem %s288, 224 [#allocation12]
        %4164 = vst.msk [vmem:[%s4163] sm:$0xff] %vm3962, %v4161
        %4165 = vst.msk [vmem:[%s4163 + $0x8] sm:$0xf] %vm3964, %v4162
        %v4166 = vsub.f32 0.0, %v3912
        %v4167 = vsub.f32 0.0, %v3913
        %v4168 = vsel %vm4099, %v4166, %v4124
        %v4169 = vsel %vm4100, %v4167, %v4126
        %s4170 = scalar_lea.vmem %s288, 320 [#allocation12]
        %4171 = vst.msk [vmem:[%s4170] sm:$0xff] %vm3962, %v4168
        %4172 = vst.msk [vmem:[%s4170 + $0x8] sm:$0xf] %vm3964, %v4169
        %s4173 = scalar_lea.vmem %s288, 80 [#allocation12]
        %4174 = vst.msk [vmem:[%s4173] sm:$0xff] %vm3962, %v4129
        %4175 = vst.msk [vmem:[%s4173 + $0x8] sm:$0xf] %vm3964, %v4130
        %s4176 = scalar_lea.vmem %s288, 272 [#allocation12]
        %4177 = vst.msk [vmem:[%s4176] sm:$0xff] %vm3962, %v4129
        %4178 = vst.msk [vmem:[%s4176 + $0x8] sm:$0xf] %vm3964, %v4130
        %s4179 = scalar_lea.vmem %s288, 176 [#allocation12]
        %4180 = vst.msk [vmem:[%s4179] sm:$0xff] %vm3962, %v4131
        %4181 = vst.msk [vmem:[%s4179 + $0x8] sm:$0xf] %vm3964, %v4132
        %s4182 = scalar_lea.vmem %s288, 368 [#allocation12]
        %4183 = vst.msk [vmem:[%s4182] sm:$0xff] %vm3962, %v4131
        %4184 = vst.msk [vmem:[%s4182 + $0x8] sm:$0xf] %vm3964, %v4132
        %s4185 = sand.u32 %s140, 1
        %s4186 = sand.u32 %s140, 1
        %s4187 = smul.addr %s4186, 384
        %s4188 = scalar_lea.vmem [#allocation12], %s4187
        // Predicated region
        $region61: #{tpu_custom_call.1} parent=39 // pred_check
          %p4189 = pneg %p150
        $region62: #{tpu_custom_call.1} parent=39 // pred_check_branch
          %4191 = sbr.rel (%p4189) target = $region64
        $region63: #{tpu_custom_call.1} parent=39 // pred_region
          %s4192 = smul.addr %s22, 12
          %s4193 = smul.addr %s4192, 8
          %s4194 = scalar_lea.vmem %s5, %s4193
          // Predicated region
          $region65: #{tpu_custom_call.1} parent=63 // pred_check
            _
          $region66: #{tpu_custom_call.1} parent=63 // pred_check_branch
            %4196 = sbr.rel (0) target = $region68
          $region67: #{tpu_custom_call.1} parent=63 // pred_region
            // Predicated region
            $region69: #{tpu_custom_call.1} parent=67 // pred_check
              _
            $region70: #{tpu_custom_call.1} parent=67 // pred_check_branch
              %4198 = sbr.rel (0) target = $region72
            $region71: #{tpu_custom_call.1} parent=67 // pred_region
              // Predicated region
              $region84: #{tpu_custom_call.1} parent=71 // pred_check
                _
              $region85: #{tpu_custom_call.1} parent=71 // pred_check_branch
                %4307 = sbr.rel (0) target = $region87
              $region86: #{tpu_custom_call.1} parent=71 // pred_region
                loop: start=0, step=1, limit=1
                $region88: #{tpu_custom_call.1} parent=86 // loop_pre_header
                  _
                $region89: #{tpu_custom_call.1} parent=86 // loop_header
                  %s4309 = sphi 0, %s4313
                  %p4310 = scmp.ge.s32.totalorder %s4309, 1
                  %s4314 = sphi %s4188, %s4188
                  %s4315 = sphi %s4194, %s4194
                $region90: #{tpu_custom_call.1} parent=86 // loop_header_branch
                  %4312 = sbr.rel (%p4310) target = $region94
                $region91: #{tpu_custom_call.1} parent=86 // loop_body
                  %v4316 = vld [vmem:[%s4314] sm:$0xff]
                  %4317 = vst [vmem:[%s4315] sm:$0xff] %v4316
                  %v4318 = vld [vmem:[%s4314 + $0x8] sm:$0xff]
                  %4319 = vst [vmem:[%s4315 + $0x8] sm:$0xff] %v4318
                  %v4320 = vld [vmem:[%s4314 + $0x10] sm:$0xff]
                  %4321 = vst [vmem:[%s4315 + $0x10] sm:$0xff] %v4320
                  %v4322 = vld [vmem:[%s4314 + $0x18] sm:$0xff]
                  %4323 = vst [vmem:[%s4315 + $0x18] sm:$0xff] %v4322
                  %v4324 = vld [vmem:[%s4314 + $0x20] sm:$0xff]
                  %4325 = vst [vmem:[%s4315 + $0x20] sm:$0xff] %v4324
                  %v4326 = vld [vmem:[%s4314 + $0x28] sm:$0xff]
                  %4327 = vst [vmem:[%s4315 + $0x28] sm:$0xff] %v4326
                  %v4328 = vld [vmem:[%s4314 + $0x30] sm:$0xff]
                  %4329 = vst [vmem:[%s4315 + $0x30] sm:$0xff] %v4328
                  %v4330 = vld [vmem:[%s4314 + $0x38] sm:$0xff]
                  %4331 = vst [vmem:[%s4315 + $0x38] sm:$0xff] %v4330
                  %v4332 = vld [vmem:[%s4314 + $0x40] sm:$0xff]
                  %4333 = vst [vmem:[%s4315 + $0x40] sm:$0xff] %v4332
                  %v4334 = vld [vmem:[%s4314 + $0x48] sm:$0xff]
                  %4335 = vst [vmem:[%s4315 + $0x48] sm:$0xff] %v4334
                  %v4336 = vld [vmem:[%s4314 + $0x50] sm:$0xff]
                  %4337 = vst [vmem:[%s4315 + $0x50] sm:$0xff] %v4336
                  %v4338 = vld [vmem:[%s4314 + $0x58] sm:$0xff]
                  %4339 = vst [vmem:[%s4315 + $0x58] sm:$0xff] %v4338
                  %v4340 = vld [vmem:[%s4314 + $0x60] sm:$0xff]
                  %4341 = vst [vmem:[%s4315 + $0xc0] sm:$0xff] %v4340
                  %v4342 = vld [vmem:[%s4314 + $0x68] sm:$0xff]
                  %4343 = vst [vmem:[%s4315 + $0xc8] sm:$0xff] %v4342
                  %v4344 = vld [vmem:[%s4314 + $0x70] sm:$0xff]
                  %4345 = vst [vmem:[%s4315 + $0xd0] sm:$0xff] %v4344
                  %v4346 = vld [vmem:[%s4314 + $0x78] sm:$0xff]
                  %4347 = vst [vmem:[%s4315 + $0xd8] sm:$0xff] %v4346
                  %v4348 = vld [vmem:[%s4314 + $0x80] sm:$0xff]
                  %4349 = vst [vmem:[%s4315 + $0xe0] sm:$0xff] %v4348
                  %v4350 = vld [vmem:[%s4314 + $0x88] sm:$0xff]
                  %4351 = vst [vmem:[%s4315 + $0xe8] sm:$0xff] %v4350
                  %v4352 = vld [vmem:[%s4314 + $0x90] sm:$0xff]
                  %4353 = vst [vmem:[%s4315 + $0xf0] sm:$0xff] %v4352
                  %v4354 = vld [vmem:[%s4314 + $0x98] sm:$0xff]
                  %4355 = vst [vmem:[%s4315 + $0xf8] sm:$0xff] %v4354
                  %v4356 = vld [vmem:[%s4314 + $0xa0] sm:$0xff]
                  %4357 = vst [vmem:[%s4315 + $0x100] sm:$0xff] %v4356
                  %v4358 = vld [vmem:[%s4314 + $0xa8] sm:$0xff]
                  %4359 = vst [vmem:[%s4315 + $0x108] sm:$0xff] %v4358
                  %v4360 = vld [vmem:[%s4314 + $0xb0] sm:$0xff]
                  %4361 = vst [vmem:[%s4315 + $0x110] sm:$0xff] %v4360
                  %v4362 = vld [vmem:[%s4314 + $0xb8] sm:$0xff]
                  %4363 = vst [vmem:[%s4315 + $0x118] sm:$0xff] %v4362
                  %v4364 = vld [vmem:[%s4314 + $0xc0] sm:$0xff]
                  %4365 = vst [vmem:[%s4315 + $0x180] sm:$0xff] %v4364
                  %v4366 = vld [vmem:[%s4314 + $0xc8] sm:$0xff]
                  %4367 = vst [vmem:[%s4315 + $0x188] sm:$0xff] %v4366
                  %v4368 = vld [vmem:[%s4314 + $0xd0] sm:$0xff]
                  %4369 = vst [vmem:[%s4315 + $0x190] sm:$0xff] %v4368
                  %v4370 = vld [vmem:[%s4314 + $0xd8] sm:$0xff]
                  %4371 = vst [vmem:[%s4315 + $0x198] sm:$0xff] %v4370
                  %v4372 = vld [vmem:[%s4314 + $0xe0] sm:$0xff]
                  %4373 = vst [vmem:[%s4315 + $0x1a0] sm:$0xff] %v4372
                  %v4374 = vld [vmem:[%s4314 + $0xe8] sm:$0xff]
                  %4375 = vst [vmem:[%s4315 + $0x1a8] sm:$0xff] %v4374
                  %v4376 = vld [vmem:[%s4314 + $0xf0] sm:$0xff]
                  %4377 = vst [vmem:[%s4315 + $0x1b0] sm:$0xff] %v4376
                  %v4378 = vld [vmem:[%s4314 + $0xf8] sm:$0xff]
                  %4379 = vst [vmem:[%s4315 + $0x1b8] sm:$0xff] %v4378
                  %v4380 = vld [vmem:[%s4314 + $0x100] sm:$0xff]
                  %4381 = vst [vmem:[%s4315 + $0x1c0] sm:$0xff] %v4380
                  %v4382 = vld [vmem:[%s4314 + $0x108] sm:$0xff]
                  %4383 = vst [vmem:[%s4315 + $0x1c8] sm:$0xff] %v4382
                  %v4384 = vld [vmem:[%s4314 + $0x110] sm:$0xff]
                  %4385 = vst [vmem:[%s4315 + $0x1d0] sm:$0xff] %v4384
                  %v4386 = vld [vmem:[%s4314 + $0x118] sm:$0xff]
                  %4387 = vst [vmem:[%s4315 + $0x1d8] sm:$0xff] %v4386
                  %v4388 = vld [vmem:[%s4314 + $0x120] sm:$0xff]
                  %4389 = vst [vmem:[%s4315 + $0x240] sm:$0xff] %v4388
                  %v4390 = vld [vmem:[%s4314 + $0x128] sm:$0xff]
                  %4391 = vst [vmem:[%s4315 + $0x248] sm:$0xff] %v4390
                  %v4392 = vld [vmem:[%s4314 + $0x130] sm:$0xff]
                  %4393 = vst [vmem:[%s4315 + $0x250] sm:$0xff] %v4392
                  %v4394 = vld [vmem:[%s4314 + $0x138] sm:$0xff]
                  %4395 = vst [vmem:[%s4315 + $0x258] sm:$0xff] %v4394
                  %v4396 = vld [vmem:[%s4314 + $0x140] sm:$0xff]
                  %4397 = vst [vmem:[%s4315 + $0x260] sm:$0xff] %v4396
                  %v4398 = vld [vmem:[%s4314 + $0x148] sm:$0xff]
                  %4399 = vst [vmem:[%s4315 + $0x268] sm:$0xff] %v4398
                  %v4400 = vld [vmem:[%s4314 + $0x150] sm:$0xff]
                  %4401 = vst [vmem:[%s4315 + $0x270] sm:$0xff] %v4400
                  %v4402 = vld [vmem:[%s4314 + $0x158] sm:$0xff]
                  %4403 = vst [vmem:[%s4315 + $0x278] sm:$0xff] %v4402
                  %v4404 = vld [vmem:[%s4314 + $0x160] sm:$0xff]
                  %4405 = vst [vmem:[%s4315 + $0x280] sm:$0xff] %v4404
                  %v4406 = vld [vmem:[%s4314 + $0x168] sm:$0xff]
                  %4407 = vst [vmem:[%s4315 + $0x288] sm:$0xff] %v4406
                  %v4408 = vld [vmem:[%s4314 + $0x170] sm:$0xff]
                  %4409 = vst [vmem:[%s4315 + $0x290] sm:$0xff] %v4408
                  %v4410 = vld [vmem:[%s4314 + $0x178] sm:$0xff]
                  %4411 = vst [vmem:[%s4315 + $0x298] sm:$0xff] %v4410
                $region92: #{tpu_custom_call.1} parent=86 // loop_footer
                  %s4313 = sadd.s32 1, %s4309
                $region93: #{tpu_custom_call.1} parent=86 // loop_footer_branch
                  %4308 = sbr.rel target = $region89
                $region94: #{tpu_custom_call.1} parent=86 // loop_exit
                  _
              $region87: #{tpu_custom_call.1} parent=71 // pred_fallthru
                _
              // Predicated region
              $region95: #{tpu_custom_call.1} parent=71 // pred_check
                _
              $region96: #{tpu_custom_call.1} parent=71 // pred_check_branch
                %4413 = sbr.rel target = $region98
              $region97: #{tpu_custom_call.1} parent=71 // pred_region
                _
              $region98: #{tpu_custom_call.1} parent=71 // pred_fallthru
                _
            $region72: #{tpu_custom_call.1} parent=67 // pred_fallthru
              _
            // Predicated region
            $region73: #{tpu_custom_call.1} parent=67 // pred_check
              _
            $region74: #{tpu_custom_call.1} parent=67 // pred_check_branch
              %4200 = sbr.rel target = $region76
            $region75: #{tpu_custom_call.1} parent=67 // pred_region
              loop: start=0, step=1, limit=1
              $region77: #{tpu_custom_call.1} parent=75 // loop_pre_header
                _
              $region78: #{tpu_custom_call.1} parent=75 // loop_header
                %s4203 = sphi 0, %s4207
                %p4204 = scmp.ge.s32.totalorder %s4203, 1
                %s4208 = sphi %s4188, %s4188
                %s4209 = sphi %s4194, %s4194
              $region79: #{tpu_custom_call.1} parent=75 // loop_header_branch
                %4206 = sbr.rel (%p4204) target = $region83
              $region80: #{tpu_custom_call.1} parent=75 // loop_body
                %v4210 = vld [vmem:[%s4208] sm:$0xff]
                %4211 = vst [vmem:[%s4209] sm:$0xff] %v4210
                %v4212 = vld [vmem:[%s4208 + $0x8] sm:$0xff]
                %4213 = vst [vmem:[%s4209 + $0x8] sm:$0xff] %v4212
                %v4214 = vld [vmem:[%s4208 + $0x10] sm:$0xff]
                %4215 = vst [vmem:[%s4209 + $0x10] sm:$0xff] %v4214
                %v4216 = vld [vmem:[%s4208 + $0x18] sm:$0xff]
                %4217 = vst [vmem:[%s4209 + $0x18] sm:$0xff] %v4216
                %v4218 = vld [vmem:[%s4208 + $0x20] sm:$0xff]
                %4219 = vst [vmem:[%s4209 + $0x20] sm:$0xff] %v4218
                %v4220 = vld [vmem:[%s4208 + $0x28] sm:$0xff]
                %4221 = vst [vmem:[%s4209 + $0x28] sm:$0xff] %v4220
                %v4222 = vld [vmem:[%s4208 + $0x30] sm:$0xff]
                %4223 = vst [vmem:[%s4209 + $0x30] sm:$0xff] %v4222
                %v4224 = vld [vmem:[%s4208 + $0x38] sm:$0xff]
                %4225 = vst [vmem:[%s4209 + $0x38] sm:$0xff] %v4224
                %v4226 = vld [vmem:[%s4208 + $0x40] sm:$0xff]
                %4227 = vst [vmem:[%s4209 + $0x40] sm:$0xff] %v4226
                %v4228 = vld [vmem:[%s4208 + $0x48] sm:$0xff]
                %4229 = vst [vmem:[%s4209 + $0x48] sm:$0xff] %v4228
                %v4230 = vld [vmem:[%s4208 + $0x50] sm:$0xff]
                %4231 = vst [vmem:[%s4209 + $0x50] sm:$0xff] %v4230
                %v4232 = vld [vmem:[%s4208 + $0x58] sm:$0xff]
                %4233 = vst [vmem:[%s4209 + $0x58] sm:$0xff] %v4232
                %v4234 = vld [vmem:[%s4208 + $0x60] sm:$0xff]
                %4235 = vst [vmem:[%s4209 + $0xc0] sm:$0xff] %v4234
                %v4236 = vld [vmem:[%s4208 + $0x68] sm:$0xff]
                %4237 = vst [vmem:[%s4209 + $0xc8] sm:$0xff] %v4236
                %v4238 = vld [vmem:[%s4208 + $0x70] sm:$0xff]
                %4239 = vst [vmem:[%s4209 + $0xd0] sm:$0xff] %v4238
                %v4240 = vld [vmem:[%s4208 + $0x78] sm:$0xff]
                %4241 = vst [vmem:[%s4209 + $0xd8] sm:$0xff] %v4240
                %v4242 = vld [vmem:[%s4208 + $0x80] sm:$0xff]
                %4243 = vst [vmem:[%s4209 + $0xe0] sm:$0xff] %v4242
                %v4244 = vld [vmem:[%s4208 + $0x88] sm:$0xff]
                %4245 = vst [vmem:[%s4209 + $0xe8] sm:$0xff] %v4244
                %v4246 = vld [vmem:[%s4208 + $0x90] sm:$0xff]
                %4247 = vst [vmem:[%s4209 + $0xf0] sm:$0xff] %v4246
                %v4248 = vld [vmem:[%s4208 + $0x98] sm:$0xff]
                %4249 = vst [vmem:[%s4209 + $0xf8] sm:$0xff] %v4248
                %v4250 = vld [vmem:[%s4208 + $0xa0] sm:$0xff]
                %4251 = vst [vmem:[%s4209 + $0x100] sm:$0xff] %v4250
                %v4252 = vld [vmem:[%s4208 + $0xa8] sm:$0xff]
                %4253 = vst [vmem:[%s4209 + $0x108] sm:$0xff] %v4252
                %v4254 = vld [vmem:[%s4208 + $0xb0] sm:$0xff]
                %4255 = vst [vmem:[%s4209 + $0x110] sm:$0xff] %v4254
                %v4256 = vld [vmem:[%s4208 + $0xb8] sm:$0xff]
                %4257 = vst [vmem:[%s4209 + $0x118] sm:$0xff] %v4256
                %v4258 = vld [vmem:[%s4208 + $0xc0] sm:$0xff]
                %4259 = vst [vmem:[%s4209 + $0x180] sm:$0xff] %v4258
                %v4260 = vld [vmem:[%s4208 + $0xc8] sm:$0xff]
                %4261 = vst [vmem:[%s4209 + $0x188] sm:$0xff] %v4260
                %v4262 = vld [vmem:[%s4208 + $0xd0] sm:$0xff]
                %4263 = vst [vmem:[%s4209 + $0x190] sm:$0xff] %v4262
                %v4264 = vld [vmem:[%s4208 + $0xd8] sm:$0xff]
                %4265 = vst [vmem:[%s4209 + $0x198] sm:$0xff] %v4264
                %v4266 = vld [vmem:[%s4208 + $0xe0] sm:$0xff]
                %4267 = vst [vmem:[%s4209 + $0x1a0] sm:$0xff] %v4266
                %v4268 = vld [vmem:[%s4208 + $0xe8] sm:$0xff]
                %4269 = vst [vmem:[%s4209 + $0x1a8] sm:$0xff] %v4268
                %v4270 = vld [vmem:[%s4208 + $0xf0] sm:$0xff]
                %4271 = vst [vmem:[%s4209 + $0x1b0] sm:$0xff] %v4270
                %v4272 = vld [vmem:[%s4208 + $0xf8] sm:$0xff]
                %4273 = vst [vmem:[%s4209 + $0x1b8] sm:$0xff] %v4272
                %v4274 = vld [vmem:[%s4208 + $0x100] sm:$0xff]
                %4275 = vst [vmem:[%s4209 + $0x1c0] sm:$0xff] %v4274
                %v4276 = vld [vmem:[%s4208 + $0x108] sm:$0xff]
                %4277 = vst [vmem:[%s4209 + $0x1c8] sm:$0xff] %v4276
                %v4278 = vld [vmem:[%s4208 + $0x110] sm:$0xff]
                %4279 = vst [vmem:[%s4209 + $0x1d0] sm:$0xff] %v4278
                %v4280 = vld [vmem:[%s4208 + $0x118] sm:$0xff]
                %4281 = vst [vmem:[%s4209 + $0x1d8] sm:$0xff] %v4280
                %v4282 = vld [vmem:[%s4208 + $0x120] sm:$0xff]
                %4283 = vst [vmem:[%s4209 + $0x240] sm:$0xff] %v4282
                %v4284 = vld [vmem:[%s4208 + $0x128] sm:$0xff]
                %4285 = vst [vmem:[%s4209 + $0x248] sm:$0xff] %v4284
                %v4286 = vld [vmem:[%s4208 + $0x130] sm:$0xff]
                %4287 = vst [vmem:[%s4209 + $0x250] sm:$0xff] %v4286
                %v4288 = vld [vmem:[%s4208 + $0x138] sm:$0xff]
                %4289 = vst [vmem:[%s4209 + $0x258] sm:$0xff] %v4288
                %v4290 = vld [vmem:[%s4208 + $0x140] sm:$0xff]
                %4291 = vst [vmem:[%s4209 + $0x260] sm:$0xff] %v4290
                %v4292 = vld [vmem:[%s4208 + $0x148] sm:$0xff]
                %4293 = vst [vmem:[%s4209 + $0x268] sm:$0xff] %v4292
                %v4294 = vld [vmem:[%s4208 + $0x150] sm:$0xff]
                %4295 = vst [vmem:[%s4209 + $0x270] sm:$0xff] %v4294
                %v4296 = vld [vmem:[%s4208 + $0x158] sm:$0xff]
                %4297 = vst [vmem:[%s4209 + $0x278] sm:$0xff] %v4296
                %v4298 = vld [vmem:[%s4208 + $0x160] sm:$0xff]
                %4299 = vst [vmem:[%s4209 + $0x280] sm:$0xff] %v4298
                %v4300 = vld [vmem:[%s4208 + $0x168] sm:$0xff]
                %4301 = vst [vmem:[%s4209 + $0x288] sm:$0xff] %v4300
                %v4302 = vld [vmem:[%s4208 + $0x170] sm:$0xff]
                %4303 = vst [vmem:[%s4209 + $0x290] sm:$0xff] %v4302
                %v4304 = vld [vmem:[%s4208 + $0x178] sm:$0xff]
                %4305 = vst [vmem:[%s4209 + $0x298] sm:$0xff] %v4304
              $region81: #{tpu_custom_call.1} parent=75 // loop_footer
                %s4207 = sadd.s32 1, %s4203
              $region82: #{tpu_custom_call.1} parent=75 // loop_footer_branch
                %4202 = sbr.rel target = $region78
              $region83: #{tpu_custom_call.1} parent=75 // loop_exit
                _
            $region76: #{tpu_custom_call.1} parent=67 // pred_fallthru
              _
          $region68: #{tpu_custom_call.1} parent=63 // pred_fallthru
            _
          %4414 = vnop
        $region64: #{tpu_custom_call.1} parent=39 // pred_fallthru
          _
      $region40: #{tpu_custom_call.1} parent=5 // pred_fallthru
        _
      %p4415 = scmp.le.s32.totalorder 2, %s17
      // Predicated region
      $region99: #{tpu_custom_call.1} parent=5 // pred_check
        %p4416 = pneg %p4415
      $region100: #{tpu_custom_call.1} parent=5 // pred_check_branch
        %4418 = sbr.rel (%p4416) target = $region102
      $region101: #{tpu_custom_call.1} parent=5 // pred_region
        %s4419 = ssub.s32 %s17, 2
        // Predicated region
        $region103: #{tpu_custom_call.1} parent=101 // pred_check
          %p4420 = pneg %p156
        $region104: #{tpu_custom_call.1} parent=101 // pred_check_branch
          %4422 = sbr.rel (%p4420) target = $region106
        $region105: #{tpu_custom_call.1} parent=101 // pred_region
          %s4423 = sand.u32 %s141, 1
          %s4424 = sand.u32 %s141, 1
          %s4425 = smul.addr %s4424, 384
          %s4426 = scalar_lea.vmem [#allocation12], %s4425
        $region106: #{tpu_custom_call.1} parent=101 // pred_fallthru
          _
      $region102: #{tpu_custom_call.1} parent=5 // pred_fallthru
        _
    $region6: #{tpu_custom_call.1} parent=1 // loop_footer
      %s21 = sadd.s32 1, %s17
    $region7: #{tpu_custom_call.1} parent=1 // loop_footer_branch
      %16 = sbr.rel target = $region3
    $region8: #{tpu_custom_call.1} parent=1 // loop_exit
      _
    %4427 = vsyncpa [#allocation4], 1
    %s4428 = scalar_lea.sflag [#allocation4], 1
    %4429 = vsyncpa %s4428, 1
    %4430 = vsyncpa [#allocation5], 1
    %s4431 = scalar_lea.sflag [#allocation5], 1
    %4432 = vsyncpa %s4431, 1
    %4433 = vsyncpa [#allocation6], 1
    %s4434 = scalar_lea.sflag [#allocation6], 1
    %4435 = vsyncpa %s4434, 1
    %4436 = vsyncpa [#allocation9], 1

</llo_original>
